<compile_context>
chip_gen: v7x
topology: tpu7x:2x2x1
jax: 0.10.0
libtpu: 0.0.40
codegen_flags: <defaults>
</compile_context>

<pallas_src>
import jax
import jax.numpy as jnp
from jax.experimental import pallas as pl
from jax.experimental.pallas import tpu as pltpu


# Set to jnp.bfloat16 on v6e/v7x for faster MXU issue (f32 accumulation is kept via
# preferred_element_type).  Default f32 keeps exact parity with the f32 torch module,
# which the self-test below asserts against.
MATMUL_DTYPE = jnp.float32


# ---------------------------------------------------------------------------
# Fused Pallas kernel (conv stack + GRU) built per call as a closure over the
# static layer geometry.
# ---------------------------------------------------------------------------
def reference_encoder_dynamic(x, conv_params, gru_params, *, stride=2, padding=1):
    """x: (B, seq_len) f32 -> (B, gru_units) f32  (== ref_embs[-1] of the torch GRU)."""
    B, T0 = x.shape
    n_conv = len(conv_params)
    K = conv_params[0][0].shape[0]

    # Fold BN scale into conv weights (trace-time, one-shot).  Keep only the shift.
    conv_w = [w * scale for (w, scale, _shift) in conv_params]      # (K, Cin, Cout)
    conv_b = [shift for (_w, _scale, shift) in conv_params]         # (1, Cout)

    # Static per-layer dims.
    layer_dims = []
    t, c = T0, 1
    for w in conv_w:
        k_, c_in, c_out = w.shape
        assert k_ == K and c_in == c
        t_out = (t + 2 * padding - K) // stride + 1
        layer_dims.append((t, c_in, c_out, t_out))
        t, c = t_out, c_out
    T_gru, C_gru = t, c

    wih, whh, bih, bhh = gru_params           # (C,3H), (H,3H), (1,3H), (1,3H)
    H = whh.shape[0]

    def kernel(*refs):
        idx = 0
        x_ref = refs[idx]; idx += 1
        w_refs = refs[idx:idx + n_conv]; idx += n_conv
        b_refs = refs[idx:idx + n_conv]; idx += n_conv
        wih_ref, whh_ref, bih_ref, bhh_ref = refs[idx:idx + 4]; idx += 4
        out_ref = refs[idx]; idx += 1
        act_refs = refs[idx:]                 # padded per-layer input staging buffers

        # Zero the padded staging buffers once (pad rows then stay zero).
        for a in act_refs:
            a[...] = jnp.zeros_like(a)

        # Stage the raw input, channels-last (B, T0, 1), into the padded buffer.
        act_refs[0][:, padding:padding + T0, :] = x_ref[...]

        feats = None
        for l, (t_in, c_in, c_out, t_out) in enumerate(layer_dims):
            w = w_refs[l][...]                # (K, c_in, c_out), BN scale pre-folded
            shift = b_refs[l][...]            # (1, c_out)
            in_ref = act_refs[l]
            # Conv tap k == strided sublane read of the zero-padded input.
            taps = [in_ref[:, pl.ds(k, t_out, stride=stride), :] for k in range(K)]
            if c_in == 1:
                # Contraction dim 1: VPU weighted sum of shifted slices (no MXU).
                y = taps[0] * w[0]
                for k in range(1, K):
                    y = y + taps[k] * w[k]    # (B,t,1)*(1,c_out) -> (B,t,c_out)
            else:
                acc = None
                for k in range(K):
                    lhs = taps[k].reshape(B * t_out, c_in).astype(MATMUL_DTYPE)
                    d = jnp.dot(lhs, w[k].astype(MATMUL_DTYPE),
                                preferred_element_type=jnp.float32)
                    acc = d if acc is None else acc + d
                y = acc.reshape(B, t_out, c_out)
            y = jnp.maximum(y + shift, 0.0)   # folded-BN shift + ReLU
            if l + 1 < n_conv:
                act_refs[l + 1][:, padding:padding + t_out, :] = y
            else:
                feats = y                     # (B, T_gru, C_gru)

        # ---- single-layer batch_first GRU; write the final hidden state ----
        # Hoist the input projection out of the recurrence: one (B*T, C)x(C,3H) dot.
        x_flat = feats.reshape(B * T_gru, C_gru).astype(MATMUL_DTYPE)
        gi_all = jnp.dot(x_flat, wih_ref[...].astype(MATMUL_DTYPE),
                         preferred_element_type=jnp.float32) + bih_ref[...]
        gi_bt = gi_all.reshape(B, T_gru, 3 * H)

        whh_v = whh_ref[...].astype(MATMUL_DTYPE)
        bhh_v = bhh_ref[...]
        h = jnp.zeros((B, H), jnp.float32)
        for tt in range(T_gru):               # T_gru = seq_len / 2**n_conv (tiny)
            gi = gi_bt[:, tt, :]
            gh = jnp.dot(h.astype(MATMUL_DTYPE), whh_v,
                         preferred_element_type=jnp.float32) + bhh_v
            r = jax.nn.sigmoid(gi[:, :H] + gh[:, :H])
            z = jax.nn.sigmoid(gi[:, H:2 * H] + gh[:, H:2 * H])
            n = jnp.tanh(gi[:, 2 * H:] + r * gh[:, 2 * H:])
            h = (1.0 - z) * n + z * h
        out_ref[...] = h.astype(out_ref.dtype)

    x3 = x[:, :, None]   # torch unsqueeze(1) (B,1,T) in NCW == (B,T,1) channels-last
    args = [x3] + conv_w + conv_b + [wih, whh, bih, bhh]

    vmem = pl.BlockSpec(memory_space=pltpu.MemorySpace.VMEM)
    scratch_shapes = [
        pltpu.VMEM((B, t_in + 2 * padding, c_in), jnp.float32)
        for (t_in, c_in, _c_out, _t_out) in layer_dims
    ]
    return pl.pallas_call(
        kernel,
        out_shape=jax.ShapeDtypeStruct((B, H), jnp.float32),
        in_specs=[vmem] * len(args),
        out_specs=vmem,
        scratch_shapes=scratch_shapes,
        compiler_params=pltpu.CompilerParams(
            # Actual footprint (all weights + staged activations) is < 2 MiB; this
            # stated budget keeps headroom and stays far below v7x's 64 MiB VMEM.
            vmem_limit_bytes=16 * 1024 * 1024,
        ),
    )(*args)


# ---------------------------------------------------------------------------
# Deterministic parameter init (shapes from the torch __init__)
# ---------------------------------------------------------------------------
def init_params(key, conv_chans_list=(32, 32, 64, 64, 128, 128),
                kernel_size=3, gru_units=128):
    eps = 1e-5
    conv_params = []
    for i, out_ch in enumerate(conv_chans_list):
        in_ch = 1 if i == 0 else conv_chans_list[i - 1]
        key, kw = jax.random.split(key)
        w = jax.random.normal(kw, (kernel_size, in_ch, out_ch), jnp.float32) * 0.1
        # BatchNorm1d fresh defaults (eval mode): gamma=1, beta=0, mean=0, var=1
        gamma = jnp.ones((out_ch,), jnp.float32)
        beta = jnp.zeros((out_ch,), jnp.float32)
        mean = jnp.zeros((out_ch,), jnp.float32)
        var = jnp.ones((out_ch,), jnp.float32)
        scale = (gamma / jnp.sqrt(var + eps)).reshape(1, out_ch)
        shift = (beta - mean * gamma / jnp.sqrt(var + eps)).reshape(1, out_ch)
        conv_params.append((w, scale, shift))

    C, H = conv_chans_list[-1], gru_units
    key, k1, k2, k3, k4 = jax.random.split(key, 5)
    wih = jax.random.normal(k1, (C, 3 * H), jnp.float32) * 0.1
    whh = jax.random.normal(k2, (H, 3 * H), jnp.float32) * 0.1
    bih = jax.random.normal(k3, (1, 3 * H), jnp.float32) * 0.1
    bhh = jax.random.normal(k4, (1, 3 * H), jnp.float32) * 0.1
    return conv_params, (wih, whh, bih, bhh)


# ---------------------------------------------------------------------------
# Pure-JAX reference (correctness check for the fused Pallas path)
# ---------------------------------------------------------------------------
def _reference_forward(x, conv_params, gru_params, *, stride=2, padding=1):
    h = x[:, :, None]
    K = conv_params[0][0].shape[0]
    for (w, scale, shift) in conv_params:
        _B, T_in, C_in = h.shape
        C_out = w.shape[-1]
        T_out = (T_in + 2 * padding - K) // stride + 1
        xp = jnp.pad(h, ((0, 0), (padding, padding), (0, 0)))
        cols = jnp.concatenate(
            [xp[:, k: k + (T_out - 1) * stride + 1: stride, :] for k in range(K)],
            axis=-1)
        y = jnp.einsum("btk,kc->btc", cols, w.reshape(K * C_in, C_out))
        h = jnp.maximum(y * scale + shift, 0.0)
    wih, whh, bih, bhh = gru_params
    B = h.shape[0]
    H = whh.shape[0]
    hst = jnp.zeros((B, H), jnp.float32)
    for t in range(h.shape[1]):
        gi = h[:, t, :] @ wih + bih
        gh = hst @ whh + bhh
        r = jax.nn.sigmoid(gi[:, :H] + gh[:, :H])
        z = jax.nn.sigmoid(gi[:, H:2 * H] + gh[:, H:2 * H])
        n = jnp.tanh(gi[:, 2 * H:] + r * gh[:, 2 * H:])
        hst = (1.0 - z) * n + z * hst
    return hst


if __name__ == "__main__":
    # TODO(synk): the torch forward references self.emotion_classifier / z_mel /
    # emotions, which are undefined in the module (would raise NameError); omitted.
    key = jax.random.PRNGKey(0)
    key, kp, kx = jax.random.split(key, 3)
    conv_params, gru_params = init_params(kp)

    batch, seq_len = 2, 128  # 6 stride-2 convs: 128 -> 64 -> 32 -> 16 -> 8 -> 4 -> 2
    x = jax.random.normal(kx, (batch, seq_len), jnp.float32)

    out = reference_encoder_dynamic(x, conv_params, gru_params)
    out = jax.block_until_ready(out)
    assert out.shape == (batch, 128), out.shape

    ref = _reference_forward(x, conv_params, gru_params)
    err = float(jnp.max(jnp.abs(out - ref)))
    assert jnp.allclose(out, ref, atol=1e-4, rtol=1e-4), err

    print("KERNEL_OK")
</pallas_src>

<mosaic_0001>
module attributes {stable_mosaic.version = 11 : i64} {
  func.func @kernel(%arg0: memref<2x128x1xf32, #tpu.memory_space<vmem>>, %arg1: memref<3x1x32xf32, #tpu.memory_space<vmem>>, %arg2: memref<3x32x32xf32, #tpu.memory_space<vmem>>, %arg3: memref<3x32x64xf32, #tpu.memory_space<vmem>>, %arg4: memref<3x64x64xf32, #tpu.memory_space<vmem>>, %arg5: memref<3x64x128xf32, #tpu.memory_space<vmem>>, %arg6: memref<3x128x128xf32, #tpu.memory_space<vmem>>, %arg7: memref<1x32xf32, #tpu.memory_space<vmem>>, %arg8: memref<1x32xf32, #tpu.memory_space<vmem>>, %arg9: memref<1x64xf32, #tpu.memory_space<vmem>>, %arg10: memref<1x64xf32, #tpu.memory_space<vmem>>, %arg11: memref<1x128xf32, #tpu.memory_space<vmem>>, %arg12: memref<1x128xf32, #tpu.memory_space<vmem>>, %arg13: memref<128x384xf32, #tpu.memory_space<vmem>>, %arg14: memref<128x384xf32, #tpu.memory_space<vmem>>, %arg15: memref<1x384xf32, #tpu.memory_space<vmem>>, %arg16: memref<1x384xf32, #tpu.memory_space<vmem>>, %arg17: memref<2x128xf32, #tpu.memory_space<vmem>>, %arg18: memref<2x130x1xf32, #tpu.memory_space<vmem>>, %arg19: memref<2x66x32xf32, #tpu.memory_space<vmem>>, %arg20: memref<2x34x32xf32, #tpu.memory_space<vmem>>, %arg21: memref<2x18x64xf32, #tpu.memory_space<vmem>>, %arg22: memref<2x10x64xf32, #tpu.memory_space<vmem>>, %arg23: memref<2x6x128xf32, #tpu.memory_space<vmem>>) attributes {dimension_semantics = [], scalar_prefetch = 0 : i64, scratch_operands = 6 : i64, tpu.core_type = #tpu.core_type<tc>} {
    %cst = arith.constant 0.000000e+00 : f32
    %0 = vector.broadcast %cst : f32 to vector<2x130x1xf32>
    %c0 = arith.constant 0 : index
    %c0_0 = arith.constant 0 : index
    %c0_1 = arith.constant 0 : index
    %1 = vector.load %arg18[%c0, %c0_0, %c0_1] : memref<2x130x1xf32, #tpu.memory_space<vmem>>, vector<2x130x1xf32>
    tpu.vector_store %arg18[%c0, %c0_0, %c0_1], %0 {strides = array<i32>} : memref<2x130x1xf32, #tpu.memory_space<vmem>>, vector<2x130x1xf32>,
    %cst_2 = arith.constant 0.000000e+00 : f32
    %2 = vector.broadcast %cst_2 : f32 to vector<2x66x32xf32>
    %c0_3 = arith.constant 0 : index
    %c0_4 = arith.constant 0 : index
    %c0_5 = arith.constant 0 : index
    %3 = vector.load %arg19[%c0_3, %c0_4, %c0_5] : memref<2x66x32xf32, #tpu.memory_space<vmem>>, vector<2x66x32xf32>
    tpu.vector_store %arg19[%c0_3, %c0_4, %c0_5], %2 {strides = array<i32>} : memref<2x66x32xf32, #tpu.memory_space<vmem>>, vector<2x66x32xf32>,
    %cst_6 = arith.constant 0.000000e+00 : f32
    %4 = vector.broadcast %cst_6 : f32 to vector<2x34x32xf32>
    %c0_7 = arith.constant 0 : index
    %c0_8 = arith.constant 0 : index
    %c0_9 = arith.constant 0 : index
    %5 = vector.load %arg20[%c0_7, %c0_8, %c0_9] : memref<2x34x32xf32, #tpu.memory_space<vmem>>, vector<2x34x32xf32>
    tpu.vector_store %arg20[%c0_7, %c0_8, %c0_9], %4 {strides = array<i32>} : memref<2x34x32xf32, #tpu.memory_space<vmem>>, vector<2x34x32xf32>,
    %cst_10 = arith.constant 0.000000e+00 : f32
    %6 = vector.broadcast %cst_10 : f32 to vector<2x18x64xf32>
    %c0_11 = arith.constant 0 : index
    %c0_12 = arith.constant 0 : index
    %c0_13 = arith.constant 0 : index
    %7 = vector.load %arg21[%c0_11, %c0_12, %c0_13] : memref<2x18x64xf32, #tpu.memory_space<vmem>>, vector<2x18x64xf32>
    tpu.vector_store %arg21[%c0_11, %c0_12, %c0_13], %6 {strides = array<i32>} : memref<2x18x64xf32, #tpu.memory_space<vmem>>, vector<2x18x64xf32>,
    %cst_14 = arith.constant 0.000000e+00 : f32
    %8 = vector.broadcast %cst_14 : f32 to vector<2x10x64xf32>
    %c0_15 = arith.constant 0 : index
    %c0_16 = arith.constant 0 : index
    %c0_17 = arith.constant 0 : index
    %9 = vector.load %arg22[%c0_15, %c0_16, %c0_17] : memref<2x10x64xf32, #tpu.memory_space<vmem>>, vector<2x10x64xf32>
    tpu.vector_store %arg22[%c0_15, %c0_16, %c0_17], %8 {strides = array<i32>} : memref<2x10x64xf32, #tpu.memory_space<vmem>>, vector<2x10x64xf32>,
    %cst_18 = arith.constant 0.000000e+00 : f32
    %10 = vector.broadcast %cst_18 : f32 to vector<2x6x128xf32>
    %c0_19 = arith.constant 0 : index
    %c0_20 = arith.constant 0 : index
    %c0_21 = arith.constant 0 : index
    %11 = vector.load %arg23[%c0_19, %c0_20, %c0_21] : memref<2x6x128xf32, #tpu.memory_space<vmem>>, vector<2x6x128xf32>
    tpu.vector_store %arg23[%c0_19, %c0_20, %c0_21], %10 {strides = array<i32>} : memref<2x6x128xf32, #tpu.memory_space<vmem>>, vector<2x6x128xf32>,
    %c0_22 = arith.constant 0 : index
    %c0_23 = arith.constant 0 : index
    %c0_24 = arith.constant 0 : index
    %12 = vector.load %arg0[%c0_22, %c0_23, %c0_24] : memref<2x128x1xf32, #tpu.memory_space<vmem>>, vector<2x128x1xf32>
    %c0_25 = arith.constant 0 : index
    %c1 = arith.constant 1 : index
    %c0_26 = arith.constant 0 : index
    %13 = vector.load %arg18[%c0_25, %c1, %c0_26] : memref<2x130x1xf32, #tpu.memory_space<vmem>>, vector<2x128x1xf32>
    tpu.vector_store %arg18[%c0_25, %c1, %c0_26], %12 {strides = array<i32>} : memref<2x130x1xf32, #tpu.memory_space<vmem>>, vector<2x128x1xf32>,
    %c0_27 = arith.constant 0 : index
    %c0_28 = arith.constant 0 : index
    %c0_29 = arith.constant 0 : index
    %14 = vector.load %arg1[%c0_27, %c0_28, %c0_29] : memref<3x1x32xf32, #tpu.memory_space<vmem>>, vector<3x1x32xf32>
    %c0_30 = arith.constant 0 : index
    %c0_31 = arith.constant 0 : index
    %15 = vector.load %arg7[%c0_30, %c0_31] : memref<1x32xf32, #tpu.memory_space<vmem>>, vector<1x32xf32>
    %c0_32 = arith.constant 0 : index
    %c0_33 = arith.constant 0 : index
    %c0_34 = arith.constant 0 : index
    %16 = tpu.strided_load %arg18[%c0_32, %c0_33, %c0_34] {strides = array<i32: 1, 2, 1>} : memref<2x130x1xf32, #tpu.memory_space<vmem>>, vector<2x64x1xf32>
    %c0_35 = arith.constant 0 : index
    %c1_36 = arith.constant 1 : index
    %c0_37 = arith.constant 0 : index
    %17 = tpu.strided_load %arg18[%c0_35, %c1_36, %c0_37] {strides = array<i32: 1, 2, 1>} : memref<2x130x1xf32, #tpu.memory_space<vmem>>, vector<2x64x1xf32>
    %c0_38 = arith.constant 0 : index
    %c2 = arith.constant 2 : index
    %c0_39 = arith.constant 0 : index
    %18 = tpu.strided_load %arg18[%c0_38, %c2, %c0_39] {strides = array<i32: 1, 2, 1>} : memref<2x130x1xf32, #tpu.memory_space<vmem>>, vector<2x64x1xf32>
    %19 = vector.extract_strided_slice %14 {offsets = [0, 0, 0], sizes = [1, 1, 32], strides = [1, 1, 1]} : vector<3x1x32xf32> to vector<1x1x32xf32>
    %20 = vector.shape_cast %19 : vector<1x1x32xf32> to vector<1x32xf32>
    %21 = vector.shape_cast %20 : vector<1x32xf32> to vector<1x1x32xf32>
    %22 = vector.broadcast %16 : vector<2x64x1xf32> to vector<2x64x32xf32>
    %23 = vector.broadcast %21 : vector<1x1x32xf32> to vector<2x64x32xf32>
    %24 = arith.mulf %22, %23 : vector<2x64x32xf32>
    %25 = vector.extract_strided_slice %14 {offsets = [1, 0, 0], sizes = [1, 1, 32], strides = [1, 1, 1]} : vector<3x1x32xf32> to vector<1x1x32xf32>
    %26 = vector.shape_cast %25 : vector<1x1x32xf32> to vector<1x32xf32>
    %27 = vector.shape_cast %26 : vector<1x32xf32> to vector<1x1x32xf32>
    %28 = vector.broadcast %17 : vector<2x64x1xf32> to vector<2x64x32xf32>
    %29 = vector.broadcast %27 : vector<1x1x32xf32> to vector<2x64x32xf32>
    %30 = arith.mulf %28, %29 : vector<2x64x32xf32>
    %31 = arith.addf %24, %30 : vector<2x64x32xf32>
    %32 = vector.extract_strided_slice %14 {offsets = [2, 0, 0], sizes = [1, 1, 32], strides = [1, 1, 1]} : vector<3x1x32xf32> to vector<1x1x32xf32>
    %33 = vector.shape_cast %32 : vector<1x1x32xf32> to vector<1x32xf32>
    %34 = vector.shape_cast %33 : vector<1x32xf32> to vector<1x1x32xf32>
    %35 = vector.broadcast %18 : vector<2x64x1xf32> to vector<2x64x32xf32>
    %36 = vector.broadcast %34 : vector<1x1x32xf32> to vector<2x64x32xf32>
    %37 = arith.mulf %35, %36 : vector<2x64x32xf32>
    %38 = arith.addf %31, %37 : vector<2x64x32xf32>
    %39 = vector.shape_cast %15 : vector<1x32xf32> to vector<1x1x32xf32>
    %40 = vector.broadcast %39 : vector<1x1x32xf32> to vector<2x64x32xf32>
    %41 = arith.addf %38, %40 : vector<2x64x32xf32>
    %cst_40 = arith.constant 0.000000e+00 : f32
    %42 = vector.broadcast %cst_40 : f32 to vector<2x64x32xf32>
    %43 = arith.maximumf %41, %42 : vector<2x64x32xf32>
    %c0_41 = arith.constant 0 : index
    %c1_42 = arith.constant 1 : index
    %c0_43 = arith.constant 0 : index
    %44 = vector.load %arg19[%c0_41, %c1_42, %c0_43] : memref<2x66x32xf32, #tpu.memory_space<vmem>>, vector<2x64x32xf32>
    tpu.vector_store %arg19[%c0_41, %c1_42, %c0_43], %43 {strides = array<i32>} : memref<2x66x32xf32, #tpu.memory_space<vmem>>, vector<2x64x32xf32>,
    %c0_44 = arith.constant 0 : index
    %c0_45 = arith.constant 0 : index
    %c0_46 = arith.constant 0 : index
    %45 = vector.load %arg2[%c0_44, %c0_45, %c0_46] : memref<3x32x32xf32, #tpu.memory_space<vmem>>, vector<3x32x32xf32>
    %c0_47 = arith.constant 0 : index
    %c0_48 = arith.constant 0 : index
    %46 = vector.load %arg8[%c0_47, %c0_48] : memref<1x32xf32, #tpu.memory_space<vmem>>, vector<1x32xf32>
    %c0_49 = arith.constant 0 : index
    %c0_50 = arith.constant 0 : index
    %c0_51 = arith.constant 0 : index
    %47 = tpu.strided_load %arg19[%c0_49, %c0_50, %c0_51] {strides = array<i32: 1, 2, 1>} : memref<2x66x32xf32, #tpu.memory_space<vmem>>, vector<2x32x32xf32>
    %c0_52 = arith.constant 0 : index
    %c1_53 = arith.constant 1 : index
    %c0_54 = arith.constant 0 : index
    %48 = tpu.strided_load %arg19[%c0_52, %c1_53, %c0_54] {strides = array<i32: 1, 2, 1>} : memref<2x66x32xf32, #tpu.memory_space<vmem>>, vector<2x32x32xf32>
    %c0_55 = arith.constant 0 : index
    %c2_56 = arith.constant 2 : index
    %c0_57 = arith.constant 0 : index
    %49 = tpu.strided_load %arg19[%c0_55, %c2_56, %c0_57] {strides = array<i32: 1, 2, 1>} : memref<2x66x32xf32, #tpu.memory_space<vmem>>, vector<2x32x32xf32>
    %50 = vector.shape_cast %47 : vector<2x32x32xf32> to vector<64x32xf32>
    %51 = vector.extract_strided_slice %45 {offsets = [0, 0, 0], sizes = [1, 32, 32], strides = [1, 1, 1]} : vector<3x32x32xf32> to vector<1x32x32xf32>
    %52 = vector.shape_cast %51 : vector<1x32x32xf32> to vector<32x32xf32>
    %cst_58 = arith.constant dense<0.000000e+00> : vector<64x32xf32>
    %53 = tpu.matmul %50, %52, %cst_58 {dimension_numbers = #tpu.dot_dimension_numbers<[1], [0], [0], [1], [0, 0, 1, 1], [], []>} : vector<64x32xf32>, vector<32x32xf32>, vector<64x32xf32> -> vector<64x32xf32>
    %54 = vector.shape_cast %48 : vector<2x32x32xf32> to vector<64x32xf32>
    %55 = vector.extract_strided_slice %45 {offsets = [1, 0, 0], sizes = [1, 32, 32], strides = [1, 1, 1]} : vector<3x32x32xf32> to vector<1x32x32xf32>
    %56 = vector.shape_cast %55 : vector<1x32x32xf32> to vector<32x32xf32>
    %cst_59 = arith.constant dense<0.000000e+00> : vector<64x32xf32>
    %57 = tpu.matmul %54, %56, %cst_59 {dimension_numbers = #tpu.dot_dimension_numbers<[1], [0], [0], [1], [0, 0, 1, 1], [], []>} : vector<64x32xf32>, vector<32x32xf32>, vector<64x32xf32> -> vector<64x32xf32>
    %58 = arith.addf %53, %57 : vector<64x32xf32>
    %59 = vector.shape_cast %49 : vector<2x32x32xf32> to vector<64x32xf32>
    %60 = vector.extract_strided_slice %45 {offsets = [2, 0, 0], sizes = [1, 32, 32], strides = [1, 1, 1]} : vector<3x32x32xf32> to vector<1x32x32xf32>
    %61 = vector.shape_cast %60 : vector<1x32x32xf32> to vector<32x32xf32>
    %cst_60 = arith.constant dense<0.000000e+00> : vector<64x32xf32>
    %62 = tpu.matmul %59, %61, %cst_60 {dimension_numbers = #tpu.dot_dimension_numbers<[1], [0], [0], [1], [0, 0, 1, 1], [], []>} : vector<64x32xf32>, vector<32x32xf32>, vector<64x32xf32> -> vector<64x32xf32>
    %63 = arith.addf %58, %62 : vector<64x32xf32>
    %64 = vector.shape_cast %63 : vector<64x32xf32> to vector<2x32x32xf32>
    %65 = vector.shape_cast %46 : vector<1x32xf32> to vector<1x1x32xf32>
    %66 = vector.broadcast %65 : vector<1x1x32xf32> to vector<2x32x32xf32>
    %67 = arith.addf %64, %66 : vector<2x32x32xf32>
    %cst_61 = arith.constant 0.000000e+00 : f32
    %68 = vector.broadcast %cst_61 : f32 to vector<2x32x32xf32>
    %69 = arith.maximumf %67, %68 : vector<2x32x32xf32>
    %c0_62 = arith.constant 0 : index
    %c1_63 = arith.constant 1 : index
    %c0_64 = arith.constant 0 : index
    %70 = vector.load %arg20[%c0_62, %c1_63, %c0_64] : memref<2x34x32xf32, #tpu.memory_space<vmem>>, vector<2x32x32xf32>
    tpu.vector_store %arg20[%c0_62, %c1_63, %c0_64], %69 {strides = array<i32>} : memref<2x34x32xf32, #tpu.memory_space<vmem>>, vector<2x32x32xf32>,
    %c0_65 = arith.constant 0 : index
    %c0_66 = arith.constant 0 : index
    %c0_67 = arith.constant 0 : index
    %71 = vector.load %arg3[%c0_65, %c0_66, %c0_67] : memref<3x32x64xf32, #tpu.memory_space<vmem>>, vector<3x32x64xf32>
    %c0_68 = arith.constant 0 : index
    %c0_69 = arith.constant 0 : index
    %72 = vector.load %arg9[%c0_68, %c0_69] : memref<1x64xf32, #tpu.memory_space<vmem>>, vector<1x64xf32>
    %c0_70 = arith.constant 0 : index
    %c0_71 = arith.constant 0 : index
    %c0_72 = arith.constant 0 : index
    %73 = tpu.strided_load %arg20[%c0_70, %c0_71, %c0_72] {strides = array<i32: 1, 2, 1>} : memref<2x34x32xf32, #tpu.memory_space<vmem>>, vector<2x16x32xf32>
    %c0_73 = arith.constant 0 : index
    %c1_74 = arith.constant 1 : index
    %c0_75 = arith.constant 0 : index
    %74 = tpu.strided_load %arg20[%c0_73, %c1_74, %c0_75] {strides = array<i32: 1, 2, 1>} : memref<2x34x32xf32, #tpu.memory_space<vmem>>, vector<2x16x32xf32>
    %c0_76 = arith.constant 0 : index
    %c2_77 = arith.constant 2 : index
    %c0_78 = arith.constant 0 : index
    %75 = tpu.strided_load %arg20[%c0_76, %c2_77, %c0_78] {strides = array<i32: 1, 2, 1>} : memref<2x34x32xf32, #tpu.memory_space<vmem>>, vector<2x16x32xf32>
    %76 = vector.shape_cast %73 : vector<2x16x32xf32> to vector<32x32xf32>
    %77 = vector.extract_strided_slice %71 {offsets = [0, 0, 0], sizes = [1, 32, 64], strides = [1, 1, 1]} : vector<3x32x64xf32> to vector<1x32x64xf32>
    %78 = vector.shape_cast %77 : vector<1x32x64xf32> to vector<32x64xf32>
    %cst_79 = arith.constant dense<0.000000e+00> : vector<32x64xf32>
    %79 = tpu.matmul %76, %78, %cst_79 {dimension_numbers = #tpu.dot_dimension_numbers<[1], [0], [0], [1], [0, 0, 1, 1], [], []>} : vector<32x32xf32>, vector<32x64xf32>, vector<32x64xf32> -> vector<32x64xf32>
    %80 = vector.shape_cast %74 : vector<2x16x32xf32> to vector<32x32xf32>
    %81 = vector.extract_strided_slice %71 {offsets = [1, 0, 0], sizes = [1, 32, 64], strides = [1, 1, 1]} : vector<3x32x64xf32> to vector<1x32x64xf32>
    %82 = vector.shape_cast %81 : vector<1x32x64xf32> to vector<32x64xf32>
    %cst_80 = arith.constant dense<0.000000e+00> : vector<32x64xf32>
    %83 = tpu.matmul %80, %82, %cst_80 {dimension_numbers = #tpu.dot_dimension_numbers<[1], [0], [0], [1], [0, 0, 1, 1], [], []>} : vector<32x32xf32>, vector<32x64xf32>, vector<32x64xf32> -> vector<32x64xf32>
    %84 = arith.addf %79, %83 : vector<32x64xf32>
    %85 = vector.shape_cast %75 : vector<2x16x32xf32> to vector<32x32xf32>
    %86 = vector.extract_strided_slice %71 {offsets = [2, 0, 0], sizes = [1, 32, 64], strides = [1, 1, 1]} : vector<3x32x64xf32> to vector<1x32x64xf32>
    %87 = vector.shape_cast %86 : vector<1x32x64xf32> to vector<32x64xf32>
    %cst_81 = arith.constant dense<0.000000e+00> : vector<32x64xf32>
    %88 = tpu.matmul %85, %87, %cst_81 {dimension_numbers = #tpu.dot_dimension_numbers<[1], [0], [0], [1], [0, 0, 1, 1], [], []>} : vector<32x32xf32>, vector<32x64xf32>, vector<32x64xf32> -> vector<32x64xf32>
    %89 = arith.addf %84, %88 : vector<32x64xf32>
    %90 = vector.shape_cast %89 : vector<32x64xf32> to vector<2x16x64xf32>
    %91 = vector.shape_cast %72 : vector<1x64xf32> to vector<1x1x64xf32>
    %92 = vector.broadcast %91 : vector<1x1x64xf32> to vector<2x16x64xf32>
    %93 = arith.addf %90, %92 : vector<2x16x64xf32>
    %cst_82 = arith.constant 0.000000e+00 : f32
    %94 = vector.broadcast %cst_82 : f32 to vector<2x16x64xf32>
    %95 = arith.maximumf %93, %94 : vector<2x16x64xf32>
    %c0_83 = arith.constant 0 : index
    %c1_84 = arith.constant 1 : index
    %c0_85 = arith.constant 0 : index
    %96 = vector.load %arg21[%c0_83, %c1_84, %c0_85] : memref<2x18x64xf32, #tpu.memory_space<vmem>>, vector<2x16x64xf32>
    tpu.vector_store %arg21[%c0_83, %c1_84, %c0_85], %95 {strides = array<i32>} : memref<2x18x64xf32, #tpu.memory_space<vmem>>, vector<2x16x64xf32>,
    %c0_86 = arith.constant 0 : index
    %c0_87 = arith.constant 0 : index
    %c0_88 = arith.constant 0 : index
    %97 = vector.load %arg4[%c0_86, %c0_87, %c0_88] : memref<3x64x64xf32, #tpu.memory_space<vmem>>, vector<3x64x64xf32>
    %c0_89 = arith.constant 0 : index
    %c0_90 = arith.constant 0 : index
    %98 = vector.load %arg10[%c0_89, %c0_90] : memref<1x64xf32, #tpu.memory_space<vmem>>, vector<1x64xf32>
    %c0_91 = arith.constant 0 : index
    %c0_92 = arith.constant 0 : index
    %c0_93 = arith.constant 0 : index
    %99 = tpu.strided_load %arg21[%c0_91, %c0_92, %c0_93] {strides = array<i32: 1, 2, 1>} : memref<2x18x64xf32, #tpu.memory_space<vmem>>, vector<2x8x64xf32>
    %c0_94 = arith.constant 0 : index
    %c1_95 = arith.constant 1 : index
    %c0_96 = arith.constant 0 : index
    %100 = tpu.strided_load %arg21[%c0_94, %c1_95, %c0_96] {strides = array<i32: 1, 2, 1>} : memref<2x18x64xf32, #tpu.memory_space<vmem>>, vector<2x8x64xf32>
    %c0_97 = arith.constant 0 : index
    %c2_98 = arith.constant 2 : index
    %c0_99 = arith.constant 0 : index
    %101 = tpu.strided_load %arg21[%c0_97, %c2_98, %c0_99] {strides = array<i32: 1, 2, 1>} : memref<2x18x64xf32, #tpu.memory_space<vmem>>, vector<2x8x64xf32>
    %102 = vector.shape_cast %99 : vector<2x8x64xf32> to vector<16x64xf32>
    %103 = vector.extract_strided_slice %97 {offsets = [0, 0, 0], sizes = [1, 64, 64], strides = [1, 1, 1]} : vector<3x64x64xf32> to vector<1x64x64xf32>
    %104 = vector.shape_cast %103 : vector<1x64x64xf32> to vector<64x64xf32>
    %cst_100 = arith.constant dense<0.000000e+00> : vector<16x64xf32>
    %105 = tpu.matmul %102, %104, %cst_100 {dimension_numbers = #tpu.dot_dimension_numbers<[1], [0], [0], [1], [0, 0, 1, 1], [], []>} : vector<16x64xf32>, vector<64x64xf32>, vector<16x64xf32> -> vector<16x64xf32>
    %106 = vector.shape_cast %100 : vector<2x8x64xf32> to vector<16x64xf32>
    %107 = vector.extract_strided_slice %97 {offsets = [1, 0, 0], sizes = [1, 64, 64], strides = [1, 1, 1]} : vector<3x64x64xf32> to vector<1x64x64xf32>
    %108 = vector.shape_cast %107 : vector<1x64x64xf32> to vector<64x64xf32>
    %cst_101 = arith.constant dense<0.000000e+00> : vector<16x64xf32>
    %109 = tpu.matmul %106, %108, %cst_101 {dimension_numbers = #tpu.dot_dimension_numbers<[1], [0], [0], [1], [0, 0, 1, 1], [], []>} : vector<16x64xf32>, vector<64x64xf32>, vector<16x64xf32> -> vector<16x64xf32>
    %110 = arith.addf %105, %109 : vector<16x64xf32>
    %111 = vector.shape_cast %101 : vector<2x8x64xf32> to vector<16x64xf32>
    %112 = vector.extract_strided_slice %97 {offsets = [2, 0, 0], sizes = [1, 64, 64], strides = [1, 1, 1]} : vector<3x64x64xf32> to vector<1x64x64xf32>
    %113 = vector.shape_cast %112 : vector<1x64x64xf32> to vector<64x64xf32>
    %cst_102 = arith.constant dense<0.000000e+00> : vector<16x64xf32>
    %114 = tpu.matmul %111, %113, %cst_102 {dimension_numbers = #tpu.dot_dimension_numbers<[1], [0], [0], [1], [0, 0, 1, 1], [], []>} : vector<16x64xf32>, vector<64x64xf32>, vector<16x64xf32> -> vector<16x64xf32>
    %115 = arith.addf %110, %114 : vector<16x64xf32>
    %116 = vector.shape_cast %115 : vector<16x64xf32> to vector<2x8x64xf32>
    %117 = vector.shape_cast %98 : vector<1x64xf32> to vector<1x1x64xf32>
    %118 = vector.broadcast %117 : vector<1x1x64xf32> to vector<2x8x64xf32>
    %119 = arith.addf %116, %118 : vector<2x8x64xf32>
    %cst_103 = arith.constant 0.000000e+00 : f32
    %120 = vector.broadcast %cst_103 : f32 to vector<2x8x64xf32>
    %121 = arith.maximumf %119, %120 : vector<2x8x64xf32>
    %c0_104 = arith.constant 0 : index
    %c1_105 = arith.constant 1 : index
    %c0_106 = arith.constant 0 : index
    %122 = vector.load %arg22[%c0_104, %c1_105, %c0_106] : memref<2x10x64xf32, #tpu.memory_space<vmem>>, vector<2x8x64xf32>
    tpu.vector_store %arg22[%c0_104, %c1_105, %c0_106], %121 {strides = array<i32>} : memref<2x10x64xf32, #tpu.memory_space<vmem>>, vector<2x8x64xf32>,
    %c0_107 = arith.constant 0 : index
    %c0_108 = arith.constant 0 : index
    %c0_109 = arith.constant 0 : index
    %123 = vector.load %arg5[%c0_107, %c0_108, %c0_109] : memref<3x64x128xf32, #tpu.memory_space<vmem>>, vector<3x64x128xf32>
    %c0_110 = arith.constant 0 : index
    %c0_111 = arith.constant 0 : index
    %124 = vector.load %arg11[%c0_110, %c0_111] : memref<1x128xf32, #tpu.memory_space<vmem>>, vector<1x128xf32>
    %c0_112 = arith.constant 0 : index
    %c0_113 = arith.constant 0 : index
    %c0_114 = arith.constant 0 : index
    %125 = tpu.strided_load %arg22[%c0_112, %c0_113, %c0_114] {strides = array<i32: 1, 2, 1>} : memref<2x10x64xf32, #tpu.memory_space<vmem>>, vector<2x4x64xf32>
    %c0_115 = arith.constant 0 : index
    %c1_116 = arith.constant 1 : index
    %c0_117 = arith.constant 0 : index
    %126 = tpu.strided_load %arg22[%c0_115, %c1_116, %c0_117] {strides = array<i32: 1, 2, 1>} : memref<2x10x64xf32, #tpu.memory_space<vmem>>, vector<2x4x64xf32>
    %c0_118 = arith.constant 0 : index
    %c2_119 = arith.constant 2 : index
    %c0_120 = arith.constant 0 : index
    %127 = tpu.strided_load %arg22[%c0_118, %c2_119, %c0_120] {strides = array<i32: 1, 2, 1>} : memref<2x10x64xf32, #tpu.memory_space<vmem>>, vector<2x4x64xf32>
    %128 = vector.shape_cast %125 : vector<2x4x64xf32> to vector<8x64xf32>
    %129 = vector.extract_strided_slice %123 {offsets = [0, 0, 0], sizes = [1, 64, 128], strides = [1, 1, 1]} : vector<3x64x128xf32> to vector<1x64x128xf32>
    %130 = vector.shape_cast %129 : vector<1x64x128xf32> to vector<64x128xf32>
    %cst_121 = arith.constant dense<0.000000e+00> : vector<8x128xf32>
    %131 = tpu.matmul %128, %130, %cst_121 {dimension_numbers = #tpu.dot_dimension_numbers<[1], [0], [0], [1], [0, 0, 1, 1], [], []>} : vector<8x64xf32>, vector<64x128xf32>, vector<8x128xf32> -> vector<8x128xf32>
    %132 = vector.shape_cast %126 : vector<2x4x64xf32> to vector<8x64xf32>
    %133 = vector.extract_strided_slice %123 {offsets = [1, 0, 0], sizes = [1, 64, 128], strides = [1, 1, 1]} : vector<3x64x128xf32> to vector<1x64x128xf32>
    %134 = vector.shape_cast %133 : vector<1x64x128xf32> to vector<64x128xf32>
    %cst_122 = arith.constant dense<0.000000e+00> : vector<8x128xf32>
    %135 = tpu.matmul %132, %134, %cst_122 {dimension_numbers = #tpu.dot_dimension_numbers<[1], [0], [0], [1], [0, 0, 1, 1], [], []>} : vector<8x64xf32>, vector<64x128xf32>, vector<8x128xf32> -> vector<8x128xf32>
    %136 = arith.addf %131, %135 : vector<8x128xf32>
    %137 = vector.shape_cast %127 : vector<2x4x64xf32> to vector<8x64xf32>
    %138 = vector.extract_strided_slice %123 {offsets = [2, 0, 0], sizes = [1, 64, 128], strides = [1, 1, 1]} : vector<3x64x128xf32> to vector<1x64x128xf32>
    %139 = vector.shape_cast %138 : vector<1x64x128xf32> to vector<64x128xf32>
    %cst_123 = arith.constant dense<0.000000e+00> : vector<8x128xf32>
    %140 = tpu.matmul %137, %139, %cst_123 {dimension_numbers = #tpu.dot_dimension_numbers<[1], [0], [0], [1], [0, 0, 1, 1], [], []>} : vector<8x64xf32>, vector<64x128xf32>, vector<8x128xf32> -> vector<8x128xf32>
    %141 = arith.addf %136, %140 : vector<8x128xf32>
    %142 = vector.shape_cast %141 : vector<8x128xf32> to vector<2x4x128xf32>
    %143 = vector.shape_cast %124 : vector<1x128xf32> to vector<1x1x128xf32>
    %144 = vector.broadcast %143 : vector<1x1x128xf32> to vector<2x4x128xf32>
    %145 = arith.addf %142, %144 : vector<2x4x128xf32>
    %cst_124 = arith.constant 0.000000e+00 : f32
    %146 = vector.broadcast %cst_124 : f32 to vector<2x4x128xf32>
    %147 = arith.maximumf %145, %146 : vector<2x4x128xf32>
    %c0_125 = arith.constant 0 : index
    %c1_126 = arith.constant 1 : index
    %c0_127 = arith.constant 0 : index
    %148 = vector.load %arg23[%c0_125, %c1_126, %c0_127] : memref<2x6x128xf32, #tpu.memory_space<vmem>>, vector<2x4x128xf32>
    tpu.vector_store %arg23[%c0_125, %c1_126, %c0_127], %147 {strides = array<i32>} : memref<2x6x128xf32, #tpu.memory_space<vmem>>, vector<2x4x128xf32>,
    %c0_128 = arith.constant 0 : index
    %c0_129 = arith.constant 0 : index
    %c0_130 = arith.constant 0 : index
    %149 = vector.load %arg6[%c0_128, %c0_129, %c0_130] : memref<3x128x128xf32, #tpu.memory_space<vmem>>, vector<3x128x128xf32>
    %c0_131 = arith.constant 0 : index
    %c0_132 = arith.constant 0 : index
    %150 = vector.load %arg12[%c0_131, %c0_132] : memref<1x128xf32, #tpu.memory_space<vmem>>, vector<1x128xf32>
    %c0_133 = arith.constant 0 : index
    %c0_134 = arith.constant 0 : index
    %c0_135 = arith.constant 0 : index
    %151 = tpu.strided_load %arg23[%c0_133, %c0_134, %c0_135] {strides = array<i32: 1, 2, 1>} : memref<2x6x128xf32, #tpu.memory_space<vmem>>, vector<2x2x128xf32>
    %c0_136 = arith.constant 0 : index
    %c1_137 = arith.constant 1 : index
    %c0_138 = arith.constant 0 : index
    %152 = tpu.strided_load %arg23[%c0_136, %c1_137, %c0_138] {strides = array<i32: 1, 2, 1>} : memref<2x6x128xf32, #tpu.memory_space<vmem>>, vector<2x2x128xf32>
    %c0_139 = arith.constant 0 : index
    %c2_140 = arith.constant 2 : index
    %c0_141 = arith.constant 0 : index
    %153 = tpu.strided_load %arg23[%c0_139, %c2_140, %c0_141] {strides = array<i32: 1, 2, 1>} : memref<2x6x128xf32, #tpu.memory_space<vmem>>, vector<2x2x128xf32>
    %154 = vector.shape_cast %151 : vector<2x2x128xf32> to vector<4x128xf32>
    %155 = vector.extract_strided_slice %149 {offsets = [0, 0, 0], sizes = [1, 128, 128], strides = [1, 1, 1]} : vector<3x128x128xf32> to vector<1x128x128xf32>
    %156 = vector.shape_cast %155 : vector<1x128x128xf32> to vector<128x128xf32>
    %cst_142 = arith.constant dense<0.000000e+00> : vector<4x128xf32>
    %157 = tpu.matmul %154, %156, %cst_142 {dimension_numbers = #tpu.dot_dimension_numbers<[1], [0], [0], [1], [0, 0, 1, 1], [], []>} : vector<4x128xf32>, vector<128x128xf32>, vector<4x128xf32> -> vector<4x128xf32>
    %158 = vector.shape_cast %152 : vector<2x2x128xf32> to vector<4x128xf32>
    %159 = vector.extract_strided_slice %149 {offsets = [1, 0, 0], sizes = [1, 128, 128], strides = [1, 1, 1]} : vector<3x128x128xf32> to vector<1x128x128xf32>
    %160 = vector.shape_cast %159 : vector<1x128x128xf32> to vector<128x128xf32>
    %cst_143 = arith.constant dense<0.000000e+00> : vector<4x128xf32>
    %161 = tpu.matmul %158, %160, %cst_143 {dimension_numbers = #tpu.dot_dimension_numbers<[1], [0], [0], [1], [0, 0, 1, 1], [], []>} : vector<4x128xf32>, vector<128x128xf32>, vector<4x128xf32> -> vector<4x128xf32>
    %162 = arith.addf %157, %161 : vector<4x128xf32>
    %163 = vector.shape_cast %153 : vector<2x2x128xf32> to vector<4x128xf32>
    %164 = vector.extract_strided_slice %149 {offsets = [2, 0, 0], sizes = [1, 128, 128], strides = [1, 1, 1]} : vector<3x128x128xf32> to vector<1x128x128xf32>
    %165 = vector.shape_cast %164 : vector<1x128x128xf32> to vector<128x128xf32>
    %cst_144 = arith.constant dense<0.000000e+00> : vector<4x128xf32>
    %166 = tpu.matmul %163, %165, %cst_144 {dimension_numbers = #tpu.dot_dimension_numbers<[1], [0], [0], [1], [0, 0, 1, 1], [], []>} : vector<4x128xf32>, vector<128x128xf32>, vector<4x128xf32> -> vector<4x128xf32>
    %167 = arith.addf %162, %166 : vector<4x128xf32>
    %168 = vector.shape_cast %167 : vector<4x128xf32> to vector<2x2x128xf32>
    %169 = vector.shape_cast %150 : vector<1x128xf32> to vector<1x1x128xf32>
    %170 = vector.broadcast %169 : vector<1x1x128xf32> to vector<2x2x128xf32>
    %171 = arith.addf %168, %170 : vector<2x2x128xf32>
    %cst_145 = arith.constant 0.000000e+00 : f32
    %172 = vector.broadcast %cst_145 : f32 to vector<2x2x128xf32>
    %173 = arith.maximumf %171, %172 : vector<2x2x128xf32>
    %174 = vector.shape_cast %173 : vector<2x2x128xf32> to vector<4x128xf32>
    %c0_146 = arith.constant 0 : index
    %c0_147 = arith.constant 0 : index
    %175 = vector.load %arg13[%c0_146, %c0_147] : memref<128x384xf32, #tpu.memory_space<vmem>>, vector<128x384xf32>
    %cst_148 = arith.constant dense<0.000000e+00> : vector<4x384xf32>
    %176 = tpu.matmul %174, %175, %cst_148 {dimension_numbers = #tpu.dot_dimension_numbers<[1], [0], [0], [1], [0, 0, 1, 1], [], []>} : vector<4x128xf32>, vector<128x384xf32>, vector<4x384xf32> -> vector<4x384xf32>
    %c0_149 = arith.constant 0 : index
    %c0_150 = arith.constant 0 : index
    %177 = vector.load %arg15[%c0_149, %c0_150] : memref<1x384xf32, #tpu.memory_space<vmem>>, vector<1x384xf32>
    %178 = vector.broadcast %177 : vector<1x384xf32> to vector<4x384xf32>
    %179 = arith.addf %176, %178 : vector<4x384xf32>
    %180 = vector.shape_cast %179 : vector<4x384xf32> to vector<2x2x384xf32>
    %c0_151 = arith.constant 0 : index
    %c0_152 = arith.constant 0 : index
    %181 = vector.load %arg14[%c0_151, %c0_152] : memref<128x384xf32, #tpu.memory_space<vmem>>, vector<128x384xf32>
    %c0_153 = arith.constant 0 : index
    %c0_154 = arith.constant 0 : index
    %182 = vector.load %arg16[%c0_153, %c0_154] : memref<1x384xf32, #tpu.memory_space<vmem>>, vector<1x384xf32>
    %cst_155 = arith.constant 0.000000e+00 : f32
    %183 = vector.broadcast %cst_155 : f32 to vector<2x128xf32>
    %184 = vector.extract_strided_slice %180 {offsets = [0, 0, 0], sizes = [2, 1, 384], strides = [1, 1, 1]} : vector<2x2x384xf32> to vector<2x1x384xf32>
    %185 = vector.shape_cast %184 : vector<2x1x384xf32> to vector<2x384xf32>
    %cst_156 = arith.constant dense<0.000000e+00> : vector<2x384xf32>
    %186 = tpu.matmul %183, %181, %cst_156 {dimension_numbers = #tpu.dot_dimension_numbers<[1], [0], [0], [1], [0, 0, 1, 1], [], []>} : vector<2x128xf32>, vector<128x384xf32>, vector<2x384xf32> -> vector<2x384xf32>
    %187 = vector.broadcast %182 : vector<1x384xf32> to vector<2x384xf32>
    %188 = arith.addf %186, %187 : vector<2x384xf32>
    %189 = vector.extract_strided_slice %185 {offsets = [0, 0], sizes = [2, 128], strides = [1, 1]} : vector<2x384xf32> to vector<2x128xf32>
    %190 = vector.extract_strided_slice %188 {offsets = [0, 0], sizes = [2, 128], strides = [1, 1]} : vector<2x384xf32> to vector<2x128xf32>
    %191 = arith.addf %189, %190 : vector<2x128xf32>
    %192 = arith.negf %191 : vector<2x128xf32>
    %193 = math.exp %192 : vector<2x128xf32>
    %cst_157 = arith.constant 1.000000e+00 : f32
    %194 = vector.broadcast %cst_157 : f32 to vector<2x128xf32>
    %195 = arith.addf %194, %193 : vector<2x128xf32>
    %196 = arith.divf %194, %195 : vector<2x128xf32>
    %197 = vector.extract_strided_slice %185 {offsets = [0, 128], sizes = [2, 128], strides = [1, 1]} : vector<2x384xf32> to vector<2x128xf32>
    %198 = vector.extract_strided_slice %188 {offsets = [0, 128], sizes = [2, 128], strides = [1, 1]} : vector<2x384xf32> to vector<2x128xf32>
    %199 = arith.addf %197, %198 : vector<2x128xf32>
    %200 = arith.negf %199 : vector<2x128xf32>
    %201 = math.exp %200 : vector<2x128xf32>
    %cst_158 = arith.constant 1.000000e+00 : f32
    %202 = vector.broadcast %cst_158 : f32 to vector<2x128xf32>
    %203 = arith.addf %202, %201 : vector<2x128xf32>
    %204 = arith.divf %202, %203 : vector<2x128xf32>
    %205 = vector.extract_strided_slice %185 {offsets = [0, 256], sizes = [2, 128], strides = [1, 1]} : vector<2x384xf32> to vector<2x128xf32>
    %206 = vector.extract_strided_slice %188 {offsets = [0, 256], sizes = [2, 128], strides = [1, 1]} : vector<2x384xf32> to vector<2x128xf32>
    %207 = arith.mulf %196, %206 : vector<2x128xf32>
    %208 = arith.addf %205, %207 : vector<2x128xf32>
    %209 = math.tanh %208 : vector<2x128xf32>
    %cst_159 = arith.constant 1.000000e+00 : f32
    %210 = vector.broadcast %cst_159 : f32 to vector<2x128xf32>
    %211 = arith.subf %210, %204 : vector<2x128xf32>
    %212 = arith.mulf %211, %209 : vector<2x128xf32>
    %213 = arith.mulf %204, %183 : vector<2x128xf32>
    %214 = arith.addf %212, %213 : vector<2x128xf32>
    %215 = vector.extract_strided_slice %180 {offsets = [0, 1, 0], sizes = [2, 1, 384], strides = [1, 1, 1]} : vector<2x2x384xf32> to vector<2x1x384xf32>
    %216 = vector.shape_cast %215 : vector<2x1x384xf32> to vector<2x384xf32>
    %cst_160 = arith.constant dense<0.000000e+00> : vector<2x384xf32>
    %217 = tpu.matmul %214, %181, %cst_160 {dimension_numbers = #tpu.dot_dimension_numbers<[1], [0], [0], [1], [0, 0, 1, 1], [], []>} : vector<2x128xf32>, vector<128x384xf32>, vector<2x384xf32> -> vector<2x384xf32>
    %218 = vector.broadcast %182 : vector<1x384xf32> to vector<2x384xf32>
    %219 = arith.addf %217, %218 : vector<2x384xf32>
    %220 = vector.extract_strided_slice %216 {offsets = [0, 0], sizes = [2, 128], strides = [1, 1]} : vector<2x384xf32> to vector<2x128xf32>
    %221 = vector.extract_strided_slice %219 {offsets = [0, 0], sizes = [2, 128], strides = [1, 1]} : vector<2x384xf32> to vector<2x128xf32>
    %222 = arith.addf %220, %221 : vector<2x128xf32>
    %223 = arith.negf %222 : vector<2x128xf32>
    %224 = math.exp %223 : vector<2x128xf32>
    %cst_161 = arith.constant 1.000000e+00 : f32
    %225 = vector.broadcast %cst_161 : f32 to vector<2x128xf32>
    %226 = arith.addf %225, %224 : vector<2x128xf32>
    %227 = arith.divf %225, %226 : vector<2x128xf32>
    %228 = vector.extract_strided_slice %216 {offsets = [0, 128], sizes = [2, 128], strides = [1, 1]} : vector<2x384xf32> to vector<2x128xf32>
    %229 = vector.extract_strided_slice %219 {offsets = [0, 128], sizes = [2, 128], strides = [1, 1]} : vector<2x384xf32> to vector<2x128xf32>
    %230 = arith.addf %228, %229 : vector<2x128xf32>
    %231 = arith.negf %230 : vector<2x128xf32>
    %232 = math.exp %231 : vector<2x128xf32>
    %cst_162 = arith.constant 1.000000e+00 : f32
    %233 = vector.broadcast %cst_162 : f32 to vector<2x128xf32>
    %234 = arith.addf %233, %232 : vector<2x128xf32>
    %235 = arith.divf %233, %234 : vector<2x128xf32>
    %236 = vector.extract_strided_slice %216 {offsets = [0, 256], sizes = [2, 128], strides = [1, 1]} : vector<2x384xf32> to vector<2x128xf32>
    %237 = vector.extract_strided_slice %219 {offsets = [0, 256], sizes = [2, 128], strides = [1, 1]} : vector<2x384xf32> to vector<2x128xf32>
    %238 = arith.mulf %227, %237 : vector<2x128xf32>
    %239 = arith.addf %236, %238 : vector<2x128xf32>
    %240 = math.tanh %239 : vector<2x128xf32>
    %cst_163 = arith.constant 1.000000e+00 : f32
    %241 = vector.broadcast %cst_163 : f32 to vector<2x128xf32>
    %242 = arith.subf %241, %235 : vector<2x128xf32>
    %243 = arith.mulf %242, %240 : vector<2x128xf32>
    %244 = arith.mulf %235, %214 : vector<2x128xf32>
    %245 = arith.addf %243, %244 : vector<2x128xf32>
    %c0_164 = arith.constant 0 : index
    %c0_165 = arith.constant 0 : index
    %246 = vector.load %arg17[%c0_164, %c0_165] : memref<2x128xf32, #tpu.memory_space<vmem>>, vector<2x128xf32>
    tpu.vector_store %arg17[%c0_164, %c0_165], %245 {strides = array<i32>} : memref<2x128xf32, #tpu.memory_space<vmem>>, vector<2x128xf32>,
    return
  }
}

</mosaic_0001>

<llo_original>
// kernel: tpu_custom_call.1
$region0: #{tpu_custom_call.1}
  #allocation0 [shape = 'u32[]', space=smem, size = 0x4, offset = 0x4, fixed_abs, tag = 'smem constant byte address 0x4 - core index']
  #allocation1 [shape = 'u32[144,128]{1,0:T(1,128)}', space=vmem, size = 0x12000, scoped, tag = 'internal scratch']
  #allocation2 [shape = 'f32[2,130,1]{2,1,0:T(8,128)}', space=vmem, size = 0x22000, scoped, tag = 'scratch operand']
  #allocation3 [shape = 'f32[2,66,32]{2,1,0:T(8,128)}', space=vmem, size = 0x12000, scoped, tag = 'scratch operand']
  #allocation4 [shape = 'f32[2,34,32]{2,1,0:T(8,128)}', space=vmem, size = 0xa000, scoped, tag = 'scratch operand']
  #allocation5 [shape = 'f32[2,18,64]{2,1,0:T(8,128)}', space=vmem, size = 0x6000, scoped, tag = 'scratch operand']
  #allocation6 [shape = 'f32[2,10,64]{2,1,0:T(8,128)}', space=vmem, size = 0x4000, scoped, tag = 'scratch operand']
  #allocation7 [shape = 'f32[2,6,128]{2,1,0:T(8,128)}', space=vmem, size = 0x2000, scoped, tag = 'scratch operand']
  %s0 = inlined_call_operand.vmem [shape: f32[2,128,1], index: 0, kind: input, shape index: {}]
  %s1 = inlined_call_operand.vmem [shape: f32[3,1,32], index: 1, kind: input, shape index: {}]
  %s2 = inlined_call_operand.hbm [shape: f32[3,32,32], index: 2, kind: input, shape index: {}]
  %s3 = inlined_call_operand.hbm [shape: f32[3,32,64], index: 3, kind: input, shape index: {}]
  %s4 = inlined_call_operand.vmem [shape: f32[3,64,64], index: 4, kind: input, shape index: {}]
  %s5 = inlined_call_operand.hbm [shape: f32[3,64,128], index: 5, kind: input, shape index: {}]
  %s6 = inlined_call_operand.hbm [shape: f32[3,128,128], index: 6, kind: input, shape index: {}]
  %s7 = inlined_call_operand.vmem [shape: f32[1,32], index: 7, kind: input, shape index: {}]
  %s8 = inlined_call_operand.vmem [shape: f32[1,32], index: 8, kind: input, shape index: {}]
  %s9 = inlined_call_operand.vmem [shape: f32[1,64], index: 9, kind: input, shape index: {}]
  %s10 = inlined_call_operand.vmem [shape: f32[1,64], index: 10, kind: input, shape index: {}]
  %s11 = inlined_call_operand.vmem [shape: f32[1,128], index: 11, kind: input, shape index: {}]
  %s12 = inlined_call_operand.vmem [shape: f32[1,128], index: 12, kind: input, shape index: {}]
  %s13 = inlined_call_operand.hbm [shape: f32[128,384], index: 13, kind: input, shape index: {}]
  %s14 = inlined_call_operand.hbm [shape: f32[128,384], index: 14, kind: input, shape index: {}]
  %s15 = inlined_call_operand.vmem [shape: f32[1,384], index: 15, kind: input, shape index: {}]
  %s16 = inlined_call_operand.vmem [shape: f32[1,384], index: 16, kind: input, shape index: {}]
  %s17 = inlined_call_operand.hbm [shape: f32[2,128], index: 17, kind: output, shape index: {}]
  %s18 = sld [smem:[#allocation0]]
  $region102: #{tpu_custom_call.1} parent=0
    _
  %s20 = ssub.s32 1, %s18
  %s21 = scalar_select 0, %s20, %s18
  $region1: #{tpu_custom_call.1} parent=0
    #allocation8 [shape = 'u8[49152]{0}', space=vmem, size = 0xc000, scoped, tag = 'input window, operand 2, single buffered']
    #allocation9 [shape = 's32[1]{0}', space=sflag, size = 0x4, scoped, tag = 'scoped memory for tpu_custom_call.1']
    #allocation10 [shape = 's32[1]{0}', space=sflag, size = 0x4, scoped, tag = 'scoped memory for tpu_custom_call.1']
    #allocation11 [shape = 'u8[49152]{0}', space=vmem, size = 0xc000, scoped, tag = 'input window, operand 3, single buffered']
    #allocation12 [shape = 's32[1]{0}', space=sflag, size = 0x4, scoped, tag = 'scoped memory for tpu_custom_call.1']
    #allocation13 [shape = 'u8[98304]{0}', space=vmem, size = 0x18000, scoped, tag = 'input window, operand 5, single buffered']
    #allocation14 [shape = 'u8[196608]{0}', space=vmem, size = 0x30000, scoped, tag = 'input window, operand 6, single buffered']
    #allocation15 [shape = 's32[1]{0}', space=sflag, size = 0x4, scoped, tag = 'scoped memory for tpu_custom_call.1']
    #allocation16 [shape = 'u8[196608]{0}', space=vmem, size = 0x30000, scoped, tag = 'input window, operand 13, single buffered']
    #allocation17 [shape = 'u8[196608]{0}', space=vmem, size = 0x30000, scoped, tag = 'input window, operand 14, single buffered']
    #allocation18 [shape = 's32[1]{0}', space=sflag, size = 0x4, scoped, tag = 'scoped memory for tpu_custom_call.1']
    #allocation19 [shape = 'u8[1024]{0}', space=vmem, size = 0x400, scoped, tag = 'output window, operand 0, single buffered']
    %22 = vsyncpa [#allocation9], 0
    %23 = vsyncpa [#allocation12], 0
    %24 = vsyncpa [#allocation15], 0
    %25 = vsyncpa [#allocation18], 0
    %26 = vsyncpa [#allocation10], 0
    // Predicated region
    $region2: #{tpu_custom_call.1} parent=1 // pred_check
      _
    $region3: #{tpu_custom_call.1} parent=1 // pred_check_branch
      %28 = sbr.rel (0) target = $region5
    $region4: #{tpu_custom_call.1} parent=1 // pred_region
      _
    $region5: #{tpu_custom_call.1} parent=1 // pred_fallthru
      _
    // Predicated region
    $region6: #{tpu_custom_call.1} parent=1 // pred_check
      _
    $region7: #{tpu_custom_call.1} parent=1 // pred_check_branch
      %30 = sbr.rel (0) target = $region9
    $region8: #{tpu_custom_call.1} parent=1 // pred_region
      _
    $region9: #{tpu_custom_call.1} parent=1 // pred_fallthru
      _
    // Predicated region
    $region10: #{tpu_custom_call.1} parent=1 // pred_check
      _
    $region11: #{tpu_custom_call.1} parent=1 // pred_check_branch
      %32 = sbr.rel (0) target = $region13
    $region12: #{tpu_custom_call.1} parent=1 // pred_region
      %s34 = ssub.s32 1536, 1536
      %35 = vsyncadd [#allocation9], %s34
      %s36 = sshll.u32 [#allocation8], 4
      %s37 = int_to_ptr.vmem [resolvable:$true] %s36
      %42 = dma.hbm_to_vmem [thread:$0]  %s2, 1536, %s37, [#allocation9], 128, 128, 8
    $region13: #{tpu_custom_call.1} parent=1 // pred_fallthru
      _
    // Predicated region
    $region14: #{tpu_custom_call.1} parent=1 // pred_check
      _
    $region15: #{tpu_custom_call.1} parent=1 // pred_check_branch
      %44 = sbr.rel (0) target = $region17
    $region16: #{tpu_custom_call.1} parent=1 // pred_region
      %s46 = ssub.s32 1536, 1536
      %47 = vsyncadd [#allocation12], %s46
      %s48 = sshll.u32 [#allocation11], 4
      %s49 = int_to_ptr.vmem [resolvable:$true] %s48
      %54 = dma.hbm_to_vmem [thread:$0]  %s3, 1536, %s49, [#allocation12], 128, 128, 8
    $region17: #{tpu_custom_call.1} parent=1 // pred_fallthru
      _
    // Predicated region
    $region18: #{tpu_custom_call.1} parent=1 // pred_check
      _
    $region19: #{tpu_custom_call.1} parent=1 // pred_check_branch
      %56 = sbr.rel (0) target = $region21
    $region20: #{tpu_custom_call.1} parent=1 // pred_region
      _
    $region21: #{tpu_custom_call.1} parent=1 // pred_fallthru
      _
    // Predicated region
    $region22: #{tpu_custom_call.1} parent=1 // pred_check
      _
    $region23: #{tpu_custom_call.1} parent=1 // pred_check_branch
      %58 = sbr.rel (0) target = $region25
    $region24: #{tpu_custom_call.1} parent=1 // pred_region
      %s60 = ssub.s32 3072, 3072
      %61 = vsyncadd [#allocation12], %s60
      %s62 = sshll.u32 [#allocation13], 4
      %s63 = int_to_ptr.vmem [resolvable:$true] %s62
      %68 = dma.hbm_to_vmem [thread:$0]  %s5, 3072, %s63, [#allocation12], 128, 128, 8
    $region25: #{tpu_custom_call.1} parent=1 // pred_fallthru
      _
    // Predicated region
    $region26: #{tpu_custom_call.1} parent=1 // pred_check
      _
    $region27: #{tpu_custom_call.1} parent=1 // pred_check_branch
      %70 = sbr.rel (0) target = $region29
    $region28: #{tpu_custom_call.1} parent=1 // pred_region
      %s72 = ssub.s32 6144, 6144
      %73 = vsyncadd [#allocation15], %s72
      %s74 = sshll.u32 [#allocation14], 4
      %s75 = int_to_ptr.vmem [resolvable:$true] %s74
      %80 = dma.hbm_to_vmem [thread:$0]  %s6, 6144, %s75, [#allocation15], 128, 128, 8
    $region29: #{tpu_custom_call.1} parent=1 // pred_fallthru
      _
    // Predicated region
    $region30: #{tpu_custom_call.1} parent=1 // pred_check
      _
    $region31: #{tpu_custom_call.1} parent=1 // pred_check_branch
      %82 = sbr.rel (0) target = $region33
    $region32: #{tpu_custom_call.1} parent=1 // pred_region
      _
    $region33: #{tpu_custom_call.1} parent=1 // pred_fallthru
      _
    // Predicated region
    $region34: #{tpu_custom_call.1} parent=1 // pred_check
      _
    $region35: #{tpu_custom_call.1} parent=1 // pred_check_branch
      %84 = sbr.rel (0) target = $region37
    $region36: #{tpu_custom_call.1} parent=1 // pred_region
      _
    $region37: #{tpu_custom_call.1} parent=1 // pred_fallthru
      _
    // Predicated region
    $region38: #{tpu_custom_call.1} parent=1 // pred_check
      _
    $region39: #{tpu_custom_call.1} parent=1 // pred_check_branch
      %86 = sbr.rel (0) target = $region41
    $region40: #{tpu_custom_call.1} parent=1 // pred_region
      _
    $region41: #{tpu_custom_call.1} parent=1 // pred_fallthru
      _
    // Predicated region
    $region42: #{tpu_custom_call.1} parent=1 // pred_check
      _
    $region43: #{tpu_custom_call.1} parent=1 // pred_check_branch
      %88 = sbr.rel (0) target = $region45
    $region44: #{tpu_custom_call.1} parent=1 // pred_region
      _
    $region45: #{tpu_custom_call.1} parent=1 // pred_fallthru
      _
    // Predicated region
    $region46: #{tpu_custom_call.1} parent=1 // pred_check
      _
    $region47: #{tpu_custom_call.1} parent=1 // pred_check_branch
      %90 = sbr.rel (0) target = $region49
    $region48: #{tpu_custom_call.1} parent=1 // pred_region
      _
    $region49: #{tpu_custom_call.1} parent=1 // pred_fallthru
      _
    // Predicated region
    $region50: #{tpu_custom_call.1} parent=1 // pred_check
      _
    $region51: #{tpu_custom_call.1} parent=1 // pred_check_branch
      %92 = sbr.rel (0) target = $region53
    $region52: #{tpu_custom_call.1} parent=1 // pred_region
      _
    $region53: #{tpu_custom_call.1} parent=1 // pred_fallthru
      _
    // Predicated region
    $region54: #{tpu_custom_call.1} parent=1 // pred_check
      _
    $region55: #{tpu_custom_call.1} parent=1 // pred_check_branch
      %94 = sbr.rel (0) target = $region57
    $region56: #{tpu_custom_call.1} parent=1 // pred_region
      %s96 = ssub.s32 6144, 6144
      %97 = vsyncadd [#allocation15], %s96
      %s98 = sshll.u32 [#allocation16], 4
      %s99 = int_to_ptr.vmem [resolvable:$true] %s98
      %104 = dma.hbm_to_vmem [thread:$0]  %s13, 6144, %s99, [#allocation15], 384, 384, 24
    $region57: #{tpu_custom_call.1} parent=1 // pred_fallthru
      _
    // Predicated region
    $region58: #{tpu_custom_call.1} parent=1 // pred_check
      _
    $region59: #{tpu_custom_call.1} parent=1 // pred_check_branch
      %106 = sbr.rel (0) target = $region61
    $region60: #{tpu_custom_call.1} parent=1 // pred_region
      %s108 = ssub.s32 6144, 6144
      %109 = vsyncadd [#allocation18], %s108
      %s110 = sshll.u32 [#allocation17], 4
      %s111 = int_to_ptr.vmem [resolvable:$true] %s110
      %116 = dma.hbm_to_vmem [thread:$0]  %s14, 6144, %s111, [#allocation18], 384, 384, 24
    $region61: #{tpu_custom_call.1} parent=1 // pred_fallthru
      _
    // Predicated region
    $region62: #{tpu_custom_call.1} parent=1 // pred_check
      _
    $region63: #{tpu_custom_call.1} parent=1 // pred_check_branch
      %118 = sbr.rel (0) target = $region65
    $region64: #{tpu_custom_call.1} parent=1 // pred_region
      _
    $region65: #{tpu_custom_call.1} parent=1 // pred_fallthru
      _
    // Predicated region
    $region66: #{tpu_custom_call.1} parent=1 // pred_check
      _
    $region67: #{tpu_custom_call.1} parent=1 // pred_check_branch
      %120 = sbr.rel (0) target = $region69
    $region68: #{tpu_custom_call.1} parent=1 // pred_region
      _
    $region69: #{tpu_custom_call.1} parent=1 // pred_fallthru
      _
    // Predicated region
    $region70: #{tpu_custom_call.1} parent=1 // pred_check
      _
    $region71: #{tpu_custom_call.1} parent=1 // pred_check_branch
      %122 = sbr.rel (0) target = $region73
    $region72: #{tpu_custom_call.1} parent=1 // pred_region
      %123 = dma.done [#allocation9], 1536
    $region73: #{tpu_custom_call.1} parent=1 // pred_fallthru
      _
    // Predicated region
    $region74: #{tpu_custom_call.1} parent=1 // pred_check
      _
    $region75: #{tpu_custom_call.1} parent=1 // pred_check_branch
      %125 = sbr.rel (0) target = $region77
    $region76: #{tpu_custom_call.1} parent=1 // pred_region
      %126 = dma.done [#allocation12], 1536
    $region77: #{tpu_custom_call.1} parent=1 // pred_fallthru
      _
    // Predicated region
    $region78: #{tpu_custom_call.1} parent=1 // pred_check
      _
    $region79: #{tpu_custom_call.1} parent=1 // pred_check_branch
      %128 = sbr.rel (0) target = $region81
    $region80: #{tpu_custom_call.1} parent=1 // pred_region
      %129 = dma.done [#allocation12], 3072
    $region81: #{tpu_custom_call.1} parent=1 // pred_fallthru
      _
    // Predicated region
    $region82: #{tpu_custom_call.1} parent=1 // pred_check
      _
    $region83: #{tpu_custom_call.1} parent=1 // pred_check_branch
      %131 = sbr.rel (0) target = $region85
    $region84: #{tpu_custom_call.1} parent=1 // pred_region
      %132 = dma.done [#allocation15], 6144
    $region85: #{tpu_custom_call.1} parent=1 // pred_fallthru
      _
    // Predicated region
    $region86: #{tpu_custom_call.1} parent=1 // pred_check
      _
    $region87: #{tpu_custom_call.1} parent=1 // pred_check_branch
      %134 = sbr.rel (0) target = $region89
    $region88: #{tpu_custom_call.1} parent=1 // pred_region
      %135 = dma.done [#allocation15], 6144
    $region89: #{tpu_custom_call.1} parent=1 // pred_fallthru
      _
    // Predicated region
    $region90: #{tpu_custom_call.1} parent=1 // pred_check
      _
    $region91: #{tpu_custom_call.1} parent=1 // pred_check_branch
      %137 = sbr.rel (0) target = $region93
    $region92: #{tpu_custom_call.1} parent=1 // pred_region
      %138 = dma.done [#allocation18], 6144
    $region93: #{tpu_custom_call.1} parent=1 // pred_fallthru
      _
    %vm139 = vcmask 7168
    %140 = vst.msk [vmem:[#allocation2] sm:$0xff] %vm139, 0.0
    %141 = vst.msk [vmem:[#allocation2 + $0x8] sm:$0xff] %vm139, 0.0
    %142 = vst.msk [vmem:[#allocation2 + $0x10] sm:$0xff] %vm139, 0.0
    %143 = vst.msk [vmem:[#allocation2 + $0x18] sm:$0xff] %vm139, 0.0
    %144 = vst.msk [vmem:[#allocation2 + $0x20] sm:$0xff] %vm139, 0.0
    %145 = vst.msk [vmem:[#allocation2 + $0x28] sm:$0xff] %vm139, 0.0
    %146 = vst.msk [vmem:[#allocation2 + $0x30] sm:$0xff] %vm139, 0.0
    %147 = vst.msk [vmem:[#allocation2 + $0x38] sm:$0xff] %vm139, 0.0
    %148 = vst.msk [vmem:[#allocation2 + $0x40] sm:$0xff] %vm139, 0.0
    %149 = vst.msk [vmem:[#allocation2 + $0x48] sm:$0xff] %vm139, 0.0
    %150 = vst.msk [vmem:[#allocation2 + $0x50] sm:$0xff] %vm139, 0.0
    %151 = vst.msk [vmem:[#allocation2 + $0x58] sm:$0xff] %vm139, 0.0
    %152 = vst.msk [vmem:[#allocation2 + $0x60] sm:$0xff] %vm139, 0.0
    %153 = vst.msk [vmem:[#allocation2 + $0x68] sm:$0xff] %vm139, 0.0
    %154 = vst.msk [vmem:[#allocation2 + $0x70] sm:$0xff] %vm139, 0.0
    %155 = vst.msk [vmem:[#allocation2 + $0x78] sm:$0xff] %vm139, 0.0
    %vm156 = vcmask 1024
    %157 = vst.msk [vmem:[#allocation2 + $0x80] sm:$0x3] %vm156, 0.0
    %158 = vst.msk [vmem:[#allocation2 + $0x88] sm:$0xff] %vm139, 0.0
    %159 = vst.msk [vmem:[#allocation2 + $0x90] sm:$0xff] %vm139, 0.0
    %160 = vst.msk [vmem:[#allocation2 + $0x98] sm:$0xff] %vm139, 0.0
    %161 = vst.msk [vmem:[#allocation2 + $0xa0] sm:$0xff] %vm139, 0.0
    %162 = vst.msk [vmem:[#allocation2 + $0xa8] sm:$0xff] %vm139, 0.0
    %163 = vst.msk [vmem:[#allocation2 + $0xb0] sm:$0xff] %vm139, 0.0
    %164 = vst.msk [vmem:[#allocation2 + $0xb8] sm:$0xff] %vm139, 0.0
    %165 = vst.msk [vmem:[#allocation2 + $0xc0] sm:$0xff] %vm139, 0.0
    %166 = vst.msk [vmem:[#allocation2 + $0xc8] sm:$0xff] %vm139, 0.0
    %167 = vst.msk [vmem:[#allocation2 + $0xd0] sm:$0xff] %vm139, 0.0
    %168 = vst.msk [vmem:[#allocation2 + $0xd8] sm:$0xff] %vm139, 0.0
    %169 = vst.msk [vmem:[#allocation2 + $0xe0] sm:$0xff] %vm139, 0.0
    %170 = vst.msk [vmem:[#allocation2 + $0xe8] sm:$0xff] %vm139, 0.0
    %171 = vst.msk [vmem:[#allocation2 + $0xf0] sm:$0xff] %vm139, 0.0
    %172 = vst.msk [vmem:[#allocation2 + $0xf8] sm:$0xff] %vm139, 0.0
    %173 = vst.msk [vmem:[#allocation2 + $0x100] sm:$0xff] %vm139, 0.0
    %174 = vst.msk [vmem:[#allocation2 + $0x108] sm:$0x3] %vm156, 0.0
    %vm175 = vcmask 261120
    %176 = vst.msk [vmem:[#allocation3] sm:$0xff] %vm175, 0.0
    %177 = vst.msk [vmem:[#allocation3 + $0x8] sm:$0xff] %vm175, 0.0
    %178 = vst.msk [vmem:[#allocation3 + $0x10] sm:$0xff] %vm175, 0.0
    %179 = vst.msk [vmem:[#allocation3 + $0x18] sm:$0xff] %vm175, 0.0
    %180 = vst.msk [vmem:[#allocation3 + $0x20] sm:$0xff] %vm175, 0.0
    %181 = vst.msk [vmem:[#allocation3 + $0x28] sm:$0xff] %vm175, 0.0
    %182 = vst.msk [vmem:[#allocation3 + $0x30] sm:$0xff] %vm175, 0.0
    %183 = vst.msk [vmem:[#allocation3 + $0x38] sm:$0xff] %vm175, 0.0
    %vm184 = vcmask 254976
    %185 = vst.msk [vmem:[#allocation3 + $0x40] sm:$0x3] %vm184, 0.0
    %186 = vst.msk [vmem:[#allocation3 + $0x48] sm:$0xff] %vm175, 0.0
    %187 = vst.msk [vmem:[#allocation3 + $0x50] sm:$0xff] %vm175, 0.0
    %188 = vst.msk [vmem:[#allocation3 + $0x58] sm:$0xff] %vm175, 0.0
    %189 = vst.msk [vmem:[#allocation3 + $0x60] sm:$0xff] %vm175, 0.0
    %190 = vst.msk [vmem:[#allocation3 + $0x68] sm:$0xff] %vm175, 0.0
    %191 = vst.msk [vmem:[#allocation3 + $0x70] sm:$0xff] %vm175, 0.0
    %192 = vst.msk [vmem:[#allocation3 + $0x78] sm:$0xff] %vm175, 0.0
    %193 = vst.msk [vmem:[#allocation3 + $0x80] sm:$0xff] %vm175, 0.0
    %194 = vst.msk [vmem:[#allocation3 + $0x88] sm:$0x3] %vm184, 0.0
    %195 = vst.msk [vmem:[#allocation4] sm:$0xff] %vm175, 0.0
    %196 = vst.msk [vmem:[#allocation4 + $0x8] sm:$0xff] %vm175, 0.0
    %197 = vst.msk [vmem:[#allocation4 + $0x10] sm:$0xff] %vm175, 0.0
    %198 = vst.msk [vmem:[#allocation4 + $0x18] sm:$0xff] %vm175, 0.0
    %199 = vst.msk [vmem:[#allocation4 + $0x20] sm:$0x3] %vm184, 0.0
    %200 = vst.msk [vmem:[#allocation4 + $0x28] sm:$0xff] %vm175, 0.0
    %201 = vst.msk [vmem:[#allocation4 + $0x30] sm:$0xff] %vm175, 0.0
    %202 = vst.msk [vmem:[#allocation4 + $0x38] sm:$0xff] %vm175, 0.0
    %203 = vst.msk [vmem:[#allocation4 + $0x40] sm:$0xff] %vm175, 0.0
    %204 = vst.msk [vmem:[#allocation4 + $0x48] sm:$0x3] %vm184, 0.0
    %vm205 = vcmask 523264
    %206 = vst.msk [vmem:[#allocation5] sm:$0xff] %vm205, 0.0
    %207 = vst.msk [vmem:[#allocation5 + $0x8] sm:$0xff] %vm205, 0.0
    %vm208 = vcmask 517120
    %209 = vst.msk [vmem:[#allocation5 + $0x10] sm:$0x3] %vm208, 0.0
    %210 = vst.msk [vmem:[#allocation5 + $0x18] sm:$0xff] %vm205, 0.0
    %211 = vst.msk [vmem:[#allocation5 + $0x20] sm:$0xff] %vm205, 0.0
    %212 = vst.msk [vmem:[#allocation5 + $0x28] sm:$0x3] %vm208, 0.0
    %213 = vst.msk [vmem:[#allocation6] sm:$0xff] %vm205, 0.0
    %214 = vst.msk [vmem:[#allocation6 + $0x8] sm:$0x3] %vm208, 0.0
    %215 = vst.msk [vmem:[#allocation6 + $0x10] sm:$0xff] %vm205, 0.0
    %216 = vst.msk [vmem:[#allocation6 + $0x18] sm:$0x3] %vm208, 0.0
    %217 = vst [vmem:[#allocation7] sm:$0x3f] 0.0
    %218 = vst [vmem:[#allocation7 + $0x8] sm:$0x3f] 0.0
    %v219 = vld [vmem:[%s0] sm:$0xff]
    %v220 = vld [vmem:[%s0 + $0x8] sm:$0xff]
    %v221 = vld [vmem:[%s0 + $0x10] sm:$0xff]
    %v222 = vld [vmem:[%s0 + $0x18] sm:$0xff]
    %v223 = vld [vmem:[%s0 + $0x20] sm:$0xff]
    %v224 = vld [vmem:[%s0 + $0x28] sm:$0xff]
    %v225 = vld [vmem:[%s0 + $0x30] sm:$0xff]
    %v226 = vld [vmem:[%s0 + $0x38] sm:$0xff]
    %v227 = vld [vmem:[%s0 + $0x40] sm:$0xff]
    %v228 = vld [vmem:[%s0 + $0x48] sm:$0xff]
    %v229 = vld [vmem:[%s0 + $0x50] sm:$0xff]
    %v230 = vld [vmem:[%s0 + $0x58] sm:$0xff]
    %v231 = vld [vmem:[%s0 + $0x60] sm:$0xff]
    %v232 = vld [vmem:[%s0 + $0x68] sm:$0xff]
    %v233 = vld [vmem:[%s0 + $0x70] sm:$0xff]
    %v234 = vld [vmem:[%s0 + $0x78] sm:$0xff]
    %v235 = vld [vmem:[%s0 + $0x80] sm:$0xff]
    %v236 = vld [vmem:[%s0 + $0x88] sm:$0xff]
    %v237 = vld [vmem:[%s0 + $0x90] sm:$0xff]
    %v238 = vld [vmem:[%s0 + $0x98] sm:$0xff]
    %v239 = vld [vmem:[%s0 + $0xa0] sm:$0xff]
    %v240 = vld [vmem:[%s0 + $0xa8] sm:$0xff]
    %v241 = vld [vmem:[%s0 + $0xb0] sm:$0xff]
    %v242 = vld [vmem:[%s0 + $0xb8] sm:$0xff]
    %v243 = vld [vmem:[%s0 + $0xc0] sm:$0xff]
    %v244 = vld [vmem:[%s0 + $0xc8] sm:$0xff]
    %v245 = vld [vmem:[%s0 + $0xd0] sm:$0xff]
    %v246 = vld [vmem:[%s0 + $0xd8] sm:$0xff]
    %v247 = vld [vmem:[%s0 + $0xe0] sm:$0xff]
    %v248 = vld [vmem:[%s0 + $0xe8] sm:$0xff]
    %v249 = vld [vmem:[%s0 + $0xf0] sm:$0xff]
    %v250 = vld [vmem:[%s0 + $0xf8] sm:$0xff]
    %251 = vst.msk [vmem:[#allocation2 + $0x1] sm:$0xff] %vm139, %v219
    %252 = vst.msk [vmem:[#allocation2 + $0x9] sm:$0xff] %vm139, %v220
    %253 = vst.msk [vmem:[#allocation2 + $0x11] sm:$0xff] %vm139, %v221
    %254 = vst.msk [vmem:[#allocation2 + $0x19] sm:$0xff] %vm139, %v222
    %255 = vst.msk [vmem:[#allocation2 + $0x21] sm:$0xff] %vm139, %v223
    %256 = vst.msk [vmem:[#allocation2 + $0x29] sm:$0xff] %vm139, %v224
    %257 = vst.msk [vmem:[#allocation2 + $0x31] sm:$0xff] %vm139, %v225
    %258 = vst.msk [vmem:[#allocation2 + $0x39] sm:$0xff] %vm139, %v226
    %259 = vst.msk [vmem:[#allocation2 + $0x41] sm:$0xff] %vm139, %v227
    %260 = vst.msk [vmem:[#allocation2 + $0x49] sm:$0xff] %vm139, %v228
    %261 = vst.msk [vmem:[#allocation2 + $0x51] sm:$0xff] %vm139, %v229
    %262 = vst.msk [vmem:[#allocation2 + $0x59] sm:$0xff] %vm139, %v230
    %263 = vst.msk [vmem:[#allocation2 + $0x61] sm:$0xff] %vm139, %v231
    %264 = vst.msk [vmem:[#allocation2 + $0x69] sm:$0xff] %vm139, %v232
    %265 = vst.msk [vmem:[#allocation2 + $0x71] sm:$0xff] %vm139, %v233
    %266 = vst.msk [vmem:[#allocation2 + $0x79] sm:$0xff] %vm139, %v234
    %267 = vst.msk [vmem:[#allocation2 + $0x89] sm:$0xff] %vm139, %v235
    %268 = vst.msk [vmem:[#allocation2 + $0x91] sm:$0xff] %vm139, %v236
    %269 = vst.msk [vmem:[#allocation2 + $0x99] sm:$0xff] %vm139, %v237
    %270 = vst.msk [vmem:[#allocation2 + $0xa1] sm:$0xff] %vm139, %v238
    %271 = vst.msk [vmem:[#allocation2 + $0xa9] sm:$0xff] %vm139, %v239
    %272 = vst.msk [vmem:[#allocation2 + $0xb1] sm:$0xff] %vm139, %v240
    %273 = vst.msk [vmem:[#allocation2 + $0xb9] sm:$0xff] %vm139, %v241
    %274 = vst.msk [vmem:[#allocation2 + $0xc1] sm:$0xff] %vm139, %v242
    %275 = vst.msk [vmem:[#allocation2 + $0xc9] sm:$0xff] %vm139, %v243
    %276 = vst.msk [vmem:[#allocation2 + $0xd1] sm:$0xff] %vm139, %v244
    %277 = vst.msk [vmem:[#allocation2 + $0xd9] sm:$0xff] %vm139, %v245
    %278 = vst.msk [vmem:[#allocation2 + $0xe1] sm:$0xff] %vm139, %v246
    %279 = vst.msk [vmem:[#allocation2 + $0xe9] sm:$0xff] %vm139, %v247
    %280 = vst.msk [vmem:[#allocation2 + $0xf1] sm:$0xff] %vm139, %v248
    %281 = vst.msk [vmem:[#allocation2 + $0xf9] sm:$0xff] %vm139, %v249
    %282 = vst.msk [vmem:[#allocation2 + $0x101] sm:$0xff] %vm139, %v250
    %v283 = vld [vmem:[%s1] sm:$0x1]
    %v284 = vld [vmem:[%s1 + $0x1] sm:$0x1]
    %v285 = vld [vmem:[%s1 + $0x2] sm:$0x1]
    %v286 = vld [vmem:[%s7] sm:$0x1]
    %v287 = vld [vmem:[#allocation2] ss:$2 sm:$0xff]
    %s288 = scalar_lea.vmem [#allocation2], 16
    %v289 = vld [vmem:[%s288] ss:$2 sm:$0xff]
    %s290 = scalar_lea.vmem [#allocation2], 32
    %v291 = vld [vmem:[%s290] ss:$2 sm:$0xff]
    %s292 = scalar_lea.vmem [#allocation2], 48
    %v293 = vld [vmem:[%s292] ss:$2 sm:$0xff]
    %s294 = scalar_lea.vmem [#allocation2], 64
    %v295 = vld [vmem:[%s294] ss:$2 sm:$0xff]
    %s296 = scalar_lea.vmem [#allocation2], 80
    %v297 = vld [vmem:[%s296] ss:$2 sm:$0xff]
    %s298 = scalar_lea.vmem [#allocation2], 96
    %v299 = vld [vmem:[%s298] ss:$2 sm:$0xff]
    %s300 = scalar_lea.vmem [#allocation2], 112
    %v301 = vld [vmem:[%s300] ss:$2 sm:$0xff]
    %s302 = scalar_lea.vmem [#allocation2], 136
    %v303 = vld [vmem:[%s302] ss:$2 sm:$0xff]
    %s304 = scalar_lea.vmem [#allocation2], 152
    %v305 = vld [vmem:[%s304] ss:$2 sm:$0xff]
    %s306 = scalar_lea.vmem [#allocation2], 168
    %v307 = vld [vmem:[%s306] ss:$2 sm:$0xff]
    %s308 = scalar_lea.vmem [#allocation2], 184
    %v309 = vld [vmem:[%s308] ss:$2 sm:$0xff]
    %s310 = scalar_lea.vmem [#allocation2], 200
    %v311 = vld [vmem:[%s310] ss:$2 sm:$0xff]
    %s312 = scalar_lea.vmem [#allocation2], 216
    %v313 = vld [vmem:[%s312] ss:$2 sm:$0xff]
    %s314 = scalar_lea.vmem [#allocation2], 232
    %v315 = vld [vmem:[%s314] ss:$2 sm:$0xff]
    %s316 = scalar_lea.vmem [#allocation2], 248
    %v317 = vld [vmem:[%s316] ss:$2 sm:$0xff]
    %s318 = scalar_lea.vmem [#allocation2], 1
    %v319 = vld [vmem:[%s318] ss:$2 sm:$0xff]
    %s320 = scalar_lea.vmem [#allocation2], 17
    %v321 = vld [vmem:[%s320] ss:$2 sm:$0xff]
    %s322 = scalar_lea.vmem [#allocation2], 33
    %v323 = vld [vmem:[%s322] ss:$2 sm:$0xff]
    %s324 = scalar_lea.vmem [#allocation2], 49
    %v325 = vld [vmem:[%s324] ss:$2 sm:$0xff]
    %s326 = scalar_lea.vmem [#allocation2], 65
    %v327 = vld [vmem:[%s326] ss:$2 sm:$0xff]
    %s328 = scalar_lea.vmem [#allocation2], 81
    %v329 = vld [vmem:[%s328] ss:$2 sm:$0xff]
    %s330 = scalar_lea.vmem [#allocation2], 97
    %v331 = vld [vmem:[%s330] ss:$2 sm:$0xff]
    %s332 = scalar_lea.vmem [#allocation2], 113
    %v333 = vld [vmem:[%s332] ss:$2 sm:$0xff]
    %s334 = scalar_lea.vmem [#allocation2], 137
    %v335 = vld [vmem:[%s334] ss:$2 sm:$0xff]
    %s336 = scalar_lea.vmem [#allocation2], 153
    %v337 = vld [vmem:[%s336] ss:$2 sm:$0xff]
    %s338 = scalar_lea.vmem [#allocation2], 169
    %v339 = vld [vmem:[%s338] ss:$2 sm:$0xff]
    %s340 = scalar_lea.vmem [#allocation2], 185
    %v341 = vld [vmem:[%s340] ss:$2 sm:$0xff]
    %s342 = scalar_lea.vmem [#allocation2], 201
    %v343 = vld [vmem:[%s342] ss:$2 sm:$0xff]
    %s344 = scalar_lea.vmem [#allocation2], 217
    %v345 = vld [vmem:[%s344] ss:$2 sm:$0xff]
    %s346 = scalar_lea.vmem [#allocation2], 233
    %v347 = vld [vmem:[%s346] ss:$2 sm:$0xff]
    %s348 = scalar_lea.vmem [#allocation2], 249
    %v349 = vld [vmem:[%s348] ss:$2 sm:$0xff]
    %s350 = scalar_lea.vmem [#allocation2], 2
    %v351 = vld [vmem:[%s350] ss:$2 sm:$0xff]
    %s352 = scalar_lea.vmem [#allocation2], 18
    %v353 = vld [vmem:[%s352] ss:$2 sm:$0xff]
    %s354 = scalar_lea.vmem [#allocation2], 34
    %v355 = vld [vmem:[%s354] ss:$2 sm:$0xff]
    %s356 = scalar_lea.vmem [#allocation2], 50
    %v357 = vld [vmem:[%s356] ss:$2 sm:$0xff]
    %s358 = scalar_lea.vmem [#allocation2], 66
    %v359 = vld [vmem:[%s358] ss:$2 sm:$0xff]
    %s360 = scalar_lea.vmem [#allocation2], 82
    %v361 = vld [vmem:[%s360] ss:$2 sm:$0xff]
    %s362 = scalar_lea.vmem [#allocation2], 98
    %v363 = vld [vmem:[%s362] ss:$2 sm:$0xff]
    %s364 = scalar_lea.vmem [#allocation2], 114
    %v365 = vld [vmem:[%s364] ss:$2 sm:$0xff]
    %s366 = scalar_lea.vmem [#allocation2], 138
    %v367 = vld [vmem:[%s366] ss:$2 sm:$0xff]
    %s368 = scalar_lea.vmem [#allocation2], 154
    %v369 = vld [vmem:[%s368] ss:$2 sm:$0xff]
    %s370 = scalar_lea.vmem [#allocation2], 170
    %v371 = vld [vmem:[%s370] ss:$2 sm:$0xff]
    %s372 = scalar_lea.vmem [#allocation2], 186
    %v373 = vld [vmem:[%s372] ss:$2 sm:$0xff]
    %s374 = scalar_lea.vmem [#allocation2], 202
    %v375 = vld [vmem:[%s374] ss:$2 sm:$0xff]
    %s376 = scalar_lea.vmem [#allocation2], 218
    %v377 = vld [vmem:[%s376] ss:$2 sm:$0xff]
    %s378 = scalar_lea.vmem [#allocation2], 234
    %v379 = vld [vmem:[%s378] ss:$2 sm:$0xff]
    %s380 = scalar_lea.vmem [#allocation2], 250
    %v381 = vld [vmem:[%s380] ss:$2 sm:$0xff]
    %383 = vset.pattern.permute.xlu0 0
    %384 = vperm.xlu0 %383, %v287
    %v385 = vpop.permute.xlu0 %384
    %388 = vset.pattern.permute.xlu0 0
    %389 = vperm.xlu0 %388, %v289
    %v390 = vpop.permute.xlu0 %389
    %393 = vset.pattern.permute.xlu0 0
    %394 = vperm.xlu0 %393, %v291
    %v395 = vpop.permute.xlu0 %394
    %398 = vset.pattern.permute.xlu0 0
    %399 = vperm.xlu0 %398, %v293
    %v400 = vpop.permute.xlu0 %399
    %403 = vset.pattern.permute.xlu0 0
    %404 = vperm.xlu0 %403, %v295
    %v405 = vpop.permute.xlu0 %404
    %408 = vset.pattern.permute.xlu0 0
    %409 = vperm.xlu0 %408, %v297
    %v410 = vpop.permute.xlu0 %409
    %413 = vset.pattern.permute.xlu0 0
    %414 = vperm.xlu0 %413, %v299
    %v415 = vpop.permute.xlu0 %414
    %418 = vset.pattern.permute.xlu0 0
    %419 = vperm.xlu0 %418, %v301
    %v420 = vpop.permute.xlu0 %419
    %423 = vset.pattern.permute.xlu0 0
    %424 = vperm.xlu0 %423, %v303
    %v425 = vpop.permute.xlu0 %424
    %428 = vset.pattern.permute.xlu0 0
    %429 = vperm.xlu0 %428, %v305
    %v430 = vpop.permute.xlu0 %429
    %433 = vset.pattern.permute.xlu0 0
    %434 = vperm.xlu0 %433, %v307
    %v435 = vpop.permute.xlu0 %434
    %438 = vset.pattern.permute.xlu0 0
    %439 = vperm.xlu0 %438, %v309
    %v440 = vpop.permute.xlu0 %439
    %443 = vset.pattern.permute.xlu0 0
    %444 = vperm.xlu0 %443, %v311
    %v445 = vpop.permute.xlu0 %444
    %448 = vset.pattern.permute.xlu0 0
    %449 = vperm.xlu0 %448, %v313
    %v450 = vpop.permute.xlu0 %449
    %453 = vset.pattern.permute.xlu0 0
    %454 = vperm.xlu0 %453, %v315
    %v455 = vpop.permute.xlu0 %454
    %458 = vset.pattern.permute.xlu0 0
    %459 = vperm.xlu0 %458, %v317
    %v460 = vpop.permute.xlu0 %459
    %v463 = vlaneseq
    %v464 = vshrl.u32 %v463, 7
    %v465 = vsub.s32 0, %v464
    %v466 = vrot.slane %v283, %v465
    %v468 = vmul.f32 %v385, %v466
    %v469 = vmul.f32 %v390, %v466
    %v470 = vmul.f32 %v395, %v466
    %v471 = vmul.f32 %v400, %v466
    %v472 = vmul.f32 %v405, %v466
    %v473 = vmul.f32 %v410, %v466
    %v474 = vmul.f32 %v415, %v466
    %v475 = vmul.f32 %v420, %v466
    %v476 = vmul.f32 %v425, %v466
    %v477 = vmul.f32 %v430, %v466
    %v478 = vmul.f32 %v435, %v466
    %v479 = vmul.f32 %v440, %v466
    %v480 = vmul.f32 %v445, %v466
    %v481 = vmul.f32 %v450, %v466
    %v482 = vmul.f32 %v455, %v466
    %v483 = vmul.f32 %v460, %v466
    %485 = vset.pattern.permute.xlu0 0
    %486 = vperm.xlu0 %485, %v319
    %v487 = vpop.permute.xlu0 %486
    %490 = vset.pattern.permute.xlu0 0
    %491 = vperm.xlu0 %490, %v321
    %v492 = vpop.permute.xlu0 %491
    %495 = vset.pattern.permute.xlu0 0
    %496 = vperm.xlu0 %495, %v323
    %v497 = vpop.permute.xlu0 %496
    %500 = vset.pattern.permute.xlu0 0
    %501 = vperm.xlu0 %500, %v325
    %v502 = vpop.permute.xlu0 %501
    %505 = vset.pattern.permute.xlu0 0
    %506 = vperm.xlu0 %505, %v327
    %v507 = vpop.permute.xlu0 %506
    %510 = vset.pattern.permute.xlu0 0
    %511 = vperm.xlu0 %510, %v329
    %v512 = vpop.permute.xlu0 %511
    %515 = vset.pattern.permute.xlu0 0
    %516 = vperm.xlu0 %515, %v331
    %v517 = vpop.permute.xlu0 %516
    %520 = vset.pattern.permute.xlu0 0
    %521 = vperm.xlu0 %520, %v333
    %v522 = vpop.permute.xlu0 %521
    %525 = vset.pattern.permute.xlu0 0
    %526 = vperm.xlu0 %525, %v335
    %v527 = vpop.permute.xlu0 %526
    %530 = vset.pattern.permute.xlu0 0
    %531 = vperm.xlu0 %530, %v337
    %v532 = vpop.permute.xlu0 %531
    %535 = vset.pattern.permute.xlu0 0
    %536 = vperm.xlu0 %535, %v339
    %v537 = vpop.permute.xlu0 %536
    %540 = vset.pattern.permute.xlu0 0
    %541 = vperm.xlu0 %540, %v341
    %v542 = vpop.permute.xlu0 %541
    %545 = vset.pattern.permute.xlu0 0
    %546 = vperm.xlu0 %545, %v343
    %v547 = vpop.permute.xlu0 %546
    %550 = vset.pattern.permute.xlu0 0
    %551 = vperm.xlu0 %550, %v345
    %v552 = vpop.permute.xlu0 %551
    %555 = vset.pattern.permute.xlu0 0
    %556 = vperm.xlu0 %555, %v347
    %v557 = vpop.permute.xlu0 %556
    %560 = vset.pattern.permute.xlu0 0
    %561 = vperm.xlu0 %560, %v349
    %v562 = vpop.permute.xlu0 %561
    %v565 = vlaneseq
    %v566 = vshrl.u32 %v565, 7
    %v567 = vsub.s32 0, %v566
    %v568 = vrot.slane %v284, %v567
    %v570 = vmul.f32 %v487, %v568
    %v571 = vmul.f32 %v492, %v568
    %v572 = vmul.f32 %v497, %v568
    %v573 = vmul.f32 %v502, %v568
    %v574 = vmul.f32 %v507, %v568
    %v575 = vmul.f32 %v512, %v568
    %v576 = vmul.f32 %v517, %v568
    %v577 = vmul.f32 %v522, %v568
    %v578 = vmul.f32 %v527, %v568
    %v579 = vmul.f32 %v532, %v568
    %v580 = vmul.f32 %v537, %v568
    %v581 = vmul.f32 %v542, %v568
    %v582 = vmul.f32 %v547, %v568
    %v583 = vmul.f32 %v552, %v568
    %v584 = vmul.f32 %v557, %v568
    %v585 = vmul.f32 %v562, %v568
    %v586 = vadd.f32 %v468, %v570
    %v587 = vadd.f32 %v469, %v571
    %v588 = vadd.f32 %v470, %v572
    %v589 = vadd.f32 %v471, %v573
    %v590 = vadd.f32 %v472, %v574
    %v591 = vadd.f32 %v473, %v575
    %v592 = vadd.f32 %v474, %v576
    %v593 = vadd.f32 %v475, %v577
    %v594 = vadd.f32 %v476, %v578
    %v595 = vadd.f32 %v477, %v579
    %v596 = vadd.f32 %v478, %v580
    %v597 = vadd.f32 %v479, %v581
    %v598 = vadd.f32 %v480, %v582
    %v599 = vadd.f32 %v481, %v583
    %v600 = vadd.f32 %v482, %v584
    %v601 = vadd.f32 %v483, %v585
    %603 = vset.pattern.permute.xlu0 0
    %604 = vperm.xlu0 %603, %v351
    %v605 = vpop.permute.xlu0 %604
    %608 = vset.pattern.permute.xlu0 0
    %609 = vperm.xlu0 %608, %v353
    %v610 = vpop.permute.xlu0 %609
    %613 = vset.pattern.permute.xlu0 0
    %614 = vperm.xlu0 %613, %v355
    %v615 = vpop.permute.xlu0 %614
    %618 = vset.pattern.permute.xlu0 0
    %619 = vperm.xlu0 %618, %v357
    %v620 = vpop.permute.xlu0 %619
    %623 = vset.pattern.permute.xlu0 0
    %624 = vperm.xlu0 %623, %v359
    %v625 = vpop.permute.xlu0 %624
    %628 = vset.pattern.permute.xlu0 0
    %629 = vperm.xlu0 %628, %v361
    %v630 = vpop.permute.xlu0 %629
    %633 = vset.pattern.permute.xlu0 0
    %634 = vperm.xlu0 %633, %v363
    %v635 = vpop.permute.xlu0 %634
    %638 = vset.pattern.permute.xlu0 0
    %639 = vperm.xlu0 %638, %v365
    %v640 = vpop.permute.xlu0 %639
    %643 = vset.pattern.permute.xlu0 0
    %644 = vperm.xlu0 %643, %v367
    %v645 = vpop.permute.xlu0 %644
    %648 = vset.pattern.permute.xlu0 0
    %649 = vperm.xlu0 %648, %v369
    %v650 = vpop.permute.xlu0 %649
    %653 = vset.pattern.permute.xlu0 0
    %654 = vperm.xlu0 %653, %v371
    %v655 = vpop.permute.xlu0 %654
    %658 = vset.pattern.permute.xlu0 0
    %659 = vperm.xlu0 %658, %v373
    %v660 = vpop.permute.xlu0 %659
    %663 = vset.pattern.permute.xlu0 0
    %664 = vperm.xlu0 %663, %v375
    %v665 = vpop.permute.xlu0 %664
    %668 = vset.pattern.permute.xlu0 0
    %669 = vperm.xlu0 %668, %v377
    %v670 = vpop.permute.xlu0 %669
    %673 = vset.pattern.permute.xlu0 0
    %674 = vperm.xlu0 %673, %v379
    %v675 = vpop.permute.xlu0 %674
    %678 = vset.pattern.permute.xlu0 0
    %679 = vperm.xlu0 %678, %v381
    %v680 = vpop.permute.xlu0 %679
    %v683 = vlaneseq
    %v684 = vshrl.u32 %v683, 7
    %v685 = vsub.s32 0, %v684
    %v686 = vrot.slane %v285, %v685
    %v688 = vmul.f32 %v605, %v686
    %v689 = vmul.f32 %v610, %v686
    %v690 = vmul.f32 %v615, %v686
    %v691 = vmul.f32 %v620, %v686
    %v692 = vmul.f32 %v625, %v686
    %v693 = vmul.f32 %v630, %v686
    %v694 = vmul.f32 %v635, %v686
    %v695 = vmul.f32 %v640, %v686
    %v696 = vmul.f32 %v645, %v686
    %v697 = vmul.f32 %v650, %v686
    %v698 = vmul.f32 %v655, %v686
    %v699 = vmul.f32 %v660, %v686
    %v700 = vmul.f32 %v665, %v686
    %v701 = vmul.f32 %v670, %v686
    %v702 = vmul.f32 %v675, %v686
    %v703 = vmul.f32 %v680, %v686
    %v704 = vadd.f32 %v586, %v688
    %v705 = vadd.f32 %v587, %v689
    %v706 = vadd.f32 %v588, %v690
    %v707 = vadd.f32 %v589, %v691
    %v708 = vadd.f32 %v590, %v692
    %v709 = vadd.f32 %v591, %v693
    %v710 = vadd.f32 %v592, %v694
    %v711 = vadd.f32 %v593, %v695
    %v712 = vadd.f32 %v594, %v696
    %v713 = vadd.f32 %v595, %v697
    %v714 = vadd.f32 %v596, %v698
    %v715 = vadd.f32 %v597, %v699
    %v716 = vadd.f32 %v598, %v700
    %v717 = vadd.f32 %v599, %v701
    %v718 = vadd.f32 %v600, %v702
    %v719 = vadd.f32 %v601, %v703
    %v721 = vlaneseq
    %v722 = vshrl.u32 %v721, 7
    %v723 = vsub.s32 0, %v722
    %v724 = vrot.slane %v286, %v723
    %v726 = vadd.f32 %v704, %v724
    %v727 = vadd.f32 %v705, %v724
    %v728 = vadd.f32 %v706, %v724
    %v729 = vadd.f32 %v707, %v724
    %v730 = vadd.f32 %v708, %v724
    %v731 = vadd.f32 %v709, %v724
    %v732 = vadd.f32 %v710, %v724
    %v733 = vadd.f32 %v711, %v724
    %v734 = vadd.f32 %v712, %v724
    %v735 = vadd.f32 %v713, %v724
    %v736 = vadd.f32 %v714, %v724
    %v737 = vadd.f32 %v715, %v724
    %v738 = vadd.f32 %v716, %v724
    %v739 = vadd.f32 %v717, %v724
    %v740 = vadd.f32 %v718, %v724
    %v741 = vadd.f32 %v719, %v724
    %v742 = vmax.f32 %v726, 0.0
    %v743 = vmax.f32 %v727, 0.0
    %v744 = vmax.f32 %v728, 0.0
    %v745 = vmax.f32 %v729, 0.0
    %v746 = vmax.f32 %v730, 0.0
    %v747 = vmax.f32 %v731, 0.0
    %v748 = vmax.f32 %v732, 0.0
    %v749 = vmax.f32 %v733, 0.0
    %v750 = vmax.f32 %v734, 0.0
    %v751 = vmax.f32 %v735, 0.0
    %v752 = vmax.f32 %v736, 0.0
    %v753 = vmax.f32 %v737, 0.0
    %v754 = vmax.f32 %v738, 0.0
    %v755 = vmax.f32 %v739, 0.0
    %v756 = vmax.f32 %v740, 0.0
    %v757 = vmax.f32 %v741, 0.0
    %758 = vst.msk [vmem:[#allocation3 + $0x1] sm:$0xff] %vm175, %v742
    %759 = vst.msk [vmem:[#allocation3 + $0x9] sm:$0xff] %vm175, %v743
    %760 = vst.msk [vmem:[#allocation3 + $0x11] sm:$0xff] %vm175, %v744
    %761 = vst.msk [vmem:[#allocation3 + $0x19] sm:$0xff] %vm175, %v745
    %762 = vst.msk [vmem:[#allocation3 + $0x21] sm:$0xff] %vm175, %v746
    %763 = vst.msk [vmem:[#allocation3 + $0x29] sm:$0xff] %vm175, %v747
    %764 = vst.msk [vmem:[#allocation3 + $0x31] sm:$0xff] %vm175, %v748
    %765 = vst.msk [vmem:[#allocation3 + $0x39] sm:$0xff] %vm175, %v749
    %766 = vst.msk [vmem:[#allocation3 + $0x49] sm:$0xff] %vm175, %v750
    %767 = vst.msk [vmem:[#allocation3 + $0x51] sm:$0xff] %vm175, %v751
    %768 = vst.msk [vmem:[#allocation3 + $0x59] sm:$0xff] %vm175, %v752
    %769 = vst.msk [vmem:[#allocation3 + $0x61] sm:$0xff] %vm175, %v753
    %770 = vst.msk [vmem:[#allocation3 + $0x69] sm:$0xff] %vm175, %v754
    %771 = vst.msk [vmem:[#allocation3 + $0x71] sm:$0xff] %vm175, %v755
    %772 = vst.msk [vmem:[#allocation3 + $0x79] sm:$0xff] %vm175, %v756
    %773 = vst.msk [vmem:[#allocation3 + $0x81] sm:$0xff] %vm175, %v757
    %v774 = vld [vmem:[#allocation8] sm:$0xff]
    %v775 = vld [vmem:[#allocation8 + $0x8] sm:$0xff]
    %v776 = vld [vmem:[#allocation8 + $0x10] sm:$0xff]
    %v777 = vld [vmem:[#allocation8 + $0x18] sm:$0xff]
    %v778 = vld [vmem:[#allocation8 + $0x20] sm:$0xff]
    %v779 = vld [vmem:[#allocation8 + $0x28] sm:$0xff]
    %v780 = vld [vmem:[#allocation8 + $0x30] sm:$0xff]
    %v781 = vld [vmem:[#allocation8 + $0x38] sm:$0xff]
    %v782 = vld [vmem:[#allocation8 + $0x40] sm:$0xff]
    %v783 = vld [vmem:[#allocation8 + $0x48] sm:$0xff]
    %v784 = vld [vmem:[#allocation8 + $0x50] sm:$0xff]
    %v785 = vld [vmem:[#allocation8 + $0x58] sm:$0xff]
    %v786 = vld [vmem:[%s8] sm:$0x1]
    %v787 = vld [vmem:[#allocation3] ss:$2 sm:$0xff]
    %s788 = scalar_lea.vmem [#allocation3], 16
    %v789 = vld [vmem:[%s788] ss:$2 sm:$0xff]
    %s790 = scalar_lea.vmem [#allocation3], 32
    %v791 = vld [vmem:[%s790] ss:$2 sm:$0xff]
    %s792 = scalar_lea.vmem [#allocation3], 48
    %v793 = vld [vmem:[%s792] ss:$2 sm:$0xff]
    %s794 = scalar_lea.vmem [#allocation3], 72
    %v795 = vld [vmem:[%s794] ss:$2 sm:$0xff]
    %s796 = scalar_lea.vmem [#allocation3], 88
    %v797 = vld [vmem:[%s796] ss:$2 sm:$0xff]
    %s798 = scalar_lea.vmem [#allocation3], 104
    %v799 = vld [vmem:[%s798] ss:$2 sm:$0xff]
    %s800 = scalar_lea.vmem [#allocation3], 120
    %v801 = vld [vmem:[%s800] ss:$2 sm:$0xff]
    %s802 = scalar_lea.vmem [#allocation3], 1
    %v803 = vld [vmem:[%s802] ss:$2 sm:$0xff]
    %s804 = scalar_lea.vmem [#allocation3], 17
    %v805 = vld [vmem:[%s804] ss:$2 sm:$0xff]
    %s806 = scalar_lea.vmem [#allocation3], 33
    %v807 = vld [vmem:[%s806] ss:$2 sm:$0xff]
    %s808 = scalar_lea.vmem [#allocation3], 49
    %v809 = vld [vmem:[%s808] ss:$2 sm:$0xff]
    %s810 = scalar_lea.vmem [#allocation3], 73
    %v811 = vld [vmem:[%s810] ss:$2 sm:$0xff]
    %s812 = scalar_lea.vmem [#allocation3], 89
    %v813 = vld [vmem:[%s812] ss:$2 sm:$0xff]
    %s814 = scalar_lea.vmem [#allocation3], 105
    %v815 = vld [vmem:[%s814] ss:$2 sm:$0xff]
    %s816 = scalar_lea.vmem [#allocation3], 121
    %v817 = vld [vmem:[%s816] ss:$2 sm:$0xff]
    %s818 = scalar_lea.vmem [#allocation3], 2
    %v819 = vld [vmem:[%s818] ss:$2 sm:$0xff]
    %s820 = scalar_lea.vmem [#allocation3], 18
    %v821 = vld [vmem:[%s820] ss:$2 sm:$0xff]
    %s822 = scalar_lea.vmem [#allocation3], 34
    %v823 = vld [vmem:[%s822] ss:$2 sm:$0xff]
    %s824 = scalar_lea.vmem [#allocation3], 50
    %v825 = vld [vmem:[%s824] ss:$2 sm:$0xff]
    %s826 = scalar_lea.vmem [#allocation3], 74
    %v827 = vld [vmem:[%s826] ss:$2 sm:$0xff]
    %s828 = scalar_lea.vmem [#allocation3], 90
    %v829 = vld [vmem:[%s828] ss:$2 sm:$0xff]
    %s830 = scalar_lea.vmem [#allocation3], 106
    %v831 = vld [vmem:[%s830] ss:$2 sm:$0xff]
    %s832 = scalar_lea.vmem [#allocation3], 122
    %v833 = vld [vmem:[%s832] ss:$2 sm:$0xff]
    %v835 = vsel %vm175, %v803, 0
    %v838 = vsel %vm175, %v805, 0
    %v841 = vsel %vm175, %v807, 0
    %v844 = vsel %vm175, %v809, 0
    %v847 = vsel %vm175, %v811, 0
    %v850 = vsel %vm175, %v813, 0
    %v853 = vsel %vm175, %v815, 0
    %v856 = vsel %vm175, %v817, 0
    %858 = vmatprep.subr.mxu0 0.0
    %859 = vmatpush1.msra.mxu0 %v778
    %860 = vmatprep.subr.mxu0 0.0
    %861 = vmatpush1.msra.mxu0 %v779
    %862 = vmatprep.subr.mxu0 0.0
    %863 = vmatpush1.msra.mxu0 %v780
    %864 = vmatprep.subr.mxu0 0.0
    %865 = vmatpush1.msra.mxu0 %v781
    %866 = vmatprep.subr.mxu0 0.0
    %867 = vmatpush1.msra.mxu0 0.0
    %868 = vmatprep.subr.mxu0 0.0
    %869 = vmatpush1.msra.mxu0 0.0
    %870 = vmatprep.subr.mxu0 0.0
    %871 = vmatpush1.msra.mxu0 0.0
    %872 = vmatprep.subr.mxu0 0.0
    %873 = vmatpush1.msra.mxu0 0.0
    %874 = vmatprep.subr.mxu0 0.0
    %875 = vmatpush1.msra.mxu0 0.0
    %876 = vmatprep.subr.mxu0 0.0
    %877 = vmatpush1.msra.mxu0 0.0
    %878 = vmatprep.subr.mxu0 0.0
    %879 = vmatpush1.msra.mxu0 0.0
    %880 = vmatprep.subr.mxu0 0.0
    %881 = vmatpush1.msra.mxu0 0.0
    %882 = vmatprep.subr.mxu0 0.0
    %883 = vmatpush1.msra.mxu0 0.0
    %884 = vmatprep.subr.mxu0 0.0
    %885 = vmatpush1.msra.mxu0 0.0
    %886 = vmatprep.subr.mxu0 0.0
    %887 = vmatpush1.msra.mxu0 0.0
    %888 = vmatprep.subr.mxu0 0.0
    %889 = vmatpush1.msra.mxu0 0.0
    %890 = vmatprep.subr.mxu0 0.0
    %891 = vmatpush1.msra.mxu0 0.0
    %892 = vmatprep.subr.mxu0 0.0
    %893 = vmatpush1.msra.mxu0 0.0
    %894 = vmatprep.subr.mxu0 0.0
    %895 = vmatpush1.msra.mxu0 0.0
    %896 = vmatprep.subr.mxu0 0.0
    %897 = vmatpush1.msra.mxu0 0.0
    %898 = vmatprep.subr.mxu0 0.0
    %899 = vmatpush1.msra.mxu0 0.0
    %900 = vmatprep.subr.mxu0 0.0
    %901 = vmatpush1.msra.mxu0 0.0
    %902 = vmatprep.subr.mxu0 0.0
    %903 = vmatpush1.msra.mxu0 0.0
    %904 = vmatprep.subr.mxu0 0.0
    %905 = vmatpush1.msra.mxu0 0.0
    %906 = vmatprep.subr.mxu0 0.0
    %907 = vmatpush1.msra.mxu0 0.0
    %908 = vmatprep.subr.mxu0 0.0
    %909 = vmatpush1.msra.mxu0 0.0
    %910 = vmatprep.subr.mxu0 0.0
    %911 = vmatpush1.msra.mxu0 0.0
    %912 = vmatprep.subr.mxu0 0.0
    %913 = vmatpush1.msra.mxu0 0.0
    %914 = vmatprep.subr.mxu0 0.0
    %915 = vmatpush1.msra.mxu0 0.0
    %916 = vmatprep.subr.mxu0 0.0
    %917 = vmatpush1.msra.mxu0 0.0
    %918 = vmatprep.subr.mxu0 0.0
    %919 = vmatpush1.msra.mxu0 0.0
    %920 = vmatprep.subr.mxu0 0.0
    %921 = vmatpush1.msra.mxu0 0.0
    %922 = vmatprep.mubr.f32.mxu0 0.0
    %923 = vmatmul.mubr.f32.gmra.mrb[0].mxu0 %v835
    %v924 = vpop.f32.mrb[0].mxu0
    %v925 = vadd.f32 0.0, %v924
    %v926 = vpop.f32.mrb[0].mxu0
    %927 = vmatprep.mubr.f32.mxu0 0.0
    %928 = vmatmul.mubr.f32.gmra.mrb[0].mxu0 %v838
    %v929 = vpop.f32.mrb[0].mxu0
    %v930 = vadd.f32 0.0, %v929
    %v931 = vpop.f32.mrb[0].mxu0
    %932 = vmatprep.mubr.f32.mxu0 0.0
    %933 = vmatmul.mubr.f32.gmra.mrb[0].mxu0 %v841
    %v934 = vpop.f32.mrb[0].mxu0
    %v935 = vadd.f32 0.0, %v934
    %v936 = vpop.f32.mrb[0].mxu0
    %937 = vmatprep.mubr.f32.mxu0 0.0
    %938 = vmatmul.mubr.f32.gmra.mrb[0].mxu0 %v844
    %v939 = vpop.f32.mrb[0].mxu0
    %v940 = vadd.f32 0.0, %v939
    %v941 = vpop.f32.mrb[0].mxu0
    %942 = vmatprep.mubr.f32.mxu0 0.0
    %943 = vmatmul.mubr.f32.gmra.mrb[0].mxu0 %v847
    %v944 = vpop.f32.mrb[0].mxu0
    %v945 = vadd.f32 0.0, %v944
    %v946 = vpop.f32.mrb[0].mxu0
    %947 = vmatprep.mubr.f32.mxu0 0.0
    %948 = vmatmul.mubr.f32.gmra.mrb[0].mxu0 %v850
    %v949 = vpop.f32.mrb[0].mxu0
    %v950 = vadd.f32 0.0, %v949
    %v951 = vpop.f32.mrb[0].mxu0
    %952 = vmatprep.mubr.f32.mxu0 0.0
    %953 = vmatmul.mubr.f32.gmra.mrb[0].mxu0 %v853
    %v954 = vpop.f32.mrb[0].mxu0
    %v955 = vadd.f32 0.0, %v954
    %v956 = vpop.f32.mrb[0].mxu0
    %957 = vmatprep.mubr.f32.mxu0 0.0
    %958 = vmatmul.mubr.f32.gmra.mrb[0].mxu0 %v856
    %v959 = vpop.f32.mrb[0].mxu0
    %v960 = vadd.f32 0.0, %v959
    %v961 = vpop.f32.mrb[0].mxu0
    %962 = vdwg.mxu0
    %v964 = vsel %vm175, %v787, 0
    %v967 = vsel %vm175, %v789, 0
    %v970 = vsel %vm175, %v791, 0
    %v973 = vsel %vm175, %v793, 0
    %v976 = vsel %vm175, %v795, 0
    %v979 = vsel %vm175, %v797, 0
    %v982 = vsel %vm175, %v799, 0
    %v985 = vsel %vm175, %v801, 0
    %987 = vmatprep.subr.mxu0 0.0
    %988 = vmatpush1.msra.mxu0 %v774
    %989 = vmatprep.subr.mxu0 0.0
    %990 = vmatpush1.msra.mxu0 %v775
    %991 = vmatprep.subr.mxu0 0.0
    %992 = vmatpush1.msra.mxu0 %v776
    %993 = vmatprep.subr.mxu0 0.0
    %994 = vmatpush1.msra.mxu0 %v777
    %995 = vmatprep.subr.mxu0 0.0
    %996 = vmatpush1.msra.mxu0 0.0
    %997 = vmatprep.subr.mxu0 0.0
    %998 = vmatpush1.msra.mxu0 0.0
    %999 = vmatprep.subr.mxu0 0.0
    %1000 = vmatpush1.msra.mxu0 0.0
    %1001 = vmatprep.subr.mxu0 0.0
    %1002 = vmatpush1.msra.mxu0 0.0
    %1003 = vmatprep.subr.mxu0 0.0
    %1004 = vmatpush1.msra.mxu0 0.0
    %1005 = vmatprep.subr.mxu0 0.0
    %1006 = vmatpush1.msra.mxu0 0.0
    %1007 = vmatprep.subr.mxu0 0.0
    %1008 = vmatpush1.msra.mxu0 0.0
    %1009 = vmatprep.subr.mxu0 0.0
    %1010 = vmatpush1.msra.mxu0 0.0
    %1011 = vmatprep.subr.mxu0 0.0
    %1012 = vmatpush1.msra.mxu0 0.0
    %1013 = vmatprep.subr.mxu0 0.0
    %1014 = vmatpush1.msra.mxu0 0.0
    %1015 = vmatprep.subr.mxu0 0.0
    %1016 = vmatpush1.msra.mxu0 0.0
    %1017 = vmatprep.subr.mxu0 0.0
    %1018 = vmatpush1.msra.mxu0 0.0
    %1019 = vmatprep.subr.mxu0 0.0
    %1020 = vmatpush1.msra.mxu0 0.0
    %1021 = vmatprep.subr.mxu0 0.0
    %1022 = vmatpush1.msra.mxu0 0.0
    %1023 = vmatprep.subr.mxu0 0.0
    %1024 = vmatpush1.msra.mxu0 0.0
    %1025 = vmatprep.subr.mxu0 0.0
    %1026 = vmatpush1.msra.mxu0 0.0
    %1027 = vmatprep.subr.mxu0 0.0
    %1028 = vmatpush1.msra.mxu0 0.0
    %1029 = vmatprep.subr.mxu0 0.0
    %1030 = vmatpush1.msra.mxu0 0.0
    %1031 = vmatprep.subr.mxu0 0.0
    %1032 = vmatpush1.msra.mxu0 0.0
    %1033 = vmatprep.subr.mxu0 0.0
    %1034 = vmatpush1.msra.mxu0 0.0
    %1035 = vmatprep.subr.mxu0 0.0
    %1036 = vmatpush1.msra.mxu0 0.0
    %1037 = vmatprep.subr.mxu0 0.0
    %1038 = vmatpush1.msra.mxu0 0.0
    %1039 = vmatprep.subr.mxu0 0.0
    %1040 = vmatpush1.msra.mxu0 0.0
    %1041 = vmatprep.subr.mxu0 0.0
    %1042 = vmatpush1.msra.mxu0 0.0
    %1043 = vmatprep.subr.mxu0 0.0
    %1044 = vmatpush1.msra.mxu0 0.0
    %1045 = vmatprep.subr.mxu0 0.0
    %1046 = vmatpush1.msra.mxu0 0.0
    %1047 = vmatprep.subr.mxu0 0.0
    %1048 = vmatpush1.msra.mxu0 0.0
    %1049 = vmatprep.subr.mxu0 0.0
    %1050 = vmatpush1.msra.mxu0 0.0
    %1051 = vmatprep.mubr.f32.mxu0 0.0
    %1052 = vmatmul.mubr.f32.gmra.mrb[0].mxu0 %v964
    %v1053 = vpop.f32.mrb[0].mxu0
    %v1054 = vadd.f32 %v925, %v1053
    %v1055 = vpop.f32.mrb[0].mxu0
    %1056 = vmatprep.mubr.f32.mxu0 0.0
    %1057 = vmatmul.mubr.f32.gmra.mrb[0].mxu0 %v967
    %v1058 = vpop.f32.mrb[0].mxu0
    %v1059 = vadd.f32 %v930, %v1058
    %v1060 = vpop.f32.mrb[0].mxu0
    %1061 = vmatprep.mubr.f32.mxu0 0.0
    %1062 = vmatmul.mubr.f32.gmra.mrb[0].mxu0 %v970
    %v1063 = vpop.f32.mrb[0].mxu0
    %v1064 = vadd.f32 %v935, %v1063
    %v1065 = vpop.f32.mrb[0].mxu0
    %1066 = vmatprep.mubr.f32.mxu0 0.0
    %1067 = vmatmul.mubr.f32.gmra.mrb[0].mxu0 %v973
    %v1068 = vpop.f32.mrb[0].mxu0
    %v1069 = vadd.f32 %v940, %v1068
    %v1070 = vpop.f32.mrb[0].mxu0
    %1071 = vmatprep.mubr.f32.mxu0 0.0
    %1072 = vmatmul.mubr.f32.gmra.mrb[0].mxu0 %v976
    %v1073 = vpop.f32.mrb[0].mxu0
    %v1074 = vadd.f32 %v945, %v1073
    %v1075 = vpop.f32.mrb[0].mxu0
    %1076 = vmatprep.mubr.f32.mxu0 0.0
    %1077 = vmatmul.mubr.f32.gmra.mrb[0].mxu0 %v979
    %v1078 = vpop.f32.mrb[0].mxu0
    %v1079 = vadd.f32 %v950, %v1078
    %v1080 = vpop.f32.mrb[0].mxu0
    %1081 = vmatprep.mubr.f32.mxu0 0.0
    %1082 = vmatmul.mubr.f32.gmra.mrb[0].mxu0 %v982
    %v1083 = vpop.f32.mrb[0].mxu0
    %v1084 = vadd.f32 %v955, %v1083
    %v1085 = vpop.f32.mrb[0].mxu0
    %1086 = vmatprep.mubr.f32.mxu0 0.0
    %1087 = vmatmul.mubr.f32.gmra.mrb[0].mxu0 %v985
    %v1088 = vpop.f32.mrb[0].mxu0
    %v1089 = vadd.f32 %v960, %v1088
    %v1090 = vpop.f32.mrb[0].mxu0
    %1091 = vdwg.mxu0
    %v1093 = vsel %vm175, %v819, 0
    %v1096 = vsel %vm175, %v821, 0
    %v1099 = vsel %vm175, %v823, 0
    %v1102 = vsel %vm175, %v825, 0
    %v1105 = vsel %vm175, %v827, 0
    %v1108 = vsel %vm175, %v829, 0
    %v1111 = vsel %vm175, %v831, 0
    %v1114 = vsel %vm175, %v833, 0
    %1116 = vmatprep.subr.mxu0 0.0
    %1117 = vmatpush1.msra.mxu0 %v782
    %1118 = vmatprep.subr.mxu0 0.0
    %1119 = vmatpush1.msra.mxu0 %v783
    %1120 = vmatprep.subr.mxu0 0.0
    %1121 = vmatpush1.msra.mxu0 %v784
    %1122 = vmatprep.subr.mxu0 0.0
    %1123 = vmatpush1.msra.mxu0 %v785
    %1124 = vmatprep.subr.mxu0 0.0
    %1125 = vmatpush1.msra.mxu0 0.0
    %1126 = vmatprep.subr.mxu0 0.0
    %1127 = vmatpush1.msra.mxu0 0.0
    %1128 = vmatprep.subr.mxu0 0.0
    %1129 = vmatpush1.msra.mxu0 0.0
    %1130 = vmatprep.subr.mxu0 0.0
    %1131 = vmatpush1.msra.mxu0 0.0
    %1132 = vmatprep.subr.mxu0 0.0
    %1133 = vmatpush1.msra.mxu0 0.0
    %1134 = vmatprep.subr.mxu0 0.0
    %1135 = vmatpush1.msra.mxu0 0.0
    %1136 = vmatprep.subr.mxu0 0.0
    %1137 = vmatpush1.msra.mxu0 0.0
    %1138 = vmatprep.subr.mxu0 0.0
    %1139 = vmatpush1.msra.mxu0 0.0
    %1140 = vmatprep.subr.mxu0 0.0
    %1141 = vmatpush1.msra.mxu0 0.0
    %1142 = vmatprep.subr.mxu0 0.0
    %1143 = vmatpush1.msra.mxu0 0.0
    %1144 = vmatprep.subr.mxu0 0.0
    %1145 = vmatpush1.msra.mxu0 0.0
    %1146 = vmatprep.subr.mxu0 0.0
    %1147 = vmatpush1.msra.mxu0 0.0
    %1148 = vmatprep.subr.mxu0 0.0
    %1149 = vmatpush1.msra.mxu0 0.0
    %1150 = vmatprep.subr.mxu0 0.0
    %1151 = vmatpush1.msra.mxu0 0.0
    %1152 = vmatprep.subr.mxu0 0.0
    %1153 = vmatpush1.msra.mxu0 0.0
    %1154 = vmatprep.subr.mxu0 0.0
    %1155 = vmatpush1.msra.mxu0 0.0
    %1156 = vmatprep.subr.mxu0 0.0
    %1157 = vmatpush1.msra.mxu0 0.0
    %1158 = vmatprep.subr.mxu0 0.0
    %1159 = vmatpush1.msra.mxu0 0.0
    %1160 = vmatprep.subr.mxu0 0.0
    %1161 = vmatpush1.msra.mxu0 0.0
    %1162 = vmatprep.subr.mxu0 0.0
    %1163 = vmatpush1.msra.mxu0 0.0
    %1164 = vmatprep.subr.mxu0 0.0
    %1165 = vmatpush1.msra.mxu0 0.0
    %1166 = vmatprep.subr.mxu0 0.0
    %1167 = vmatpush1.msra.mxu0 0.0
    %1168 = vmatprep.subr.mxu0 0.0
    %1169 = vmatpush1.msra.mxu0 0.0
    %1170 = vmatprep.subr.mxu0 0.0
    %1171 = vmatpush1.msra.mxu0 0.0
    %1172 = vmatprep.subr.mxu0 0.0
    %1173 = vmatpush1.msra.mxu0 0.0
    %1174 = vmatprep.subr.mxu0 0.0
    %1175 = vmatpush1.msra.mxu0 0.0
    %1176 = vmatprep.subr.mxu0 0.0
    %1177 = vmatpush1.msra.mxu0 0.0
    %1178 = vmatprep.subr.mxu0 0.0
    %1179 = vmatpush1.msra.mxu0 0.0
    %1180 = vmatprep.mubr.f32.mxu0 0.0
    %1181 = vmatmul.mubr.f32.gmra.mrb[0].mxu0 %v1093
    %v1182 = vpop.f32.mrb[0].mxu0
    %v1183 = vadd.f32 0.0, %v1182
    %v1184 = vpop.f32.mrb[0].mxu0
    %1185 = vmatprep.mubr.f32.mxu0 0.0
    %1186 = vmatmul.mubr.f32.gmra.mrb[0].mxu0 %v1096
    %v1187 = vpop.f32.mrb[0].mxu0
    %v1188 = vadd.f32 0.0, %v1187
    %v1189 = vpop.f32.mrb[0].mxu0
    %1190 = vmatprep.mubr.f32.mxu0 0.0
    %1191 = vmatmul.mubr.f32.gmra.mrb[0].mxu0 %v1099
    %v1192 = vpop.f32.mrb[0].mxu0
    %v1193 = vadd.f32 0.0, %v1192
    %v1194 = vpop.f32.mrb[0].mxu0
    %1195 = vmatprep.mubr.f32.mxu0 0.0
    %1196 = vmatmul.mubr.f32.gmra.mrb[0].mxu0 %v1102
    %v1197 = vpop.f32.mrb[0].mxu0
    %v1198 = vadd.f32 0.0, %v1197
    %v1199 = vpop.f32.mrb[0].mxu0
    %1200 = vmatprep.mubr.f32.mxu0 0.0
    %1201 = vmatmul.mubr.f32.gmra.mrb[0].mxu0 %v1105
    %v1202 = vpop.f32.mrb[0].mxu0
    %v1203 = vadd.f32 0.0, %v1202
    %v1204 = vpop.f32.mrb[0].mxu0
    %1205 = vmatprep.mubr.f32.mxu0 0.0
    %1206 = vmatmul.mubr.f32.gmra.mrb[0].mxu0 %v1108
    %v1207 = vpop.f32.mrb[0].mxu0
    %v1208 = vadd.f32 0.0, %v1207
    %v1209 = vpop.f32.mrb[0].mxu0
    %1210 = vmatprep.mubr.f32.mxu0 0.0
    %1211 = vmatmul.mubr.f32.gmra.mrb[0].mxu0 %v1111
    %v1212 = vpop.f32.mrb[0].mxu0
    %v1213 = vadd.f32 0.0, %v1212
    %v1214 = vpop.f32.mrb[0].mxu0
    %1215 = vmatprep.mubr.f32.mxu0 0.0
    %1216 = vmatmul.mubr.f32.gmra.mrb[0].mxu0 %v1114
    %v1217 = vpop.f32.mrb[0].mxu0
    %v1218 = vadd.f32 0.0, %v1217
    %v1219 = vpop.f32.mrb[0].mxu0
    %1220 = vdwg.mxu0
    %v1221 = vadd.f32 %v1054, %v1183
    %v1222 = vadd.f32 %v1059, %v1188
    %v1223 = vadd.f32 %v1064, %v1193
    %v1224 = vadd.f32 %v1069, %v1198
    %v1225 = vadd.f32 %v1074, %v1203
    %v1226 = vadd.f32 %v1079, %v1208
    %v1227 = vadd.f32 %v1084, %v1213
    %v1228 = vadd.f32 %v1089, %v1218
    %v1230 = vlaneseq
    %v1231 = vshrl.u32 %v1230, 7
    %v1232 = vsub.s32 0, %v1231
    %v1233 = vrot.slane %v786, %v1232
    %v1235 = vadd.f32 %v1221, %v1233
    %v1236 = vadd.f32 %v1222, %v1233
    %v1237 = vadd.f32 %v1223, %v1233
    %v1238 = vadd.f32 %v1224, %v1233
    %v1239 = vadd.f32 %v1225, %v1233
    %v1240 = vadd.f32 %v1226, %v1233
    %v1241 = vadd.f32 %v1227, %v1233
    %v1242 = vadd.f32 %v1228, %v1233
    %v1243 = vmax.f32 %v1235, 0.0
    %v1244 = vmax.f32 %v1236, 0.0
    %v1245 = vmax.f32 %v1237, 0.0
    %v1246 = vmax.f32 %v1238, 0.0
    %v1247 = vmax.f32 %v1239, 0.0
    %v1248 = vmax.f32 %v1240, 0.0
    %v1249 = vmax.f32 %v1241, 0.0
    %v1250 = vmax.f32 %v1242, 0.0
    %1251 = vst.msk [vmem:[#allocation4 + $0x1] sm:$0xff] %vm175, %v1243
    %1252 = vst.msk [vmem:[#allocation4 + $0x9] sm:$0xff] %vm175, %v1244
    %1253 = vst.msk [vmem:[#allocation4 + $0x11] sm:$0xff] %vm175, %v1245
    %1254 = vst.msk [vmem:[#allocation4 + $0x19] sm:$0xff] %vm175, %v1246
    %1255 = vst.msk [vmem:[#allocation4 + $0x29] sm:$0xff] %vm175, %v1247
    %1256 = vst.msk [vmem:[#allocation4 + $0x31] sm:$0xff] %vm175, %v1248
    %1257 = vst.msk [vmem:[#allocation4 + $0x39] sm:$0xff] %vm175, %v1249
    %1258 = vst.msk [vmem:[#allocation4 + $0x41] sm:$0xff] %vm175, %v1250
    %v1259 = vld [vmem:[#allocation11] sm:$0xff]
    %v1260 = vld [vmem:[#allocation11 + $0x8] sm:$0xff]
    %v1261 = vld [vmem:[#allocation11 + $0x10] sm:$0xff]
    %v1262 = vld [vmem:[#allocation11 + $0x18] sm:$0xff]
    %v1263 = vld [vmem:[#allocation11 + $0x20] sm:$0xff]
    %v1264 = vld [vmem:[#allocation11 + $0x28] sm:$0xff]
    %v1265 = vld [vmem:[#allocation11 + $0x30] sm:$0xff]
    %v1266 = vld [vmem:[#allocation11 + $0x38] sm:$0xff]
    %v1267 = vld [vmem:[#allocation11 + $0x40] sm:$0xff]
    %v1268 = vld [vmem:[#allocation11 + $0x48] sm:$0xff]
    %v1269 = vld [vmem:[#allocation11 + $0x50] sm:$0xff]
    %v1270 = vld [vmem:[#allocation11 + $0x58] sm:$0xff]
    %v1271 = vld [vmem:[%s9] sm:$0x1]
    %v1272 = vld [vmem:[#allocation4] ss:$2 sm:$0xff]
    %s1273 = scalar_lea.vmem [#allocation4], 16
    %v1274 = vld [vmem:[%s1273] ss:$2 sm:$0xff]
    %s1275 = scalar_lea.vmem [#allocation4], 40
    %v1276 = vld [vmem:[%s1275] ss:$2 sm:$0xff]
    %s1277 = scalar_lea.vmem [#allocation4], 56
    %v1278 = vld [vmem:[%s1277] ss:$2 sm:$0xff]
    %s1279 = scalar_lea.vmem [#allocation4], 1
    %v1280 = vld [vmem:[%s1279] ss:$2 sm:$0xff]
    %s1281 = scalar_lea.vmem [#allocation4], 17
    %v1282 = vld [vmem:[%s1281] ss:$2 sm:$0xff]
    %s1283 = scalar_lea.vmem [#allocation4], 41
    %v1284 = vld [vmem:[%s1283] ss:$2 sm:$0xff]
    %s1285 = scalar_lea.vmem [#allocation4], 57
    %v1286 = vld [vmem:[%s1285] ss:$2 sm:$0xff]
    %s1287 = scalar_lea.vmem [#allocation4], 2
    %v1288 = vld [vmem:[%s1287] ss:$2 sm:$0xff]
    %s1289 = scalar_lea.vmem [#allocation4], 18
    %v1290 = vld [vmem:[%s1289] ss:$2 sm:$0xff]
    %s1291 = scalar_lea.vmem [#allocation4], 42
    %v1292 = vld [vmem:[%s1291] ss:$2 sm:$0xff]
    %s1293 = scalar_lea.vmem [#allocation4], 58
    %v1294 = vld [vmem:[%s1293] ss:$2 sm:$0xff]
    %v1296 = vsel %vm175, %v1280, 0
    %v1299 = vsel %vm175, %v1282, 0
    %v1302 = vsel %vm175, %v1284, 0
    %v1305 = vsel %vm175, %v1286, 0
    %1307 = vmatprep.subr.mxu0 0.0
    %1308 = vmatpush1.msra.mxu0 %v1263
    %1309 = vmatprep.subr.mxu0 0.0
    %1310 = vmatpush1.msra.mxu0 %v1264
    %1311 = vmatprep.subr.mxu0 0.0
    %1312 = vmatpush1.msra.mxu0 %v1265
    %1313 = vmatprep.subr.mxu0 0.0
    %1314 = vmatpush1.msra.mxu0 %v1266
    %1315 = vmatprep.subr.mxu0 0.0
    %1316 = vmatpush1.msra.mxu0 0.0
    %1317 = vmatprep.subr.mxu0 0.0
    %1318 = vmatpush1.msra.mxu0 0.0
    %1319 = vmatprep.subr.mxu0 0.0
    %1320 = vmatpush1.msra.mxu0 0.0
    %1321 = vmatprep.subr.mxu0 0.0
    %1322 = vmatpush1.msra.mxu0 0.0
    %1323 = vmatprep.subr.mxu0 0.0
    %1324 = vmatpush1.msra.mxu0 0.0
    %1325 = vmatprep.subr.mxu0 0.0
    %1326 = vmatpush1.msra.mxu0 0.0
    %1327 = vmatprep.subr.mxu0 0.0
    %1328 = vmatpush1.msra.mxu0 0.0
    %1329 = vmatprep.subr.mxu0 0.0
    %1330 = vmatpush1.msra.mxu0 0.0
    %1331 = vmatprep.subr.mxu0 0.0
    %1332 = vmatpush1.msra.mxu0 0.0
    %1333 = vmatprep.subr.mxu0 0.0
    %1334 = vmatpush1.msra.mxu0 0.0
    %1335 = vmatprep.subr.mxu0 0.0
    %1336 = vmatpush1.msra.mxu0 0.0
    %1337 = vmatprep.subr.mxu0 0.0
    %1338 = vmatpush1.msra.mxu0 0.0
    %1339 = vmatprep.subr.mxu0 0.0
    %1340 = vmatpush1.msra.mxu0 0.0
    %1341 = vmatprep.subr.mxu0 0.0
    %1342 = vmatpush1.msra.mxu0 0.0
    %1343 = vmatprep.subr.mxu0 0.0
    %1344 = vmatpush1.msra.mxu0 0.0
    %1345 = vmatprep.subr.mxu0 0.0
    %1346 = vmatpush1.msra.mxu0 0.0
    %1347 = vmatprep.subr.mxu0 0.0
    %1348 = vmatpush1.msra.mxu0 0.0
    %1349 = vmatprep.subr.mxu0 0.0
    %1350 = vmatpush1.msra.mxu0 0.0
    %1351 = vmatprep.subr.mxu0 0.0
    %1352 = vmatpush1.msra.mxu0 0.0
    %1353 = vmatprep.subr.mxu0 0.0
    %1354 = vmatpush1.msra.mxu0 0.0
    %1355 = vmatprep.subr.mxu0 0.0
    %1356 = vmatpush1.msra.mxu0 0.0
    %1357 = vmatprep.subr.mxu0 0.0
    %1358 = vmatpush1.msra.mxu0 0.0
    %1359 = vmatprep.subr.mxu0 0.0
    %1360 = vmatpush1.msra.mxu0 0.0
    %1361 = vmatprep.subr.mxu0 0.0
    %1362 = vmatpush1.msra.mxu0 0.0
    %1363 = vmatprep.subr.mxu0 0.0
    %1364 = vmatpush1.msra.mxu0 0.0
    %1365 = vmatprep.subr.mxu0 0.0
    %1366 = vmatpush1.msra.mxu0 0.0
    %1367 = vmatprep.subr.mxu0 0.0
    %1368 = vmatpush1.msra.mxu0 0.0
    %1369 = vmatprep.subr.mxu0 0.0
    %1370 = vmatpush1.msra.mxu0 0.0
    %1371 = vmatprep.mubr.f32.mxu0 0.0
    %1372 = vmatmul.mubr.f32.gmra.mrb[0].mxu0 %v1296
    %v1373 = vpop.f32.mrb[0].mxu0
    %v1374 = vadd.f32 0.0, %v1373
    %v1375 = vpop.f32.mrb[0].mxu0
    %1376 = vmatprep.mubr.f32.mxu0 0.0
    %1377 = vmatmul.mubr.f32.gmra.mrb[0].mxu0 %v1299
    %v1378 = vpop.f32.mrb[0].mxu0
    %v1379 = vadd.f32 0.0, %v1378
    %v1380 = vpop.f32.mrb[0].mxu0
    %1381 = vmatprep.mubr.f32.mxu0 0.0
    %1382 = vmatmul.mubr.f32.gmra.mrb[0].mxu0 %v1302
    %v1383 = vpop.f32.mrb[0].mxu0
    %v1384 = vadd.f32 0.0, %v1383
    %v1385 = vpop.f32.mrb[0].mxu0
    %1386 = vmatprep.mubr.f32.mxu0 0.0
    %1387 = vmatmul.mubr.f32.gmra.mrb[0].mxu0 %v1305
    %v1388 = vpop.f32.mrb[0].mxu0
    %v1389 = vadd.f32 0.0, %v1388
    %v1390 = vpop.f32.mrb[0].mxu0
    %1391 = vdwg.mxu0
    %v1393 = vsel %vm175, %v1272, 0
    %v1396 = vsel %vm175, %v1274, 0
    %v1399 = vsel %vm175, %v1276, 0
    %v1402 = vsel %vm175, %v1278, 0
    %1404 = vmatprep.subr.mxu0 0.0
    %1405 = vmatpush1.msra.mxu0 %v1259
    %1406 = vmatprep.subr.mxu0 0.0
    %1407 = vmatpush1.msra.mxu0 %v1260
    %1408 = vmatprep.subr.mxu0 0.0
    %1409 = vmatpush1.msra.mxu0 %v1261
    %1410 = vmatprep.subr.mxu0 0.0
    %1411 = vmatpush1.msra.mxu0 %v1262
    %1412 = vmatprep.subr.mxu0 0.0
    %1413 = vmatpush1.msra.mxu0 0.0
    %1414 = vmatprep.subr.mxu0 0.0
    %1415 = vmatpush1.msra.mxu0 0.0
    %1416 = vmatprep.subr.mxu0 0.0
    %1417 = vmatpush1.msra.mxu0 0.0
    %1418 = vmatprep.subr.mxu0 0.0
    %1419 = vmatpush1.msra.mxu0 0.0
    %1420 = vmatprep.subr.mxu0 0.0
    %1421 = vmatpush1.msra.mxu0 0.0
    %1422 = vmatprep.subr.mxu0 0.0
    %1423 = vmatpush1.msra.mxu0 0.0
    %1424 = vmatprep.subr.mxu0 0.0
    %1425 = vmatpush1.msra.mxu0 0.0
    %1426 = vmatprep.subr.mxu0 0.0
    %1427 = vmatpush1.msra.mxu0 0.0
    %1428 = vmatprep.subr.mxu0 0.0
    %1429 = vmatpush1.msra.mxu0 0.0
    %1430 = vmatprep.subr.mxu0 0.0
    %1431 = vmatpush1.msra.mxu0 0.0
    %1432 = vmatprep.subr.mxu0 0.0
    %1433 = vmatpush1.msra.mxu0 0.0
    %1434 = vmatprep.subr.mxu0 0.0
    %1435 = vmatpush1.msra.mxu0 0.0
    %1436 = vmatprep.subr.mxu0 0.0
    %1437 = vmatpush1.msra.mxu0 0.0
    %1438 = vmatprep.subr.mxu0 0.0
    %1439 = vmatpush1.msra.mxu0 0.0
    %1440 = vmatprep.subr.mxu0 0.0
    %1441 = vmatpush1.msra.mxu0 0.0
    %1442 = vmatprep.subr.mxu0 0.0
    %1443 = vmatpush1.msra.mxu0 0.0
    %1444 = vmatprep.subr.mxu0 0.0
    %1445 = vmatpush1.msra.mxu0 0.0
    %1446 = vmatprep.subr.mxu0 0.0
    %1447 = vmatpush1.msra.mxu0 0.0
    %1448 = vmatprep.subr.mxu0 0.0
    %1449 = vmatpush1.msra.mxu0 0.0
    %1450 = vmatprep.subr.mxu0 0.0
    %1451 = vmatpush1.msra.mxu0 0.0
    %1452 = vmatprep.subr.mxu0 0.0
    %1453 = vmatpush1.msra.mxu0 0.0
    %1454 = vmatprep.subr.mxu0 0.0
    %1455 = vmatpush1.msra.mxu0 0.0
    %1456 = vmatprep.subr.mxu0 0.0
    %1457 = vmatpush1.msra.mxu0 0.0
    %1458 = vmatprep.subr.mxu0 0.0
    %1459 = vmatpush1.msra.mxu0 0.0
    %1460 = vmatprep.subr.mxu0 0.0
    %1461 = vmatpush1.msra.mxu0 0.0
    %1462 = vmatprep.subr.mxu0 0.0
    %1463 = vmatpush1.msra.mxu0 0.0
    %1464 = vmatprep.subr.mxu0 0.0
    %1465 = vmatpush1.msra.mxu0 0.0
    %1466 = vmatprep.subr.mxu0 0.0
    %1467 = vmatpush1.msra.mxu0 0.0
    %1468 = vmatprep.mubr.f32.mxu0 0.0
    %1469 = vmatmul.mubr.f32.gmra.mrb[0].mxu0 %v1393
    %v1470 = vpop.f32.mrb[0].mxu0
    %v1471 = vadd.f32 %v1374, %v1470
    %v1472 = vpop.f32.mrb[0].mxu0
    %1473 = vmatprep.mubr.f32.mxu0 0.0
    %1474 = vmatmul.mubr.f32.gmra.mrb[0].mxu0 %v1396
    %v1475 = vpop.f32.mrb[0].mxu0
    %v1476 = vadd.f32 %v1379, %v1475
    %v1477 = vpop.f32.mrb[0].mxu0
    %1478 = vmatprep.mubr.f32.mxu0 0.0
    %1479 = vmatmul.mubr.f32.gmra.mrb[0].mxu0 %v1399
    %v1480 = vpop.f32.mrb[0].mxu0
    %v1481 = vadd.f32 %v1384, %v1480
    %v1482 = vpop.f32.mrb[0].mxu0
    %1483 = vmatprep.mubr.f32.mxu0 0.0
    %1484 = vmatmul.mubr.f32.gmra.mrb[0].mxu0 %v1402
    %v1485 = vpop.f32.mrb[0].mxu0
    %v1486 = vadd.f32 %v1389, %v1485
    %v1487 = vpop.f32.mrb[0].mxu0
    %1488 = vdwg.mxu0
    %v1490 = vsel %vm175, %v1288, 0
    %v1493 = vsel %vm175, %v1290, 0
    %v1496 = vsel %vm175, %v1292, 0
    %v1499 = vsel %vm175, %v1294, 0
    %1501 = vmatprep.subr.mxu0 0.0
    %1502 = vmatpush1.msra.mxu0 %v1267
    %1503 = vmatprep.subr.mxu0 0.0
    %1504 = vmatpush1.msra.mxu0 %v1268
    %1505 = vmatprep.subr.mxu0 0.0
    %1506 = vmatpush1.msra.mxu0 %v1269
    %1507 = vmatprep.subr.mxu0 0.0
    %1508 = vmatpush1.msra.mxu0 %v1270
    %1509 = vmatprep.subr.mxu0 0.0
    %1510 = vmatpush1.msra.mxu0 0.0
    %1511 = vmatprep.subr.mxu0 0.0
    %1512 = vmatpush1.msra.mxu0 0.0
    %1513 = vmatprep.subr.mxu0 0.0
    %1514 = vmatpush1.msra.mxu0 0.0
    %1515 = vmatprep.subr.mxu0 0.0
    %1516 = vmatpush1.msra.mxu0 0.0
    %1517 = vmatprep.subr.mxu0 0.0
    %1518 = vmatpush1.msra.mxu0 0.0
    %1519 = vmatprep.subr.mxu0 0.0
    %1520 = vmatpush1.msra.mxu0 0.0
    %1521 = vmatprep.subr.mxu0 0.0
    %1522 = vmatpush1.msra.mxu0 0.0
    %1523 = vmatprep.subr.mxu0 0.0
    %1524 = vmatpush1.msra.mxu0 0.0
    %1525 = vmatprep.subr.mxu0 0.0
    %1526 = vmatpush1.msra.mxu0 0.0
    %1527 = vmatprep.subr.mxu0 0.0
    %1528 = vmatpush1.msra.mxu0 0.0
    %1529 = vmatprep.subr.mxu0 0.0
    %1530 = vmatpush1.msra.mxu0 0.0
    %1531 = vmatprep.subr.mxu0 0.0
    %1532 = vmatpush1.msra.mxu0 0.0
    %1533 = vmatprep.subr.mxu0 0.0
    %1534 = vmatpush1.msra.mxu0 0.0
    %1535 = vmatprep.subr.mxu0 0.0
    %1536 = vmatpush1.msra.mxu0 0.0
    %1537 = vmatprep.subr.mxu0 0.0
    %1538 = vmatpush1.msra.mxu0 0.0
    %1539 = vmatprep.subr.mxu0 0.0
    %1540 = vmatpush1.msra.mxu0 0.0
    %1541 = vmatprep.subr.mxu0 0.0
    %1542 = vmatpush1.msra.mxu0 0.0
    %1543 = vmatprep.subr.mxu0 0.0
    %1544 = vmatpush1.msra.mxu0 0.0
    %1545 = vmatprep.subr.mxu0 0.0
    %1546 = vmatpush1.msra.mxu0 0.0
    %1547 = vmatprep.subr.mxu0 0.0
    %1548 = vmatpush1.msra.mxu0 0.0
    %1549 = vmatprep.subr.mxu0 0.0
    %1550 = vmatpush1.msra.mxu0 0.0
    %1551 = vmatprep.subr.mxu0 0.0
    %1552 = vmatpush1.msra.mxu0 0.0
    %1553 = vmatprep.subr.mxu0 0.0
    %1554 = vmatpush1.msra.mxu0 0.0
    %1555 = vmatprep.subr.mxu0 0.0
    %1556 = vmatpush1.msra.mxu0 0.0
    %1557 = vmatprep.subr.mxu0 0.0
    %1558 = vmatpush1.msra.mxu0 0.0
    %1559 = vmatprep.subr.mxu0 0.0
    %1560 = vmatpush1.msra.mxu0 0.0
    %1561 = vmatprep.subr.mxu0 0.0
    %1562 = vmatpush1.msra.mxu0 0.0
    %1563 = vmatprep.subr.mxu0 0.0
    %1564 = vmatpush1.msra.mxu0 0.0
    %1565 = vmatprep.mubr.f32.mxu0 0.0
    %1566 = vmatmul.mubr.f32.gmra.mrb[0].mxu0 %v1490
    %v1567 = vpop.f32.mrb[0].mxu0
    %v1568 = vadd.f32 0.0, %v1567
    %v1569 = vpop.f32.mrb[0].mxu0
    %1570 = vmatprep.mubr.f32.mxu0 0.0
    %1571 = vmatmul.mubr.f32.gmra.mrb[0].mxu0 %v1493
    %v1572 = vpop.f32.mrb[0].mxu0
    %v1573 = vadd.f32 0.0, %v1572
    %v1574 = vpop.f32.mrb[0].mxu0
    %1575 = vmatprep.mubr.f32.mxu0 0.0
    %1576 = vmatmul.mubr.f32.gmra.mrb[0].mxu0 %v1496
    %v1577 = vpop.f32.mrb[0].mxu0
    %v1578 = vadd.f32 0.0, %v1577
    %v1579 = vpop.f32.mrb[0].mxu0
    %1580 = vmatprep.mubr.f32.mxu0 0.0
    %1581 = vmatmul.mubr.f32.gmra.mrb[0].mxu0 %v1499
    %v1582 = vpop.f32.mrb[0].mxu0
    %v1583 = vadd.f32 0.0, %v1582
    %v1584 = vpop.f32.mrb[0].mxu0
    %1585 = vdwg.mxu0
    %v1586 = vadd.f32 %v1471, %v1568
    %v1587 = vadd.f32 %v1476, %v1573
    %v1588 = vadd.f32 %v1481, %v1578
    %v1589 = vadd.f32 %v1486, %v1583
    %v1591 = vlaneseq
    %v1592 = vshrl.u32 %v1591, 7
    %v1593 = vsub.s32 0, %v1592
    %v1594 = vrot.slane %v1271, %v1593
    %v1596 = vadd.f32 %v1586, %v1594
    %v1597 = vadd.f32 %v1587, %v1594
    %v1598 = vadd.f32 %v1588, %v1594
    %v1599 = vadd.f32 %v1589, %v1594
    %v1600 = vmax.f32 %v1596, 0.0
    %v1601 = vmax.f32 %v1597, 0.0
    %v1602 = vmax.f32 %v1598, 0.0
    %v1603 = vmax.f32 %v1599, 0.0
    %1604 = vst.msk [vmem:[#allocation5 + $0x1] sm:$0xff] %vm205, %v1600
    %1605 = vst.msk [vmem:[#allocation5 + $0x9] sm:$0xff] %vm205, %v1601
    %1606 = vst.msk [vmem:[#allocation5 + $0x19] sm:$0xff] %vm205, %v1602
    %1607 = vst.msk [vmem:[#allocation5 + $0x21] sm:$0xff] %vm205, %v1603
    %v1608 = vld [vmem:[%s4] sm:$0xff]
    %v1609 = vld [vmem:[%s4 + $0x8] sm:$0xff]
    %v1610 = vld [vmem:[%s4 + $0x10] sm:$0xff]
    %v1611 = vld [vmem:[%s4 + $0x18] sm:$0xff]
    %v1612 = vld [vmem:[%s4 + $0x20] sm:$0xff]
    %v1613 = vld [vmem:[%s4 + $0x28] sm:$0xff]
    %v1614 = vld [vmem:[%s4 + $0x30] sm:$0xff]
    %v1615 = vld [vmem:[%s4 + $0x38] sm:$0xff]
    %v1616 = vld [vmem:[%s4 + $0x40] sm:$0xff]
    %v1617 = vld [vmem:[%s4 + $0x48] sm:$0xff]
    %v1618 = vld [vmem:[%s4 + $0x50] sm:$0xff]
    %v1619 = vld [vmem:[%s4 + $0x58] sm:$0xff]
    %v1620 = vld [vmem:[%s4 + $0x60] sm:$0xff]
    %v1621 = vld [vmem:[%s4 + $0x68] sm:$0xff]
    %v1622 = vld [vmem:[%s4 + $0x70] sm:$0xff]
    %v1623 = vld [vmem:[%s4 + $0x78] sm:$0xff]
    %v1624 = vld [vmem:[%s4 + $0x80] sm:$0xff]
    %v1625 = vld [vmem:[%s4 + $0x88] sm:$0xff]
    %v1626 = vld [vmem:[%s4 + $0x90] sm:$0xff]
    %v1627 = vld [vmem:[%s4 + $0x98] sm:$0xff]
    %v1628 = vld [vmem:[%s4 + $0xa0] sm:$0xff]
    %v1629 = vld [vmem:[%s4 + $0xa8] sm:$0xff]
    %v1630 = vld [vmem:[%s4 + $0xb0] sm:$0xff]
    %v1631 = vld [vmem:[%s4 + $0xb8] sm:$0xff]
    %v1632 = vld [vmem:[%s10] sm:$0x1]
    %v1633 = vld [vmem:[#allocation5] ss:$2 sm:$0xff]
    %s1634 = scalar_lea.vmem [#allocation5], 24
    %v1635 = vld [vmem:[%s1634] ss:$2 sm:$0xff]
    %s1636 = scalar_lea.vmem [#allocation5], 1
    %v1637 = vld [vmem:[%s1636] ss:$2 sm:$0xff]
    %s1638 = scalar_lea.vmem [#allocation5], 25
    %v1639 = vld [vmem:[%s1638] ss:$2 sm:$0xff]
    %s1640 = scalar_lea.vmem [#allocation5], 2
    %v1641 = vld [vmem:[%s1640] ss:$2 sm:$0xff]
    %s1642 = scalar_lea.vmem [#allocation5], 26
    %v1643 = vld [vmem:[%s1642] ss:$2 sm:$0xff]
    %v1645 = vsel %vm205, %v1637, 0
    %v1648 = vsel %vm205, %v1639, 0
    %1650 = vmatprep.subr.mxu0 0.0
    %1651 = vmatpush1.msra.mxu0 %v1616
    %1652 = vmatprep.subr.mxu0 0.0
    %1653 = vmatpush1.msra.mxu0 %v1617
    %1654 = vmatprep.subr.mxu0 0.0
    %1655 = vmatpush1.msra.mxu0 %v1618
    %1656 = vmatprep.subr.mxu0 0.0
    %1657 = vmatpush1.msra.mxu0 %v1619
    %1658 = vmatprep.subr.mxu0 0.0
    %1659 = vmatpush1.msra.mxu0 %v1620
    %1660 = vmatprep.subr.mxu0 0.0
    %1661 = vmatpush1.msra.mxu0 %v1621
    %1662 = vmatprep.subr.mxu0 0.0
    %1663 = vmatpush1.msra.mxu0 %v1622
    %1664 = vmatprep.subr.mxu0 0.0
    %1665 = vmatpush1.msra.mxu0 %v1623
    %1666 = vmatprep.subr.mxu0 0.0
    %1667 = vmatpush1.msra.mxu0 0.0
    %1668 = vmatprep.subr.mxu0 0.0
    %1669 = vmatpush1.msra.mxu0 0.0
    %1670 = vmatprep.subr.mxu0 0.0
    %1671 = vmatpush1.msra.mxu0 0.0
    %1672 = vmatprep.subr.mxu0 0.0
    %1673 = vmatpush1.msra.mxu0 0.0
    %1674 = vmatprep.subr.mxu0 0.0
    %1675 = vmatpush1.msra.mxu0 0.0
    %1676 = vmatprep.subr.mxu0 0.0
    %1677 = vmatpush1.msra.mxu0 0.0
    %1678 = vmatprep.subr.mxu0 0.0
    %1679 = vmatpush1.msra.mxu0 0.0
    %1680 = vmatprep.subr.mxu0 0.0
    %1681 = vmatpush1.msra.mxu0 0.0
    %1682 = vmatprep.subr.mxu0 0.0
    %1683 = vmatpush1.msra.mxu0 0.0
    %1684 = vmatprep.subr.mxu0 0.0
    %1685 = vmatpush1.msra.mxu0 0.0
    %1686 = vmatprep.subr.mxu0 0.0
    %1687 = vmatpush1.msra.mxu0 0.0
    %1688 = vmatprep.subr.mxu0 0.0
    %1689 = vmatpush1.msra.mxu0 0.0
    %1690 = vmatprep.subr.mxu0 0.0
    %1691 = vmatpush1.msra.mxu0 0.0
    %1692 = vmatprep.subr.mxu0 0.0
    %1693 = vmatpush1.msra.mxu0 0.0
    %1694 = vmatprep.subr.mxu0 0.0
    %1695 = vmatpush1.msra.mxu0 0.0
    %1696 = vmatprep.subr.mxu0 0.0
    %1697 = vmatpush1.msra.mxu0 0.0
    %1698 = vmatprep.subr.mxu0 0.0
    %1699 = vmatpush1.msra.mxu0 0.0
    %1700 = vmatprep.subr.mxu0 0.0
    %1701 = vmatpush1.msra.mxu0 0.0
    %1702 = vmatprep.subr.mxu0 0.0
    %1703 = vmatpush1.msra.mxu0 0.0
    %1704 = vmatprep.subr.mxu0 0.0
    %1705 = vmatpush1.msra.mxu0 0.0
    %1706 = vmatprep.subr.mxu0 0.0
    %1707 = vmatpush1.msra.mxu0 0.0
    %1708 = vmatprep.subr.mxu0 0.0
    %1709 = vmatpush1.msra.mxu0 0.0
    %1710 = vmatprep.subr.mxu0 0.0
    %1711 = vmatpush1.msra.mxu0 0.0
    %1712 = vmatprep.subr.mxu0 0.0
    %1713 = vmatpush1.msra.mxu0 0.0
    %1714 = vmatprep.mubr.f32.mxu0 0.0
    %1715 = vmatmul.mubr.f32.gmra.mrb[0].mxu0 %v1645
    %v1716 = vpop.f32.mrb[0].mxu0
    %v1717 = vadd.f32 0.0, %v1716
    %v1718 = vpop.f32.mrb[0].mxu0
    %1719 = vmatprep.mubr.f32.mxu0 0.0
    %1720 = vmatmul.mubr.f32.gmra.mrb[0].mxu0 %v1648
    %v1721 = vpop.f32.mrb[0].mxu0
    %v1722 = vadd.f32 0.0, %v1721
    %v1723 = vpop.f32.mrb[0].mxu0
    %1724 = vdwg.mxu0
    %v1726 = vsel %vm205, %v1633, 0
    %v1729 = vsel %vm205, %v1635, 0
    %1731 = vmatprep.subr.mxu0 0.0
    %1732 = vmatpush1.msra.mxu0 %v1608
    %1733 = vmatprep.subr.mxu0 0.0
    %1734 = vmatpush1.msra.mxu0 %v1609
    %1735 = vmatprep.subr.mxu0 0.0
    %1736 = vmatpush1.msra.mxu0 %v1610
    %1737 = vmatprep.subr.mxu0 0.0
    %1738 = vmatpush1.msra.mxu0 %v1611
    %1739 = vmatprep.subr.mxu0 0.0
    %1740 = vmatpush1.msra.mxu0 %v1612
    %1741 = vmatprep.subr.mxu0 0.0
    %1742 = vmatpush1.msra.mxu0 %v1613
    %1743 = vmatprep.subr.mxu0 0.0
    %1744 = vmatpush1.msra.mxu0 %v1614
    %1745 = vmatprep.subr.mxu0 0.0
    %1746 = vmatpush1.msra.mxu0 %v1615
    %1747 = vmatprep.subr.mxu0 0.0
    %1748 = vmatpush1.msra.mxu0 0.0
    %1749 = vmatprep.subr.mxu0 0.0
    %1750 = vmatpush1.msra.mxu0 0.0
    %1751 = vmatprep.subr.mxu0 0.0
    %1752 = vmatpush1.msra.mxu0 0.0
    %1753 = vmatprep.subr.mxu0 0.0
    %1754 = vmatpush1.msra.mxu0 0.0
    %1755 = vmatprep.subr.mxu0 0.0
    %1756 = vmatpush1.msra.mxu0 0.0
    %1757 = vmatprep.subr.mxu0 0.0
    %1758 = vmatpush1.msra.mxu0 0.0
    %1759 = vmatprep.subr.mxu0 0.0
    %1760 = vmatpush1.msra.mxu0 0.0
    %1761 = vmatprep.subr.mxu0 0.0
    %1762 = vmatpush1.msra.mxu0 0.0
    %1763 = vmatprep.subr.mxu0 0.0
    %1764 = vmatpush1.msra.mxu0 0.0
    %1765 = vmatprep.subr.mxu0 0.0
    %1766 = vmatpush1.msra.mxu0 0.0
    %1767 = vmatprep.subr.mxu0 0.0
    %1768 = vmatpush1.msra.mxu0 0.0
    %1769 = vmatprep.subr.mxu0 0.0
    %1770 = vmatpush1.msra.mxu0 0.0
    %1771 = vmatprep.subr.mxu0 0.0
    %1772 = vmatpush1.msra.mxu0 0.0
    %1773 = vmatprep.subr.mxu0 0.0
    %1774 = vmatpush1.msra.mxu0 0.0
    %1775 = vmatprep.subr.mxu0 0.0
    %1776 = vmatpush1.msra.mxu0 0.0
    %1777 = vmatprep.subr.mxu0 0.0
    %1778 = vmatpush1.msra.mxu0 0.0
    %1779 = vmatprep.subr.mxu0 0.0
    %1780 = vmatpush1.msra.mxu0 0.0
    %1781 = vmatprep.subr.mxu0 0.0
    %1782 = vmatpush1.msra.mxu0 0.0
    %1783 = vmatprep.subr.mxu0 0.0
    %1784 = vmatpush1.msra.mxu0 0.0
    %1785 = vmatprep.subr.mxu0 0.0
    %1786 = vmatpush1.msra.mxu0 0.0
    %1787 = vmatprep.subr.mxu0 0.0
    %1788 = vmatpush1.msra.mxu0 0.0
    %1789 = vmatprep.subr.mxu0 0.0
    %1790 = vmatpush1.msra.mxu0 0.0
    %1791 = vmatprep.subr.mxu0 0.0
    %1792 = vmatpush1.msra.mxu0 0.0
    %1793 = vmatprep.subr.mxu0 0.0
    %1794 = vmatpush1.msra.mxu0 0.0
    %1795 = vmatprep.mubr.f32.mxu0 0.0
    %1796 = vmatmul.mubr.f32.gmra.mrb[0].mxu0 %v1726
    %v1797 = vpop.f32.mrb[0].mxu0
    %v1798 = vadd.f32 %v1717, %v1797
    %v1799 = vpop.f32.mrb[0].mxu0
    %1800 = vmatprep.mubr.f32.mxu0 0.0
    %1801 = vmatmul.mubr.f32.gmra.mrb[0].mxu0 %v1729
    %v1802 = vpop.f32.mrb[0].mxu0
    %v1803 = vadd.f32 %v1722, %v1802
    %v1804 = vpop.f32.mrb[0].mxu0
    %1805 = vdwg.mxu0
    %v1807 = vsel %vm205, %v1641, 0
    %v1810 = vsel %vm205, %v1643, 0
    %1812 = vmatprep.subr.mxu0 0.0
    %1813 = vmatpush1.msra.mxu0 %v1624
    %1814 = vmatprep.subr.mxu0 0.0
    %1815 = vmatpush1.msra.mxu0 %v1625
    %1816 = vmatprep.subr.mxu0 0.0
    %1817 = vmatpush1.msra.mxu0 %v1626
    %1818 = vmatprep.subr.mxu0 0.0
    %1819 = vmatpush1.msra.mxu0 %v1627
    %1820 = vmatprep.subr.mxu0 0.0
    %1821 = vmatpush1.msra.mxu0 %v1628
    %1822 = vmatprep.subr.mxu0 0.0
    %1823 = vmatpush1.msra.mxu0 %v1629
    %1824 = vmatprep.subr.mxu0 0.0
    %1825 = vmatpush1.msra.mxu0 %v1630
    %1826 = vmatprep.subr.mxu0 0.0
    %1827 = vmatpush1.msra.mxu0 %v1631
    %1828 = vmatprep.subr.mxu0 0.0
    %1829 = vmatpush1.msra.mxu0 0.0
    %1830 = vmatprep.subr.mxu0 0.0
    %1831 = vmatpush1.msra.mxu0 0.0
    %1832 = vmatprep.subr.mxu0 0.0
    %1833 = vmatpush1.msra.mxu0 0.0
    %1834 = vmatprep.subr.mxu0 0.0
    %1835 = vmatpush1.msra.mxu0 0.0
    %1836 = vmatprep.subr.mxu0 0.0
    %1837 = vmatpush1.msra.mxu0 0.0
    %1838 = vmatprep.subr.mxu0 0.0
    %1839 = vmatpush1.msra.mxu0 0.0
    %1840 = vmatprep.subr.mxu0 0.0
    %1841 = vmatpush1.msra.mxu0 0.0
    %1842 = vmatprep.subr.mxu0 0.0
    %1843 = vmatpush1.msra.mxu0 0.0
    %1844 = vmatprep.subr.mxu0 0.0
    %1845 = vmatpush1.msra.mxu0 0.0
    %1846 = vmatprep.subr.mxu0 0.0
    %1847 = vmatpush1.msra.mxu0 0.0
    %1848 = vmatprep.subr.mxu0 0.0
    %1849 = vmatpush1.msra.mxu0 0.0
    %1850 = vmatprep.subr.mxu0 0.0
    %1851 = vmatpush1.msra.mxu0 0.0
    %1852 = vmatprep.subr.mxu0 0.0
    %1853 = vmatpush1.msra.mxu0 0.0
    %1854 = vmatprep.subr.mxu0 0.0
    %1855 = vmatpush1.msra.mxu0 0.0
    %1856 = vmatprep.subr.mxu0 0.0
    %1857 = vmatpush1.msra.mxu0 0.0
    %1858 = vmatprep.subr.mxu0 0.0
    %1859 = vmatpush1.msra.mxu0 0.0
    %1860 = vmatprep.subr.mxu0 0.0
    %1861 = vmatpush1.msra.mxu0 0.0
    %1862 = vmatprep.subr.mxu0 0.0
    %1863 = vmatpush1.msra.mxu0 0.0
    %1864 = vmatprep.subr.mxu0 0.0
    %1865 = vmatpush1.msra.mxu0 0.0
    %1866 = vmatprep.subr.mxu0 0.0
    %1867 = vmatpush1.msra.mxu0 0.0
    %1868 = vmatprep.subr.mxu0 0.0
    %1869 = vmatpush1.msra.mxu0 0.0
    %1870 = vmatprep.subr.mxu0 0.0
    %1871 = vmatpush1.msra.mxu0 0.0
    %1872 = vmatprep.subr.mxu0 0.0
    %1873 = vmatpush1.msra.mxu0 0.0
    %1874 = vmatprep.subr.mxu0 0.0
    %1875 = vmatpush1.msra.mxu0 0.0
    %1876 = vmatprep.mubr.f32.mxu0 0.0
    %1877 = vmatmul.mubr.f32.gmra.mrb[0].mxu0 %v1807
    %v1878 = vpop.f32.mrb[0].mxu0
    %v1879 = vadd.f32 0.0, %v1878
    %v1880 = vpop.f32.mrb[0].mxu0
    %1881 = vmatprep.mubr.f32.mxu0 0.0
    %1882 = vmatmul.mubr.f32.gmra.mrb[0].mxu0 %v1810
    %v1883 = vpop.f32.mrb[0].mxu0
    %v1884 = vadd.f32 0.0, %v1883
    %v1885 = vpop.f32.mrb[0].mxu0
    %1886 = vdwg.mxu0
    %v1887 = vadd.f32 %v1798, %v1879
    %v1888 = vadd.f32 %v1803, %v1884
    %v1890 = vlaneseq
    %v1891 = vshrl.u32 %v1890, 7
    %v1892 = vsub.s32 0, %v1891
    %v1893 = vrot.slane %v1632, %v1892
    %v1895 = vadd.f32 %v1887, %v1893
    %v1896 = vadd.f32 %v1888, %v1893
    %v1897 = vmax.f32 %v1895, 0.0
    %v1898 = vmax.f32 %v1896, 0.0
    %1899 = vst.msk [vmem:[#allocation6 + $0x1] sm:$0xff] %vm205, %v1897
    %1900 = vst.msk [vmem:[#allocation6 + $0x11] sm:$0xff] %vm205, %v1898
    %v1901 = vld [vmem:[#allocation13] sm:$0xff]
    %v1902 = vld [vmem:[#allocation13 + $0x8] sm:$0xff]
    %v1903 = vld [vmem:[#allocation13 + $0x10] sm:$0xff]
    %v1904 = vld [vmem:[#allocation13 + $0x18] sm:$0xff]
    %v1905 = vld [vmem:[#allocation13 + $0x20] sm:$0xff]
    %v1906 = vld [vmem:[#allocation13 + $0x28] sm:$0xff]
    %v1907 = vld [vmem:[#allocation13 + $0x30] sm:$0xff]
    %v1908 = vld [vmem:[#allocation13 + $0x38] sm:$0xff]
    %v1909 = vld [vmem:[#allocation13 + $0x40] sm:$0xff]
    %v1910 = vld [vmem:[#allocation13 + $0x48] sm:$0xff]
    %v1911 = vld [vmem:[#allocation13 + $0x50] sm:$0xff]
    %v1912 = vld [vmem:[#allocation13 + $0x58] sm:$0xff]
    %v1913 = vld [vmem:[#allocation13 + $0x60] sm:$0xff]
    %v1914 = vld [vmem:[#allocation13 + $0x68] sm:$0xff]
    %v1915 = vld [vmem:[#allocation13 + $0x70] sm:$0xff]
    %v1916 = vld [vmem:[#allocation13 + $0x78] sm:$0xff]
    %v1917 = vld [vmem:[#allocation13 + $0x80] sm:$0xff]
    %v1918 = vld [vmem:[#allocation13 + $0x88] sm:$0xff]
    %v1919 = vld [vmem:[#allocation13 + $0x90] sm:$0xff]
    %v1920 = vld [vmem:[#allocation13 + $0x98] sm:$0xff]
    %v1921 = vld [vmem:[#allocation13 + $0xa0] sm:$0xff]
    %v1922 = vld [vmem:[#allocation13 + $0xa8] sm:$0xff]
    %v1923 = vld [vmem:[#allocation13 + $0xb0] sm:$0xff]
    %v1924 = vld [vmem:[#allocation13 + $0xb8] sm:$0xff]
    %v1925 = vld [vmem:[%s11] sm:$0x1]
    %v1926 = vld [vmem:[#allocation6] ss:$2 sm:$0xf]
    %s1927 = scalar_lea.vmem [#allocation6], 16
    %v1928 = vld [vmem:[%s1927] ss:$2 sm:$0xf]
    %s1929 = scalar_lea.vmem [#allocation6], 1
    %v1930 = vld [vmem:[%s1929] ss:$2 sm:$0xf]
    %s1931 = scalar_lea.vmem [#allocation6], 17
    %v1932 = vld [vmem:[%s1931] ss:$2 sm:$0xf]
    %s1933 = scalar_lea.vmem [#allocation6], 2
    %v1934 = vld [vmem:[%s1933] ss:$2 sm:$0xf]
    %s1935 = scalar_lea.vmem [#allocation6], 18
    %v1936 = vld [vmem:[%s1935] ss:$2 sm:$0xf]
    %v1939 = vcombine.low %v1930, %v1932
    %v1940 = vsel %vm205, %v1939, 0
    %1942 = vmatprep.subr.mxu0 0.0
    %1943 = vmatpush1.msra.mxu0 %v1909
    %1944 = vmatprep.subr.mxu0 0.0
    %1945 = vmatpush1.msra.mxu0 %v1910
    %1946 = vmatprep.subr.mxu0 0.0
    %1947 = vmatpush1.msra.mxu0 %v1911
    %1948 = vmatprep.subr.mxu0 0.0
    %1949 = vmatpush1.msra.mxu0 %v1912
    %1950 = vmatprep.subr.mxu0 0.0
    %1951 = vmatpush1.msra.mxu0 %v1913
    %1952 = vmatprep.subr.mxu0 0.0
    %1953 = vmatpush1.msra.mxu0 %v1914
    %1954 = vmatprep.subr.mxu0 0.0
    %1955 = vmatpush1.msra.mxu0 %v1915
    %1956 = vmatprep.subr.mxu0 0.0
    %1957 = vmatpush1.msra.mxu0 %v1916
    %1958 = vmatprep.subr.mxu0 0.0
    %1959 = vmatpush1.msra.mxu0 0.0
    %1960 = vmatprep.subr.mxu0 0.0
    %1961 = vmatpush1.msra.mxu0 0.0
    %1962 = vmatprep.subr.mxu0 0.0
    %1963 = vmatpush1.msra.mxu0 0.0
    %1964 = vmatprep.subr.mxu0 0.0
    %1965 = vmatpush1.msra.mxu0 0.0
    %1966 = vmatprep.subr.mxu0 0.0
    %1967 = vmatpush1.msra.mxu0 0.0
    %1968 = vmatprep.subr.mxu0 0.0
    %1969 = vmatpush1.msra.mxu0 0.0
    %1970 = vmatprep.subr.mxu0 0.0
    %1971 = vmatpush1.msra.mxu0 0.0
    %1972 = vmatprep.subr.mxu0 0.0
    %1973 = vmatpush1.msra.mxu0 0.0
    %1974 = vmatprep.subr.mxu0 0.0
    %1975 = vmatpush1.msra.mxu0 0.0
    %1976 = vmatprep.subr.mxu0 0.0
    %1977 = vmatpush1.msra.mxu0 0.0
    %1978 = vmatprep.subr.mxu0 0.0
    %1979 = vmatpush1.msra.mxu0 0.0
    %1980 = vmatprep.subr.mxu0 0.0
    %1981 = vmatpush1.msra.mxu0 0.0
    %1982 = vmatprep.subr.mxu0 0.0
    %1983 = vmatpush1.msra.mxu0 0.0
    %1984 = vmatprep.subr.mxu0 0.0
    %1985 = vmatpush1.msra.mxu0 0.0
    %1986 = vmatprep.subr.mxu0 0.0
    %1987 = vmatpush1.msra.mxu0 0.0
    %1988 = vmatprep.subr.mxu0 0.0
    %1989 = vmatpush1.msra.mxu0 0.0
    %1990 = vmatprep.subr.mxu0 0.0
    %1991 = vmatpush1.msra.mxu0 0.0
    %1992 = vmatprep.subr.mxu0 0.0
    %1993 = vmatpush1.msra.mxu0 0.0
    %1994 = vmatprep.subr.mxu0 0.0
    %1995 = vmatpush1.msra.mxu0 0.0
    %1996 = vmatprep.subr.mxu0 0.0
    %1997 = vmatpush1.msra.mxu0 0.0
    %1998 = vmatprep.subr.mxu0 0.0
    %1999 = vmatpush1.msra.mxu0 0.0
    %2000 = vmatprep.subr.mxu0 0.0
    %2001 = vmatpush1.msra.mxu0 0.0
    %2002 = vmatprep.subr.mxu0 0.0
    %2003 = vmatpush1.msra.mxu0 0.0
    %2004 = vmatprep.subr.mxu0 0.0
    %2005 = vmatpush1.msra.mxu0 0.0
    %2006 = vmatprep.mubr.f32.mxu0 0.0
    %2007 = vmatmul.mubr.f32.gmra.mrb[0].mxu0 %v1940
    %v2008 = vpop.f32.mrb[0].mxu0
    %v2009 = vadd.f32 0.0, %v2008
    %v2010 = vpop.f32.mrb[0].mxu0
    %2011 = vdwg.mxu0
    %v2014 = vcombine.low %v1926, %v1928
    %v2015 = vsel %vm205, %v2014, 0
    %2017 = vmatprep.subr.mxu0 0.0
    %2018 = vmatpush1.msra.mxu0 %v1901
    %2019 = vmatprep.subr.mxu0 0.0
    %2020 = vmatpush1.msra.mxu0 %v1902
    %2021 = vmatprep.subr.mxu0 0.0
    %2022 = vmatpush1.msra.mxu0 %v1903
    %2023 = vmatprep.subr.mxu0 0.0
    %2024 = vmatpush1.msra.mxu0 %v1904
    %2025 = vmatprep.subr.mxu0 0.0
    %2026 = vmatpush1.msra.mxu0 %v1905
    %2027 = vmatprep.subr.mxu0 0.0
    %2028 = vmatpush1.msra.mxu0 %v1906
    %2029 = vmatprep.subr.mxu0 0.0
    %2030 = vmatpush1.msra.mxu0 %v1907
    %2031 = vmatprep.subr.mxu0 0.0
    %2032 = vmatpush1.msra.mxu0 %v1908
    %2033 = vmatprep.subr.mxu0 0.0
    %2034 = vmatpush1.msra.mxu0 0.0
    %2035 = vmatprep.subr.mxu0 0.0
    %2036 = vmatpush1.msra.mxu0 0.0
    %2037 = vmatprep.subr.mxu0 0.0
    %2038 = vmatpush1.msra.mxu0 0.0
    %2039 = vmatprep.subr.mxu0 0.0
    %2040 = vmatpush1.msra.mxu0 0.0
    %2041 = vmatprep.subr.mxu0 0.0
    %2042 = vmatpush1.msra.mxu0 0.0
    %2043 = vmatprep.subr.mxu0 0.0
    %2044 = vmatpush1.msra.mxu0 0.0
    %2045 = vmatprep.subr.mxu0 0.0
    %2046 = vmatpush1.msra.mxu0 0.0
    %2047 = vmatprep.subr.mxu0 0.0
    %2048 = vmatpush1.msra.mxu0 0.0
    %2049 = vmatprep.subr.mxu0 0.0
    %2050 = vmatpush1.msra.mxu0 0.0
    %2051 = vmatprep.subr.mxu0 0.0
    %2052 = vmatpush1.msra.mxu0 0.0
    %2053 = vmatprep.subr.mxu0 0.0
    %2054 = vmatpush1.msra.mxu0 0.0
    %2055 = vmatprep.subr.mxu0 0.0
    %2056 = vmatpush1.msra.mxu0 0.0
    %2057 = vmatprep.subr.mxu0 0.0
    %2058 = vmatpush1.msra.mxu0 0.0
    %2059 = vmatprep.subr.mxu0 0.0
    %2060 = vmatpush1.msra.mxu0 0.0
    %2061 = vmatprep.subr.mxu0 0.0
    %2062 = vmatpush1.msra.mxu0 0.0
    %2063 = vmatprep.subr.mxu0 0.0
    %2064 = vmatpush1.msra.mxu0 0.0
    %2065 = vmatprep.subr.mxu0 0.0
    %2066 = vmatpush1.msra.mxu0 0.0
    %2067 = vmatprep.subr.mxu0 0.0
    %2068 = vmatpush1.msra.mxu0 0.0
    %2069 = vmatprep.subr.mxu0 0.0
    %2070 = vmatpush1.msra.mxu0 0.0
    %2071 = vmatprep.subr.mxu0 0.0
    %2072 = vmatpush1.msra.mxu0 0.0
    %2073 = vmatprep.subr.mxu0 0.0
    %2074 = vmatpush1.msra.mxu0 0.0
    %2075 = vmatprep.subr.mxu0 0.0
    %2076 = vmatpush1.msra.mxu0 0.0
    %2077 = vmatprep.subr.mxu0 0.0
    %2078 = vmatpush1.msra.mxu0 0.0
    %2079 = vmatprep.subr.mxu0 0.0
    %2080 = vmatpush1.msra.mxu0 0.0
    %2081 = vmatprep.mubr.f32.mxu0 0.0
    %2082 = vmatmul.mubr.f32.gmra.mrb[0].mxu0 %v2015
    %v2083 = vpop.f32.mrb[0].mxu0
    %v2084 = vadd.f32 %v2009, %v2083
    %v2085 = vpop.f32.mrb[0].mxu0
    %2086 = vdwg.mxu0
    %v2089 = vcombine.low %v1934, %v1936
    %v2090 = vsel %vm205, %v2089, 0
    %2092 = vmatprep.subr.mxu0 0.0
    %2093 = vmatpush1.msra.mxu0 %v1917
    %2094 = vmatprep.subr.mxu0 0.0
    %2095 = vmatpush1.msra.mxu0 %v1918
    %2096 = vmatprep.subr.mxu0 0.0
    %2097 = vmatpush1.msra.mxu0 %v1919
    %2098 = vmatprep.subr.mxu0 0.0
    %2099 = vmatpush1.msra.mxu0 %v1920
    %2100 = vmatprep.subr.mxu0 0.0
    %2101 = vmatpush1.msra.mxu0 %v1921
    %2102 = vmatprep.subr.mxu0 0.0
    %2103 = vmatpush1.msra.mxu0 %v1922
    %2104 = vmatprep.subr.mxu0 0.0
    %2105 = vmatpush1.msra.mxu0 %v1923
    %2106 = vmatprep.subr.mxu0 0.0
    %2107 = vmatpush1.msra.mxu0 %v1924
    %2108 = vmatprep.subr.mxu0 0.0
    %2109 = vmatpush1.msra.mxu0 0.0
    %2110 = vmatprep.subr.mxu0 0.0
    %2111 = vmatpush1.msra.mxu0 0.0
    %2112 = vmatprep.subr.mxu0 0.0
    %2113 = vmatpush1.msra.mxu0 0.0
    %2114 = vmatprep.subr.mxu0 0.0
    %2115 = vmatpush1.msra.mxu0 0.0
    %2116 = vmatprep.subr.mxu0 0.0
    %2117 = vmatpush1.msra.mxu0 0.0
    %2118 = vmatprep.subr.mxu0 0.0
    %2119 = vmatpush1.msra.mxu0 0.0
    %2120 = vmatprep.subr.mxu0 0.0
    %2121 = vmatpush1.msra.mxu0 0.0
    %2122 = vmatprep.subr.mxu0 0.0
    %2123 = vmatpush1.msra.mxu0 0.0
    %2124 = vmatprep.subr.mxu0 0.0
    %2125 = vmatpush1.msra.mxu0 0.0
    %2126 = vmatprep.subr.mxu0 0.0
    %2127 = vmatpush1.msra.mxu0 0.0
    %2128 = vmatprep.subr.mxu0 0.0
    %2129 = vmatpush1.msra.mxu0 0.0
    %2130 = vmatprep.subr.mxu0 0.0
    %2131 = vmatpush1.msra.mxu0 0.0
    %2132 = vmatprep.subr.mxu0 0.0
    %2133 = vmatpush1.msra.mxu0 0.0
    %2134 = vmatprep.subr.mxu0 0.0
    %2135 = vmatpush1.msra.mxu0 0.0
    %2136 = vmatprep.subr.mxu0 0.0
    %2137 = vmatpush1.msra.mxu0 0.0
    %2138 = vmatprep.subr.mxu0 0.0
    %2139 = vmatpush1.msra.mxu0 0.0
    %2140 = vmatprep.subr.mxu0 0.0
    %2141 = vmatpush1.msra.mxu0 0.0
    %2142 = vmatprep.subr.mxu0 0.0
    %2143 = vmatpush1.msra.mxu0 0.0
    %2144 = vmatprep.subr.mxu0 0.0
    %2145 = vmatpush1.msra.mxu0 0.0
    %2146 = vmatprep.subr.mxu0 0.0
    %2147 = vmatpush1.msra.mxu0 0.0
    %2148 = vmatprep.subr.mxu0 0.0
    %2149 = vmatpush1.msra.mxu0 0.0
    %2150 = vmatprep.subr.mxu0 0.0
    %2151 = vmatpush1.msra.mxu0 0.0
    %2152 = vmatprep.subr.mxu0 0.0
    %2153 = vmatpush1.msra.mxu0 0.0
    %2154 = vmatprep.subr.mxu0 0.0
    %2155 = vmatpush1.msra.mxu0 0.0
    %2156 = vmatprep.mubr.f32.mxu0 0.0
    %2157 = vmatmul.mubr.f32.gmra.mrb[0].mxu0 %v2090
    %v2158 = vpop.f32.mrb[0].mxu0
    %v2159 = vadd.f32 0.0, %v2158
    %v2160 = vpop.f32.mrb[0].mxu0
    %2161 = vdwg.mxu0
    %v2162 = vadd.f32 %v2084, %v2159
    %v2164 = vcombine.high %v2162, %v2162
    %v2167 = vlaneseq
    %v2168 = vshrl.u32 %v2167, 7
    %v2169 = vsub.s32 0, %v2168
    %v2170 = vrot.slane %v1925, %v2169
    %v2172 = vadd.f32 %v2162, %v2170
    %v2173 = vadd.f32 %v2164, %v2170
    %v2174 = vmax.f32 %v2172, 0.0
    %v2175 = vmax.f32 %v2173, 0.0
    %2176 = vst [vmem:[#allocation7 + $0x1] sm:$0xf] %v2174
    %2177 = vst [vmem:[#allocation7 + $0x9] sm:$0xf] %v2175
    %v2178 = vld [vmem:[#allocation14] sm:$0xff]
    %v2179 = vld [vmem:[#allocation14 + $0x8] sm:$0xff]
    %v2180 = vld [vmem:[#allocation14 + $0x10] sm:$0xff]
    %v2181 = vld [vmem:[#allocation14 + $0x18] sm:$0xff]
    %v2182 = vld [vmem:[#allocation14 + $0x20] sm:$0xff]
    %v2183 = vld [vmem:[#allocation14 + $0x28] sm:$0xff]
    %v2184 = vld [vmem:[#allocation14 + $0x30] sm:$0xff]
    %v2185 = vld [vmem:[#allocation14 + $0x38] sm:$0xff]
    %v2186 = vld [vmem:[#allocation14 + $0x40] sm:$0xff]
    %v2187 = vld [vmem:[#allocation14 + $0x48] sm:$0xff]
    %v2188 = vld [vmem:[#allocation14 + $0x50] sm:$0xff]
    %v2189 = vld [vmem:[#allocation14 + $0x58] sm:$0xff]
    %v2190 = vld [vmem:[#allocation14 + $0x60] sm:$0xff]
    %v2191 = vld [vmem:[#allocation14 + $0x68] sm:$0xff]
    %v2192 = vld [vmem:[#allocation14 + $0x70] sm:$0xff]
    %v2193 = vld [vmem:[#allocation14 + $0x78] sm:$0xff]
    %v2194 = vld [vmem:[#allocation14 + $0x80] sm:$0xff]
    %v2195 = vld [vmem:[#allocation14 + $0x88] sm:$0xff]
    %v2196 = vld [vmem:[#allocation14 + $0x90] sm:$0xff]
    %v2197 = vld [vmem:[#allocation14 + $0x98] sm:$0xff]
    %v2198 = vld [vmem:[#allocation14 + $0xa0] sm:$0xff]
    %v2199 = vld [vmem:[#allocation14 + $0xa8] sm:$0xff]
    %v2200 = vld [vmem:[#allocation14 + $0xb0] sm:$0xff]
    %v2201 = vld [vmem:[#allocation14 + $0xb8] sm:$0xff]
    %v2202 = vld [vmem:[#allocation14 + $0xc0] sm:$0xff]
    %v2203 = vld [vmem:[#allocation14 + $0xc8] sm:$0xff]
    %v2204 = vld [vmem:[#allocation14 + $0xd0] sm:$0xff]
    %v2205 = vld [vmem:[#allocation14 + $0xd8] sm:$0xff]
    %v2206 = vld [vmem:[#allocation14 + $0xe0] sm:$0xff]
    %v2207 = vld [vmem:[#allocation14 + $0xe8] sm:$0xff]
    %v2208 = vld [vmem:[#allocation14 + $0xf0] sm:$0xff]
    %v2209 = vld [vmem:[#allocation14 + $0xf8] sm:$0xff]
    %v2210 = vld [vmem:[#allocation14 + $0x100] sm:$0xff]
    %v2211 = vld [vmem:[#allocation14 + $0x108] sm:$0xff]
    %v2212 = vld [vmem:[#allocation14 + $0x110] sm:$0xff]
    %v2213 = vld [vmem:[#allocation14 + $0x118] sm:$0xff]
    %v2214 = vld [vmem:[#allocation14 + $0x120] sm:$0xff]
    %v2215 = vld [vmem:[#allocation14 + $0x128] sm:$0xff]
    %v2216 = vld [vmem:[#allocation14 + $0x130] sm:$0xff]
    %v2217 = vld [vmem:[#allocation14 + $0x138] sm:$0xff]
    %v2218 = vld [vmem:[#allocation14 + $0x140] sm:$0xff]
    %v2219 = vld [vmem:[#allocation14 + $0x148] sm:$0xff]
    %v2220 = vld [vmem:[#allocation14 + $0x150] sm:$0xff]
    %v2221 = vld [vmem:[#allocation14 + $0x158] sm:$0xff]
    %v2222 = vld [vmem:[#allocation14 + $0x160] sm:$0xff]
    %v2223 = vld [vmem:[#allocation14 + $0x168] sm:$0xff]
    %v2224 = vld [vmem:[#allocation14 + $0x170] sm:$0xff]
    %v2225 = vld [vmem:[#allocation14 + $0x178] sm:$0xff]
    %v2226 = vld [vmem:[%s12] sm:$0x1]
    %v2227 = vld [vmem:[#allocation7] ss:$2 sm:$0x3]
    %s2228 = scalar_lea.vmem [#allocation7], 8
    %v2229 = vld [vmem:[%s2228] ss:$2 sm:$0x3]
    %s2230 = scalar_lea.vmem [#allocation7], 1
    %v2231 = vld [vmem:[%s2230] ss:$2 sm:$0x3]
    %s2232 = scalar_lea.vmem [#allocation7], 9
    %v2233 = vld [vmem:[%s2232] ss:$2 sm:$0x3]
    %s2234 = scalar_lea.vmem [#allocation7], 2
    %v2235 = vld [vmem:[%s2234] ss:$2 sm:$0x3]
    %s2236 = scalar_lea.vmem [#allocation7], 10
    %v2237 = vld [vmem:[%s2236] ss:$2 sm:$0x3]
    %v2240 = vcombine.low %v2231, %v2233
    %v2242 = vunpack.c.l.s4 1983009808
    %v2243 = vunpack.c.0.s8 %v2242
    %v2244 = vlaneseq
    %v2245 = vshrl.u32 %v2244, 7
    %v2246 = vsub.s32 %v2243, %v2245
    %v2247 = vrot.slane %v2240, %v2246
    %2249 = vmatprep.subr.mxu0 0.0
    %2250 = vmatpush1.msra.mxu0 %v2194
    %2251 = vmatprep.subr.mxu0 0.0
    %2252 = vmatpush1.msra.mxu0 %v2195
    %2253 = vmatprep.subr.mxu0 0.0
    %2254 = vmatpush1.msra.mxu0 %v2196
    %2255 = vmatprep.subr.mxu0 0.0
    %2256 = vmatpush1.msra.mxu0 %v2197
    %2257 = vmatprep.subr.mxu0 0.0
    %2258 = vmatpush1.msra.mxu0 %v2198
    %2259 = vmatprep.subr.mxu0 0.0
    %2260 = vmatpush1.msra.mxu0 %v2199
    %2261 = vmatprep.subr.mxu0 0.0
    %2262 = vmatpush1.msra.mxu0 %v2200
    %2263 = vmatprep.subr.mxu0 0.0
    %2264 = vmatpush1.msra.mxu0 %v2201
    %2265 = vmatprep.subr.mxu0 0.0
    %2266 = vmatpush1.msra.mxu0 %v2202
    %2267 = vmatprep.subr.mxu0 0.0
    %2268 = vmatpush1.msra.mxu0 %v2203
    %2269 = vmatprep.subr.mxu0 0.0
    %2270 = vmatpush1.msra.mxu0 %v2204
    %2271 = vmatprep.subr.mxu0 0.0
    %2272 = vmatpush1.msra.mxu0 %v2205
    %2273 = vmatprep.subr.mxu0 0.0
    %2274 = vmatpush1.msra.mxu0 %v2206
    %2275 = vmatprep.subr.mxu0 0.0
    %2276 = vmatpush1.msra.mxu0 %v2207
    %2277 = vmatprep.subr.mxu0 0.0
    %2278 = vmatpush1.msra.mxu0 %v2208
    %2279 = vmatprep.subr.mxu0 0.0
    %2280 = vmatpush1.msra.mxu0 %v2209
    %2281 = vmatprep.subr.mxu0 0.0
    %2282 = vmatpush1.msra.mxu0 0.0
    %2283 = vmatprep.subr.mxu0 0.0
    %2284 = vmatpush1.msra.mxu0 0.0
    %2285 = vmatprep.subr.mxu0 0.0
    %2286 = vmatpush1.msra.mxu0 0.0
    %2287 = vmatprep.subr.mxu0 0.0
    %2288 = vmatpush1.msra.mxu0 0.0
    %2289 = vmatprep.subr.mxu0 0.0
    %2290 = vmatpush1.msra.mxu0 0.0
    %2291 = vmatprep.subr.mxu0 0.0
    %2292 = vmatpush1.msra.mxu0 0.0
    %2293 = vmatprep.subr.mxu0 0.0
    %2294 = vmatpush1.msra.mxu0 0.0
    %2295 = vmatprep.subr.mxu0 0.0
    %2296 = vmatpush1.msra.mxu0 0.0
    %2297 = vmatprep.subr.mxu0 0.0
    %2298 = vmatpush1.msra.mxu0 0.0
    %2299 = vmatprep.subr.mxu0 0.0
    %2300 = vmatpush1.msra.mxu0 0.0
    %2301 = vmatprep.subr.mxu0 0.0
    %2302 = vmatpush1.msra.mxu0 0.0
    %2303 = vmatprep.subr.mxu0 0.0
    %2304 = vmatpush1.msra.mxu0 0.0
    %2305 = vmatprep.subr.mxu0 0.0
    %2306 = vmatpush1.msra.mxu0 0.0
    %2307 = vmatprep.subr.mxu0 0.0
    %2308 = vmatpush1.msra.mxu0 0.0
    %2309 = vmatprep.subr.mxu0 0.0
    %2310 = vmatpush1.msra.mxu0 0.0
    %2311 = vmatprep.subr.mxu0 0.0
    %2312 = vmatpush1.msra.mxu0 0.0
    %2313 = vmatprep.mubr.f32.mxu0 0.0
    %2314 = vmatmul.mubr.f32.gmra.mrb[0].mxu0 %v2247
    %v2315 = vpop.f32.mrb[0].mxu0
    %v2316 = vadd.f32 0.0, %v2315
    %v2317 = vpop.f32.mrb[0].mxu0
    %2318 = vdwg.mxu0
    %v2321 = vcombine.low %v2227, %v2229
    %v2323 = vunpack.c.l.s4 1983009808
    %v2324 = vunpack.c.0.s8 %v2323
    %v2325 = vlaneseq
    %v2326 = vshrl.u32 %v2325, 7
    %v2327 = vsub.s32 %v2324, %v2326
    %v2328 = vrot.slane %v2321, %v2327
    %2330 = vmatprep.subr.mxu0 0.0
    %2331 = vmatpush1.msra.mxu0 %v2178
    %2332 = vmatprep.subr.mxu0 0.0
    %2333 = vmatpush1.msra.mxu0 %v2179
    %2334 = vmatprep.subr.mxu0 0.0
    %2335 = vmatpush1.msra.mxu0 %v2180
    %2336 = vmatprep.subr.mxu0 0.0
    %2337 = vmatpush1.msra.mxu0 %v2181
    %2338 = vmatprep.subr.mxu0 0.0
    %2339 = vmatpush1.msra.mxu0 %v2182
    %2340 = vmatprep.subr.mxu0 0.0
    %2341 = vmatpush1.msra.mxu0 %v2183
    %2342 = vmatprep.subr.mxu0 0.0
    %2343 = vmatpush1.msra.mxu0 %v2184
    %2344 = vmatprep.subr.mxu0 0.0
    %2345 = vmatpush1.msra.mxu0 %v2185
    %2346 = vmatprep.subr.mxu0 0.0
    %2347 = vmatpush1.msra.mxu0 %v2186
    %2348 = vmatprep.subr.mxu0 0.0
    %2349 = vmatpush1.msra.mxu0 %v2187
    %2350 = vmatprep.subr.mxu0 0.0
    %2351 = vmatpush1.msra.mxu0 %v2188
    %2352 = vmatprep.subr.mxu0 0.0
    %2353 = vmatpush1.msra.mxu0 %v2189
    %2354 = vmatprep.subr.mxu0 0.0
    %2355 = vmatpush1.msra.mxu0 %v2190
    %2356 = vmatprep.subr.mxu0 0.0
    %2357 = vmatpush1.msra.mxu0 %v2191
    %2358 = vmatprep.subr.mxu0 0.0
    %2359 = vmatpush1.msra.mxu0 %v2192
    %2360 = vmatprep.subr.mxu0 0.0
    %2361 = vmatpush1.msra.mxu0 %v2193
    %2362 = vmatprep.subr.mxu0 0.0
    %2363 = vmatpush1.msra.mxu0 0.0
    %2364 = vmatprep.subr.mxu0 0.0
    %2365 = vmatpush1.msra.mxu0 0.0
    %2366 = vmatprep.subr.mxu0 0.0
    %2367 = vmatpush1.msra.mxu0 0.0
    %2368 = vmatprep.subr.mxu0 0.0
    %2369 = vmatpush1.msra.mxu0 0.0
    %2370 = vmatprep.subr.mxu0 0.0
    %2371 = vmatpush1.msra.mxu0 0.0
    %2372 = vmatprep.subr.mxu0 0.0
    %2373 = vmatpush1.msra.mxu0 0.0
    %2374 = vmatprep.subr.mxu0 0.0
    %2375 = vmatpush1.msra.mxu0 0.0
    %2376 = vmatprep.subr.mxu0 0.0
    %2377 = vmatpush1.msra.mxu0 0.0
    %2378 = vmatprep.subr.mxu0 0.0
    %2379 = vmatpush1.msra.mxu0 0.0
    %2380 = vmatprep.subr.mxu0 0.0
    %2381 = vmatpush1.msra.mxu0 0.0
    %2382 = vmatprep.subr.mxu0 0.0
    %2383 = vmatpush1.msra.mxu0 0.0
    %2384 = vmatprep.subr.mxu0 0.0
    %2385 = vmatpush1.msra.mxu0 0.0
    %2386 = vmatprep.subr.mxu0 0.0
    %2387 = vmatpush1.msra.mxu0 0.0
    %2388 = vmatprep.subr.mxu0 0.0
    %2389 = vmatpush1.msra.mxu0 0.0
    %2390 = vmatprep.subr.mxu0 0.0
    %2391 = vmatpush1.msra.mxu0 0.0
    %2392 = vmatprep.subr.mxu0 0.0
    %2393 = vmatpush1.msra.mxu0 0.0
    %2394 = vmatprep.mubr.f32.mxu0 0.0
    %2395 = vmatmul.mubr.f32.gmra.mrb[0].mxu0 %v2328
    %v2396 = vpop.f32.mrb[0].mxu0
    %v2397 = vadd.f32 %v2316, %v2396
    %v2398 = vpop.f32.mrb[0].mxu0
    %2399 = vdwg.mxu0
    %v2402 = vcombine.low %v2235, %v2237
    %v2404 = vunpack.c.l.s4 1983009808
    %v2405 = vunpack.c.0.s8 %v2404
    %v2406 = vlaneseq
    %v2407 = vshrl.u32 %v2406, 7
    %v2408 = vsub.s32 %v2405, %v2407
    %v2409 = vrot.slane %v2402, %v2408
    %2411 = vmatprep.subr.mxu0 0.0
    %2412 = vmatpush1.msra.mxu0 %v2210
    %2413 = vmatprep.subr.mxu0 0.0
    %2414 = vmatpush1.msra.mxu0 %v2211
    %2415 = vmatprep.subr.mxu0 0.0
    %2416 = vmatpush1.msra.mxu0 %v2212
    %2417 = vmatprep.subr.mxu0 0.0
    %2418 = vmatpush1.msra.mxu0 %v2213
    %2419 = vmatprep.subr.mxu0 0.0
    %2420 = vmatpush1.msra.mxu0 %v2214
    %2421 = vmatprep.subr.mxu0 0.0
    %2422 = vmatpush1.msra.mxu0 %v2215
    %2423 = vmatprep.subr.mxu0 0.0
    %2424 = vmatpush1.msra.mxu0 %v2216
    %2425 = vmatprep.subr.mxu0 0.0
    %2426 = vmatpush1.msra.mxu0 %v2217
    %2427 = vmatprep.subr.mxu0 0.0
    %2428 = vmatpush1.msra.mxu0 %v2218
    %2429 = vmatprep.subr.mxu0 0.0
    %2430 = vmatpush1.msra.mxu0 %v2219
    %2431 = vmatprep.subr.mxu0 0.0
    %2432 = vmatpush1.msra.mxu0 %v2220
    %2433 = vmatprep.subr.mxu0 0.0
    %2434 = vmatpush1.msra.mxu0 %v2221
    %2435 = vmatprep.subr.mxu0 0.0
    %2436 = vmatpush1.msra.mxu0 %v2222
    %2437 = vmatprep.subr.mxu0 0.0
    %2438 = vmatpush1.msra.mxu0 %v2223
    %2439 = vmatprep.subr.mxu0 0.0
    %2440 = vmatpush1.msra.mxu0 %v2224
    %2441 = vmatprep.subr.mxu0 0.0
    %2442 = vmatpush1.msra.mxu0 %v2225
    %2443 = vmatprep.subr.mxu0 0.0
    %2444 = vmatpush1.msra.mxu0 0.0
    %2445 = vmatprep.subr.mxu0 0.0
    %2446 = vmatpush1.msra.mxu0 0.0
    %2447 = vmatprep.subr.mxu0 0.0
    %2448 = vmatpush1.msra.mxu0 0.0
    %2449 = vmatprep.subr.mxu0 0.0
    %2450 = vmatpush1.msra.mxu0 0.0
    %2451 = vmatprep.subr.mxu0 0.0
    %2452 = vmatpush1.msra.mxu0 0.0
    %2453 = vmatprep.subr.mxu0 0.0
    %2454 = vmatpush1.msra.mxu0 0.0
    %2455 = vmatprep.subr.mxu0 0.0
    %2456 = vmatpush1.msra.mxu0 0.0
    %2457 = vmatprep.subr.mxu0 0.0
    %2458 = vmatpush1.msra.mxu0 0.0
    %2459 = vmatprep.subr.mxu0 0.0
    %2460 = vmatpush1.msra.mxu0 0.0
    %2461 = vmatprep.subr.mxu0 0.0
    %2462 = vmatpush1.msra.mxu0 0.0
    %2463 = vmatprep.subr.mxu0 0.0
    %2464 = vmatpush1.msra.mxu0 0.0
    %2465 = vmatprep.subr.mxu0 0.0
    %2466 = vmatpush1.msra.mxu0 0.0
    %2467 = vmatprep.subr.mxu0 0.0
    %2468 = vmatpush1.msra.mxu0 0.0
    %2469 = vmatprep.subr.mxu0 0.0
    %2470 = vmatpush1.msra.mxu0 0.0
    %2471 = vmatprep.subr.mxu0 0.0
    %2472 = vmatpush1.msra.mxu0 0.0
    %2473 = vmatprep.subr.mxu0 0.0
    %2474 = vmatpush1.msra.mxu0 0.0
    %2475 = vmatprep.mubr.f32.mxu0 0.0
    %2476 = vmatmul.mubr.f32.gmra.mrb[0].mxu0 %v2409
    %v2477 = vpop.f32.mrb[0].mxu0
    %v2478 = vadd.f32 0.0, %v2477
    %v2479 = vpop.f32.mrb[0].mxu0
    %2480 = vdwg.mxu0
    %v2481 = vadd.f32 %v2397, %v2478
    %v2484 = vunpack.c.l.s4 1983009808
    %v2485 = vunpack.c.0.s8 %v2484
    %v2486 = vlaneseq
    %v2487 = vshrl.u32 %v2486, 7
    %v2488 = vsub.s32 %v2485, %v2487
    %v2489 = vrot.slane %v2481, %v2488
    %v2490 = vcombine.high %v2489, %v2489
    %v2494 = vlaneseq
    %v2495 = vshrl.u32 %v2494, 7
    %v2496 = vsub.s32 0, %v2495
    %v2497 = vrot.slane %v2226, %v2496
    %v2499 = vadd.f32 %v2489, %v2497
    %v2500 = vadd.f32 %v2490, %v2497
    %v2501 = vmax.f32 %v2499, 0.0
    %v2502 = vmax.f32 %v2500, 0.0
    %v2503 = vld [vmem:[#allocation16] sm:$0xff]
    %v2504 = vld [vmem:[#allocation16 + $0x8] sm:$0xff]
    %v2505 = vld [vmem:[#allocation16 + $0x10] sm:$0xff]
    %v2506 = vld [vmem:[#allocation16 + $0x18] sm:$0xff]
    %v2507 = vld [vmem:[#allocation16 + $0x20] sm:$0xff]
    %v2508 = vld [vmem:[#allocation16 + $0x28] sm:$0xff]
    %v2509 = vld [vmem:[#allocation16 + $0x30] sm:$0xff]
    %v2510 = vld [vmem:[#allocation16 + $0x38] sm:$0xff]
    %v2511 = vld [vmem:[#allocation16 + $0x40] sm:$0xff]
    %v2512 = vld [vmem:[#allocation16 + $0x48] sm:$0xff]
    %v2513 = vld [vmem:[#allocation16 + $0x50] sm:$0xff]
    %v2514 = vld [vmem:[#allocation16 + $0x58] sm:$0xff]
    %v2515 = vld [vmem:[#allocation16 + $0x60] sm:$0xff]
    %v2516 = vld [vmem:[#allocation16 + $0x68] sm:$0xff]
    %v2517 = vld [vmem:[#allocation16 + $0x70] sm:$0xff]
    %v2518 = vld [vmem:[#allocation16 + $0x78] sm:$0xff]
    %v2519 = vld [vmem:[#allocation16 + $0x80] sm:$0xff]
    %v2520 = vld [vmem:[#allocation16 + $0x88] sm:$0xff]
    %v2521 = vld [vmem:[#allocation16 + $0x90] sm:$0xff]
    %v2522 = vld [vmem:[#allocation16 + $0x98] sm:$0xff]
    %v2523 = vld [vmem:[#allocation16 + $0xa0] sm:$0xff]
    %v2524 = vld [vmem:[#allocation16 + $0xa8] sm:$0xff]
    %v2525 = vld [vmem:[#allocation16 + $0xb0] sm:$0xff]
    %v2526 = vld [vmem:[#allocation16 + $0xb8] sm:$0xff]
    %v2527 = vld [vmem:[#allocation16 + $0xc0] sm:$0xff]
    %v2528 = vld [vmem:[#allocation16 + $0xc8] sm:$0xff]
    %v2529 = vld [vmem:[#allocation16 + $0xd0] sm:$0xff]
    %v2530 = vld [vmem:[#allocation16 + $0xd8] sm:$0xff]
    %v2531 = vld [vmem:[#allocation16 + $0xe0] sm:$0xff]
    %v2532 = vld [vmem:[#allocation16 + $0xe8] sm:$0xff]
    %v2533 = vld [vmem:[#allocation16 + $0xf0] sm:$0xff]
    %v2534 = vld [vmem:[#allocation16 + $0xf8] sm:$0xff]
    %v2535 = vld [vmem:[#allocation16 + $0x100] sm:$0xff]
    %v2536 = vld [vmem:[#allocation16 + $0x108] sm:$0xff]
    %v2537 = vld [vmem:[#allocation16 + $0x110] sm:$0xff]
    %v2538 = vld [vmem:[#allocation16 + $0x118] sm:$0xff]
    %v2539 = vld [vmem:[#allocation16 + $0x120] sm:$0xff]
    %v2540 = vld [vmem:[#allocation16 + $0x128] sm:$0xff]
    %v2541 = vld [vmem:[#allocation16 + $0x130] sm:$0xff]
    %v2542 = vld [vmem:[#allocation16 + $0x138] sm:$0xff]
    %v2543 = vld [vmem:[#allocation16 + $0x140] sm:$0xff]
    %v2544 = vld [vmem:[#allocation16 + $0x148] sm:$0xff]
    %v2545 = vld [vmem:[#allocation16 + $0x150] sm:$0xff]
    %v2546 = vld [vmem:[#allocation16 + $0x158] sm:$0xff]
    %v2547 = vld [vmem:[#allocation16 + $0x160] sm:$0xff]
    %v2548 = vld [vmem:[#allocation16 + $0x168] sm:$0xff]
    %v2549 = vld [vmem:[#allocation16 + $0x170] sm:$0xff]
    %v2550 = vld [vmem:[#allocation16 + $0x178] sm:$0xff]
    %v2551 = vld [vmem:[%s15] sm:$0x7]
    %v2553 = vlaneseq
    %v2554 = vshrl.u32 %v2553, 7
    %v2555 = vsub.s32 0, %v2554
    %v2556 = vrot.slane %v2551, %v2555
    %v2557 = vlaneseq
    %v2558 = vshrl.u32 %v2557, 7
    %v2559 = vsub.s32 1, %v2558
    %v2560 = vrot.slane %v2551, %v2559
    %v2561 = vlaneseq
    %v2562 = vshrl.u32 %v2561, 7
    %v2563 = vsub.s32 2, %v2562
    %v2564 = vrot.slane %v2551, %v2563
    %v2570 = vcombine.low %v2501, %v2502
    %v2572 = vunpack.c.l.s4 1983009808
    %v2573 = vunpack.c.0.s8 %v2572
    %v2574 = vlaneseq
    %v2575 = vshrl.u32 %v2574, 7
    %v2576 = vsub.s32 %v2573, %v2575
    %v2577 = vrot.slane %v2570, %v2576
    %2579 = vmatprep.subr.mxu0 %v2504
    %2580 = vmatpush1.msra.mxu0 %v2503
    %2581 = vmatprep.subr.mxu0 %v2507
    %2582 = vmatpush1.msra.mxu0 %v2506
    %2583 = vmatprep.subr.mxu0 %v2510
    %2584 = vmatpush1.msra.mxu0 %v2509
    %2585 = vmatprep.subr.mxu0 %v2513
    %2586 = vmatpush1.msra.mxu0 %v2512
    %2587 = vmatprep.subr.mxu0 %v2516
    %2588 = vmatpush1.msra.mxu0 %v2515
    %2589 = vmatprep.subr.mxu0 %v2519
    %2590 = vmatpush1.msra.mxu0 %v2518
    %2591 = vmatprep.subr.mxu0 %v2522
    %2592 = vmatpush1.msra.mxu0 %v2521
    %2593 = vmatprep.subr.mxu0 %v2525
    %2594 = vmatpush1.msra.mxu0 %v2524
    %2595 = vmatprep.subr.mxu0 %v2528
    %2596 = vmatpush1.msra.mxu0 %v2527
    %2597 = vmatprep.subr.mxu0 %v2531
    %2598 = vmatpush1.msra.mxu0 %v2530
    %2599 = vmatprep.subr.mxu0 %v2534
    %2600 = vmatpush1.msra.mxu0 %v2533
    %2601 = vmatprep.subr.mxu0 %v2537
    %2602 = vmatpush1.msra.mxu0 %v2536
    %2603 = vmatprep.subr.mxu0 %v2540
    %2604 = vmatpush1.msra.mxu0 %v2539
    %2605 = vmatprep.subr.mxu0 %v2543
    %2606 = vmatpush1.msra.mxu0 %v2542
    %2607 = vmatprep.subr.mxu0 %v2546
    %2608 = vmatpush1.msra.mxu0 %v2545
    %2609 = vmatprep.subr.mxu0 %v2549
    %2610 = vmatpush1.msra.mxu0 %v2548
    %2611 = vmatprep.subr.mxu0 0.0
    %2612 = vmatpush1.msra.mxu0 0.0
    %2613 = vmatprep.subr.mxu0 0.0
    %2614 = vmatpush1.msra.mxu0 0.0
    %2615 = vmatprep.subr.mxu0 0.0
    %2616 = vmatpush1.msra.mxu0 0.0
    %2617 = vmatprep.subr.mxu0 0.0
    %2618 = vmatpush1.msra.mxu0 0.0
    %2619 = vmatprep.subr.mxu0 0.0
    %2620 = vmatpush1.msra.mxu0 0.0
    %2621 = vmatprep.subr.mxu0 0.0
    %2622 = vmatpush1.msra.mxu0 0.0
    %2623 = vmatprep.subr.mxu0 0.0
    %2624 = vmatpush1.msra.mxu0 0.0
    %2625 = vmatprep.subr.mxu0 0.0
    %2626 = vmatpush1.msra.mxu0 0.0
    %2627 = vmatprep.subr.mxu0 0.0
    %2628 = vmatpush1.msra.mxu0 0.0
    %2629 = vmatprep.subr.mxu0 0.0
    %2630 = vmatpush1.msra.mxu0 0.0
    %2631 = vmatprep.subr.mxu0 0.0
    %2632 = vmatpush1.msra.mxu0 0.0
    %2633 = vmatprep.subr.mxu0 0.0
    %2634 = vmatpush1.msra.mxu0 0.0
    %2635 = vmatprep.subr.mxu0 0.0
    %2636 = vmatpush1.msra.mxu0 0.0
    %2637 = vmatprep.subr.mxu0 0.0
    %2638 = vmatpush1.msra.mxu0 0.0
    %2639 = vmatprep.subr.mxu0 0.0
    %2640 = vmatpush1.msra.mxu0 0.0
    %2641 = vmatprep.subr.mxu0 0.0
    %2642 = vmatpush1.msra.mxu0 0.0
    %2643 = vmatprep.mubr.f32.mxu0 0.0
    %2644 = vmatmul.mubr.f32.gmra.mrb[0].mxu0 %v2577
    %v2645 = vpop.f32.mrb[0].mxu0
    %v2646 = vadd.f32 %v2556, %v2645
    %v2647 = vpop.f32.mrb[0].mxu0
    %v2648 = vadd.f32 %v2560, %v2647
    %2649 = vdwg.mxu0
    %2650 = vmatprep.subr.mxu0 0.0
    %2651 = vmatpush1.msra.mxu0 %v2505
    %2652 = vmatprep.subr.mxu0 0.0
    %2653 = vmatpush1.msra.mxu0 %v2508
    %2654 = vmatprep.subr.mxu0 0.0
    %2655 = vmatpush1.msra.mxu0 %v2511
    %2656 = vmatprep.subr.mxu0 0.0
    %2657 = vmatpush1.msra.mxu0 %v2514
    %2658 = vmatprep.subr.mxu0 0.0
    %2659 = vmatpush1.msra.mxu0 %v2517
    %2660 = vmatprep.subr.mxu0 0.0
    %2661 = vmatpush1.msra.mxu0 %v2520
    %2662 = vmatprep.subr.mxu0 0.0
    %2663 = vmatpush1.msra.mxu0 %v2523
    %2664 = vmatprep.subr.mxu0 0.0
    %2665 = vmatpush1.msra.mxu0 %v2526
    %2666 = vmatprep.subr.mxu0 0.0
    %2667 = vmatpush1.msra.mxu0 %v2529
    %2668 = vmatprep.subr.mxu0 0.0
    %2669 = vmatpush1.msra.mxu0 %v2532
    %2670 = vmatprep.subr.mxu0 0.0
    %2671 = vmatpush1.msra.mxu0 %v2535
    %2672 = vmatprep.subr.mxu0 0.0
    %2673 = vmatpush1.msra.mxu0 %v2538
    %2674 = vmatprep.subr.mxu0 0.0
    %2675 = vmatpush1.msra.mxu0 %v2541
    %2676 = vmatprep.subr.mxu0 0.0
    %2677 = vmatpush1.msra.mxu0 %v2544
    %2678 = vmatprep.subr.mxu0 0.0
    %2679 = vmatpush1.msra.mxu0 %v2547
    %2680 = vmatprep.subr.mxu0 0.0
    %2681 = vmatpush1.msra.mxu0 %v2550
    %2682 = vmatprep.subr.mxu0 0.0
    %2683 = vmatpush1.msra.mxu0 0.0
    %2684 = vmatprep.subr.mxu0 0.0
    %2685 = vmatpush1.msra.mxu0 0.0
    %2686 = vmatprep.subr.mxu0 0.0
    %2687 = vmatpush1.msra.mxu0 0.0
    %2688 = vmatprep.subr.mxu0 0.0
    %2689 = vmatpush1.msra.mxu0 0.0
    %2690 = vmatprep.subr.mxu0 0.0
    %2691 = vmatpush1.msra.mxu0 0.0
    %2692 = vmatprep.subr.mxu0 0.0
    %2693 = vmatpush1.msra.mxu0 0.0
    %2694 = vmatprep.subr.mxu0 0.0
    %2695 = vmatpush1.msra.mxu0 0.0
    %2696 = vmatprep.subr.mxu0 0.0
    %2697 = vmatpush1.msra.mxu0 0.0
    %2698 = vmatprep.subr.mxu0 0.0
    %2699 = vmatpush1.msra.mxu0 0.0
    %2700 = vmatprep.subr.mxu0 0.0
    %2701 = vmatpush1.msra.mxu0 0.0
    %2702 = vmatprep.subr.mxu0 0.0
    %2703 = vmatpush1.msra.mxu0 0.0
    %2704 = vmatprep.subr.mxu0 0.0
    %2705 = vmatpush1.msra.mxu0 0.0
    %2706 = vmatprep.subr.mxu0 0.0
    %2707 = vmatpush1.msra.mxu0 0.0
    %2708 = vmatprep.subr.mxu0 0.0
    %2709 = vmatpush1.msra.mxu0 0.0
    %2710 = vmatprep.subr.mxu0 0.0
    %2711 = vmatpush1.msra.mxu0 0.0
    %2712 = vmatprep.subr.mxu0 0.0
    %2713 = vmatpush1.msra.mxu0 0.0
    %2714 = vmatprep.mubr.f32.mxu0 0.0
    %2715 = vmatmul.mubr.f32.gmra.mrb[0].mxu0 %v2577
    %v2716 = vpop.f32.mrb[0].mxu0
    %v2717 = vadd.f32 %v2564, %v2716
    %v2718 = vpop.f32.mrb[0].mxu0
    %2719 = vdwg.mxu0
    %v2723 = vcombine.low %v2646, %v2648
    %v2725 = vunpack.c.l.s4 1983009808
    %v2726 = vunpack.c.0.s8 %v2725
    %v2727 = vlaneseq
    %v2728 = vshrl.u32 %v2727, 7
    %v2729 = vsub.s32 %v2726, %v2728
    %v2730 = vrot.slane %v2723, %v2729
    %v2732 = vunpack.c.l.s4 1983009808
    %v2733 = vunpack.c.0.s8 %v2732
    %v2734 = vlaneseq
    %v2735 = vshrl.u32 %v2734, 7
    %v2736 = vsub.s32 %v2733, %v2735
    %v2737 = vrot.slane %v2717, %v2736
    %v2738 = vcombine.low %v2730, %v2737
    %v2739 = vcombine.high %v2730, %v2737
    %v2742 = vld [vmem:[#allocation17] sm:$0xff]
    %v2743 = vld [vmem:[#allocation17 + $0x8] sm:$0xff]
    %v2744 = vld [vmem:[#allocation17 + $0x10] sm:$0xff]
    %v2745 = vld [vmem:[#allocation17 + $0x18] sm:$0xff]
    %v2746 = vld [vmem:[#allocation17 + $0x20] sm:$0xff]
    %v2747 = vld [vmem:[#allocation17 + $0x28] sm:$0xff]
    %v2748 = vld [vmem:[#allocation17 + $0x30] sm:$0xff]
    %v2749 = vld [vmem:[#allocation17 + $0x38] sm:$0xff]
    %v2750 = vld [vmem:[#allocation17 + $0x40] sm:$0xff]
    %v2751 = vld [vmem:[#allocation17 + $0x48] sm:$0xff]
    %v2752 = vld [vmem:[#allocation17 + $0x50] sm:$0xff]
    %v2753 = vld [vmem:[#allocation17 + $0x58] sm:$0xff]
    %v2754 = vld [vmem:[#allocation17 + $0x60] sm:$0xff]
    %v2755 = vld [vmem:[#allocation17 + $0x68] sm:$0xff]
    %v2756 = vld [vmem:[#allocation17 + $0x70] sm:$0xff]
    %v2757 = vld [vmem:[#allocation17 + $0x78] sm:$0xff]
    %v2758 = vld [vmem:[#allocation17 + $0x80] sm:$0xff]
    %v2759 = vld [vmem:[#allocation17 + $0x88] sm:$0xff]
    %v2760 = vld [vmem:[#allocation17 + $0x90] sm:$0xff]
    %v2761 = vld [vmem:[#allocation17 + $0x98] sm:$0xff]
    %v2762 = vld [vmem:[#allocation17 + $0xa0] sm:$0xff]
    %v2763 = vld [vmem:[#allocation17 + $0xa8] sm:$0xff]
    %v2764 = vld [vmem:[#allocation17 + $0xb0] sm:$0xff]
    %v2765 = vld [vmem:[#allocation17 + $0xb8] sm:$0xff]
    %v2766 = vld [vmem:[#allocation17 + $0xc0] sm:$0xff]
    %v2767 = vld [vmem:[#allocation17 + $0xc8] sm:$0xff]
    %v2768 = vld [vmem:[#allocation17 + $0xd0] sm:$0xff]
    %v2769 = vld [vmem:[#allocation17 + $0xd8] sm:$0xff]
    %v2770 = vld [vmem:[#allocation17 + $0xe0] sm:$0xff]
    %v2771 = vld [vmem:[#allocation17 + $0xe8] sm:$0xff]
    %v2772 = vld [vmem:[#allocation17 + $0xf0] sm:$0xff]
    %v2773 = vld [vmem:[#allocation17 + $0xf8] sm:$0xff]
    %v2774 = vld [vmem:[#allocation17 + $0x100] sm:$0xff]
    %v2775 = vld [vmem:[#allocation17 + $0x108] sm:$0xff]
    %v2776 = vld [vmem:[#allocation17 + $0x110] sm:$0xff]
    %v2777 = vld [vmem:[#allocation17 + $0x118] sm:$0xff]
    %v2778 = vld [vmem:[#allocation17 + $0x120] sm:$0xff]
    %v2779 = vld [vmem:[#allocation17 + $0x128] sm:$0xff]
    %v2780 = vld [vmem:[#allocation17 + $0x130] sm:$0xff]
    %v2781 = vld [vmem:[#allocation17 + $0x138] sm:$0xff]
    %v2782 = vld [vmem:[#allocation17 + $0x140] sm:$0xff]
    %v2783 = vld [vmem:[#allocation17 + $0x148] sm:$0xff]
    %v2784 = vld [vmem:[#allocation17 + $0x150] sm:$0xff]
    %v2785 = vld [vmem:[#allocation17 + $0x158] sm:$0xff]
    %v2786 = vld [vmem:[#allocation17 + $0x160] sm:$0xff]
    %v2787 = vld [vmem:[#allocation17 + $0x168] sm:$0xff]
    %v2788 = vld [vmem:[#allocation17 + $0x170] sm:$0xff]
    %v2789 = vld [vmem:[#allocation17 + $0x178] sm:$0xff]
    %v2790 = vld [vmem:[%s16] sm:$0x7]
    %v2792 = vlaneseq
    %v2793 = vshrl.u32 %v2792, 7
    %v2794 = vsub.s32 0, %v2793
    %v2795 = vrot.slane %v2790, %v2794
    %v2796 = vlaneseq
    %v2797 = vshrl.u32 %v2796, 7
    %v2798 = vsub.s32 1, %v2797
    %v2799 = vrot.slane %v2790, %v2798
    %v2800 = vlaneseq
    %v2801 = vshrl.u32 %v2800, 7
    %v2802 = vsub.s32 2, %v2801
    %v2803 = vrot.slane %v2790, %v2802
    %2807 = vmatprep.subr.mxu0 %v2743
    %2808 = vmatpush1.msra.mxu0 %v2742
    %2809 = vmatprep.subr.mxu0 %v2746
    %2810 = vmatpush1.msra.mxu0 %v2745
    %2811 = vmatprep.subr.mxu0 %v2749
    %2812 = vmatpush1.msra.mxu0 %v2748
    %2813 = vmatprep.subr.mxu0 %v2752
    %2814 = vmatpush1.msra.mxu0 %v2751
    %2815 = vmatprep.subr.mxu0 %v2755
    %2816 = vmatpush1.msra.mxu0 %v2754
    %2817 = vmatprep.subr.mxu0 %v2758
    %2818 = vmatpush1.msra.mxu0 %v2757
    %2819 = vmatprep.subr.mxu0 %v2761
    %2820 = vmatpush1.msra.mxu0 %v2760
    %2821 = vmatprep.subr.mxu0 %v2764
    %2822 = vmatpush1.msra.mxu0 %v2763
    %2823 = vmatprep.subr.mxu0 %v2767
    %2824 = vmatpush1.msra.mxu0 %v2766
    %2825 = vmatprep.subr.mxu0 %v2770
    %2826 = vmatpush1.msra.mxu0 %v2769
    %2827 = vmatprep.subr.mxu0 %v2773
    %2828 = vmatpush1.msra.mxu0 %v2772
    %2829 = vmatprep.subr.mxu0 %v2776
    %2830 = vmatpush1.msra.mxu0 %v2775
    %2831 = vmatprep.subr.mxu0 %v2779
    %2832 = vmatpush1.msra.mxu0 %v2778
    %2833 = vmatprep.subr.mxu0 %v2782
    %2834 = vmatpush1.msra.mxu0 %v2781
    %2835 = vmatprep.subr.mxu0 %v2785
    %2836 = vmatpush1.msra.mxu0 %v2784
    %2837 = vmatprep.subr.mxu0 %v2788
    %2838 = vmatpush1.msra.mxu0 %v2787
    %2839 = vmatprep.subr.mxu0 0.0
    %2840 = vmatpush1.msra.mxu0 0.0
    %2841 = vmatprep.subr.mxu0 0.0
    %2842 = vmatpush1.msra.mxu0 0.0
    %2843 = vmatprep.subr.mxu0 0.0
    %2844 = vmatpush1.msra.mxu0 0.0
    %2845 = vmatprep.subr.mxu0 0.0
    %2846 = vmatpush1.msra.mxu0 0.0
    %2847 = vmatprep.subr.mxu0 0.0
    %2848 = vmatpush1.msra.mxu0 0.0
    %2849 = vmatprep.subr.mxu0 0.0
    %2850 = vmatpush1.msra.mxu0 0.0
    %2851 = vmatprep.subr.mxu0 0.0
    %2852 = vmatpush1.msra.mxu0 0.0
    %2853 = vmatprep.subr.mxu0 0.0
    %2854 = vmatpush1.msra.mxu0 0.0
    %2855 = vmatprep.subr.mxu0 0.0
    %2856 = vmatpush1.msra.mxu0 0.0
    %2857 = vmatprep.subr.mxu0 0.0
    %2858 = vmatpush1.msra.mxu0 0.0
    %2859 = vmatprep.subr.mxu0 0.0
    %2860 = vmatpush1.msra.mxu0 0.0
    %2861 = vmatprep.subr.mxu0 0.0
    %2862 = vmatpush1.msra.mxu0 0.0
    %2863 = vmatprep.subr.mxu0 0.0
    %2864 = vmatpush1.msra.mxu0 0.0
    %2865 = vmatprep.subr.mxu0 0.0
    %2866 = vmatpush1.msra.mxu0 0.0
    %2867 = vmatprep.subr.mxu0 0.0
    %2868 = vmatpush1.msra.mxu0 0.0
    %2869 = vmatprep.subr.mxu0 0.0
    %2870 = vmatpush1.msra.mxu0 0.0
    %2871 = vmatprep.mubr.f32.mxu0 0.0
    %2872 = vmatmul.mubr.f32.gmra.mrb[0].mxu0 0.0
    %v2873 = vpop.f32.mrb[0].mxu0
    %v2874 = vadd.f32 %v2795, %v2873
    %v2875 = vpop.f32.mrb[0].mxu0
    %v2876 = vadd.f32 %v2799, %v2875
    %2877 = vdwg.mxu0
    %2878 = vmatprep.subr.mxu0 0.0
    %2879 = vmatpush1.msra.mxu0 %v2744
    %2880 = vmatprep.subr.mxu0 0.0
    %2881 = vmatpush1.msra.mxu0 %v2747
    %2882 = vmatprep.subr.mxu0 0.0
    %2883 = vmatpush1.msra.mxu0 %v2750
    %2884 = vmatprep.subr.mxu0 0.0
    %2885 = vmatpush1.msra.mxu0 %v2753
    %2886 = vmatprep.subr.mxu0 0.0
    %2887 = vmatpush1.msra.mxu0 %v2756
    %2888 = vmatprep.subr.mxu0 0.0
    %2889 = vmatpush1.msra.mxu0 %v2759
    %2890 = vmatprep.subr.mxu0 0.0
    %2891 = vmatpush1.msra.mxu0 %v2762
    %2892 = vmatprep.subr.mxu0 0.0
    %2893 = vmatpush1.msra.mxu0 %v2765
    %2894 = vmatprep.subr.mxu0 0.0
    %2895 = vmatpush1.msra.mxu0 %v2768
    %2896 = vmatprep.subr.mxu0 0.0
    %2897 = vmatpush1.msra.mxu0 %v2771
    %2898 = vmatprep.subr.mxu0 0.0
    %2899 = vmatpush1.msra.mxu0 %v2774
    %2900 = vmatprep.subr.mxu0 0.0
    %2901 = vmatpush1.msra.mxu0 %v2777
    %2902 = vmatprep.subr.mxu0 0.0
    %2903 = vmatpush1.msra.mxu0 %v2780
    %2904 = vmatprep.subr.mxu0 0.0
    %2905 = vmatpush1.msra.mxu0 %v2783
    %2906 = vmatprep.subr.mxu0 0.0
    %2907 = vmatpush1.msra.mxu0 %v2786
    %2908 = vmatprep.subr.mxu0 0.0
    %2909 = vmatpush1.msra.mxu0 %v2789
    %2910 = vmatprep.subr.mxu0 0.0
    %2911 = vmatpush1.msra.mxu0 0.0
    %2912 = vmatprep.subr.mxu0 0.0
    %2913 = vmatpush1.msra.mxu0 0.0
    %2914 = vmatprep.subr.mxu0 0.0
    %2915 = vmatpush1.msra.mxu0 0.0
    %2916 = vmatprep.subr.mxu0 0.0
    %2917 = vmatpush1.msra.mxu0 0.0
    %2918 = vmatprep.subr.mxu0 0.0
    %2919 = vmatpush1.msra.mxu0 0.0
    %2920 = vmatprep.subr.mxu0 0.0
    %2921 = vmatpush1.msra.mxu0 0.0
    %2922 = vmatprep.subr.mxu0 0.0
    %2923 = vmatpush1.msra.mxu0 0.0
    %2924 = vmatprep.subr.mxu0 0.0
    %2925 = vmatpush1.msra.mxu0 0.0
    %2926 = vmatprep.subr.mxu0 0.0
    %2927 = vmatpush1.msra.mxu0 0.0
    %2928 = vmatprep.subr.mxu0 0.0
    %2929 = vmatpush1.msra.mxu0 0.0
    %2930 = vmatprep.subr.mxu0 0.0
    %2931 = vmatpush1.msra.mxu0 0.0
    %2932 = vmatprep.subr.mxu0 0.0
    %2933 = vmatpush1.msra.mxu0 0.0
    %2934 = vmatprep.subr.mxu0 0.0
    %2935 = vmatpush1.msra.mxu0 0.0
    %2936 = vmatprep.subr.mxu0 0.0
    %2937 = vmatpush1.msra.mxu0 0.0
    %2938 = vmatprep.subr.mxu0 0.0
    %2939 = vmatpush1.msra.mxu0 0.0
    %2940 = vmatprep.subr.mxu0 0.0
    %2941 = vmatpush1.msra.mxu0 0.0
    %2942 = vmatprep.mubr.f32.mxu0 0.0
    %2943 = vmatmul.mubr.f32.gmra.mrb[0].mxu0 0.0
    %v2944 = vpop.f32.mrb[0].mxu0
    %v2945 = vadd.f32 %v2803, %v2944
    %v2946 = vpop.f32.mrb[0].mxu0
    %2947 = vdwg.mxu0
    %v2950 = vunpack.c.l.s4 1983009808
    %v2951 = vunpack.c.0.s8 %v2950
    %v2952 = vlaneseq
    %v2953 = vshrl.u32 %v2952, 7
    %v2954 = vsub.s32 %v2951, %v2953
    %v2955 = vrot.slane %v2874, %v2954
    %v2956 = vrot.slane %v2955, 1
    %v2959 = vadd.f32 %v2738, %v2955
    %v2960 = vadd.f32 %v2739, %v2956
    %v2961 = vxor.u32 %v2959, 2147483648
    %v2962 = vxor.u32 %v2960, 2147483648
    %v2963 = vmul.f32 %v2961, 1.442695
    %v2964 = vpow.pop %v2963
    %v2965 = vmul.f32 %v2962, 1.442695
    %v2966 = vpow.pop %v2965
    %v2967 = vadd.f32 %v2964, 1.0
    %v2968 = vadd.f32 %v2966, 1.0
    %v2969 = vrcp.pop %v2967
    %v2970 = vmul.f32 1.0, %v2969
    %v2971 = vrcp.pop %v2968
    %v2972 = vmul.f32 1.0, %v2971
    %v2973 = vrot.slane %v2738, 2
    %v2974 = vrot.slane %v2739, 2
    %v2979 = vunpack.c.l.s4 1983009808
    %v2980 = vunpack.c.0.s8 %v2979
    %v2981 = vlaneseq
    %v2982 = vshrl.u32 %v2981, 7
    %v2983 = vsub.s32 %v2980, %v2982
    %v2984 = vrot.slane %v2876, %v2983
    %v2985 = vrot.slane %v2984, 1
    %v2988 = vadd.f32 %v2973, %v2984
    %v2989 = vadd.f32 %v2974, %v2985
    %v2990 = vxor.u32 %v2988, 2147483648
    %v2991 = vxor.u32 %v2989, 2147483648
    %v2992 = vmul.f32 %v2990, 1.442695
    %v2993 = vpow.pop %v2992
    %v2994 = vmul.f32 %v2991, 1.442695
    %v2995 = vpow.pop %v2994
    %v2996 = vadd.f32 %v2993, 1.0
    %v2997 = vadd.f32 %v2995, 1.0
    %v2998 = vrcp.pop %v2996
    %v2999 = vmul.f32 1.0, %v2998
    %v3000 = vrcp.pop %v2997
    %v3001 = vmul.f32 1.0, %v3000
    %v3004 = vunpack.c.l.s4 1983009808
    %v3005 = vunpack.c.0.s8 %v3004
    %v3006 = vlaneseq
    %v3007 = vshrl.u32 %v3006, 7
    %v3008 = vsub.s32 %v3005, %v3007
    %v3009 = vrot.slane %v2945, %v3008
    %v3010 = vrot.slane %v3009, 1
    %v3013 = vmul.f32 %v2970, %v3009
    %v3014 = vmul.f32 %v2972, %v3010
    %v3015 = vrot.slane %v2738, 4
    %v3016 = vrot.slane %v2739, 4
    %v3019 = vadd.f32 %v3015, %v3013
    %v3020 = vadd.f32 %v3016, %v3014
    %v3021 = vtanh.pop %v3019
    %v3022 = vtanh.pop %v3020
    %v3023 = vsub.f32 1.0, %v2999
    %v3024 = vsub.f32 1.0, %v3001
    %v3025 = vmul.f32 %v3023, %v3021
    %v3026 = vmul.f32 %v3024, %v3022
    %v3027 = vmul.f32 %v2999, 0.0
    %v3028 = vmul.f32 %v3001, 0.0
    %v3029 = vadd.f32 %v3025, %v3027
    %v3030 = vadd.f32 %v3026, %v3028
    %v3033 = vlaneseq
    %v3034 = vshrl.u32 %v3033, 7
    %v3035 = vsub.s32 0, %v3034
    %v3036 = vrot.slane %v3029, %v3035
    %v3037 = vlaneseq
    %v3038 = vshrl.u32 %v3037, 7
    %v3039 = vsub.s32 0, %v3038
    %v3040 = vrot.slane %v3030, %v3039
    %vm3041 = vcmask 1041409
    %v3042 = vsel %vm3041, %v3040, %v3036
    %3044 = vmatprep.subr.mxu0 %v2743
    %3045 = vmatpush1.msra.mxu0 %v2742
    %3046 = vmatprep.subr.mxu0 %v2746
    %3047 = vmatpush1.msra.mxu0 %v2745
    %3048 = vmatprep.subr.mxu0 %v2749
    %3049 = vmatpush1.msra.mxu0 %v2748
    %3050 = vmatprep.subr.mxu0 %v2752
    %3051 = vmatpush1.msra.mxu0 %v2751
    %3052 = vmatprep.subr.mxu0 %v2755
    %3053 = vmatpush1.msra.mxu0 %v2754
    %3054 = vmatprep.subr.mxu0 %v2758
    %3055 = vmatpush1.msra.mxu0 %v2757
    %3056 = vmatprep.subr.mxu0 %v2761
    %3057 = vmatpush1.msra.mxu0 %v2760
    %3058 = vmatprep.subr.mxu0 %v2764
    %3059 = vmatpush1.msra.mxu0 %v2763
    %3060 = vmatprep.subr.mxu0 %v2767
    %3061 = vmatpush1.msra.mxu0 %v2766
    %3062 = vmatprep.subr.mxu0 %v2770
    %3063 = vmatpush1.msra.mxu0 %v2769
    %3064 = vmatprep.subr.mxu0 %v2773
    %3065 = vmatpush1.msra.mxu0 %v2772
    %3066 = vmatprep.subr.mxu0 %v2776
    %3067 = vmatpush1.msra.mxu0 %v2775
    %3068 = vmatprep.subr.mxu0 %v2779
    %3069 = vmatpush1.msra.mxu0 %v2778
    %3070 = vmatprep.subr.mxu0 %v2782
    %3071 = vmatpush1.msra.mxu0 %v2781
    %3072 = vmatprep.subr.mxu0 %v2785
    %3073 = vmatpush1.msra.mxu0 %v2784
    %3074 = vmatprep.subr.mxu0 %v2788
    %3075 = vmatpush1.msra.mxu0 %v2787
    %3076 = vmatprep.subr.mxu0 0.0
    %3077 = vmatpush1.msra.mxu0 0.0
    %3078 = vmatprep.subr.mxu0 0.0
    %3079 = vmatpush1.msra.mxu0 0.0
    %3080 = vmatprep.subr.mxu0 0.0
    %3081 = vmatpush1.msra.mxu0 0.0
    %3082 = vmatprep.subr.mxu0 0.0
    %3083 = vmatpush1.msra.mxu0 0.0
    %3084 = vmatprep.subr.mxu0 0.0
    %3085 = vmatpush1.msra.mxu0 0.0
    %3086 = vmatprep.subr.mxu0 0.0
    %3087 = vmatpush1.msra.mxu0 0.0
    %3088 = vmatprep.subr.mxu0 0.0
    %3089 = vmatpush1.msra.mxu0 0.0
    %3090 = vmatprep.subr.mxu0 0.0
    %3091 = vmatpush1.msra.mxu0 0.0
    %3092 = vmatprep.subr.mxu0 0.0
    %3093 = vmatpush1.msra.mxu0 0.0
    %3094 = vmatprep.subr.mxu0 0.0
    %3095 = vmatpush1.msra.mxu0 0.0
    %3096 = vmatprep.subr.mxu0 0.0
    %3097 = vmatpush1.msra.mxu0 0.0
    %3098 = vmatprep.subr.mxu0 0.0
    %3099 = vmatpush1.msra.mxu0 0.0
    %3100 = vmatprep.subr.mxu0 0.0
    %3101 = vmatpush1.msra.mxu0 0.0
    %3102 = vmatprep.subr.mxu0 0.0
    %3103 = vmatpush1.msra.mxu0 0.0
    %3104 = vmatprep.subr.mxu0 0.0
    %3105 = vmatpush1.msra.mxu0 0.0
    %3106 = vmatprep.subr.mxu0 0.0
    %3107 = vmatpush1.msra.mxu0 0.0
    %3108 = vmatprep.mubr.f32.mxu0 0.0
    %3109 = vmatmul.mubr.f32.gmra.mrb[0].mxu0 %v3042
    %v3110 = vpop.f32.mrb[0].mxu0
    %v3111 = vadd.f32 %v2795, %v3110
    %v3112 = vpop.f32.mrb[0].mxu0
    %v3113 = vadd.f32 %v2799, %v3112
    %3114 = vdwg.mxu0
    %3115 = vmatprep.subr.mxu0 0.0
    %3116 = vmatpush1.msra.mxu0 %v2744
    %3117 = vmatprep.subr.mxu0 0.0
    %3118 = vmatpush1.msra.mxu0 %v2747
    %3119 = vmatprep.subr.mxu0 0.0
    %3120 = vmatpush1.msra.mxu0 %v2750
    %3121 = vmatprep.subr.mxu0 0.0
    %3122 = vmatpush1.msra.mxu0 %v2753
    %3123 = vmatprep.subr.mxu0 0.0
    %3124 = vmatpush1.msra.mxu0 %v2756
    %3125 = vmatprep.subr.mxu0 0.0
    %3126 = vmatpush1.msra.mxu0 %v2759
    %3127 = vmatprep.subr.mxu0 0.0
    %3128 = vmatpush1.msra.mxu0 %v2762
    %3129 = vmatprep.subr.mxu0 0.0
    %3130 = vmatpush1.msra.mxu0 %v2765
    %3131 = vmatprep.subr.mxu0 0.0
    %3132 = vmatpush1.msra.mxu0 %v2768
    %3133 = vmatprep.subr.mxu0 0.0
    %3134 = vmatpush1.msra.mxu0 %v2771
    %3135 = vmatprep.subr.mxu0 0.0
    %3136 = vmatpush1.msra.mxu0 %v2774
    %3137 = vmatprep.subr.mxu0 0.0
    %3138 = vmatpush1.msra.mxu0 %v2777
    %3139 = vmatprep.subr.mxu0 0.0
    %3140 = vmatpush1.msra.mxu0 %v2780
    %3141 = vmatprep.subr.mxu0 0.0
    %3142 = vmatpush1.msra.mxu0 %v2783
    %3143 = vmatprep.subr.mxu0 0.0
    %3144 = vmatpush1.msra.mxu0 %v2786
    %3145 = vmatprep.subr.mxu0 0.0
    %3146 = vmatpush1.msra.mxu0 %v2789
    %3147 = vmatprep.subr.mxu0 0.0
    %3148 = vmatpush1.msra.mxu0 0.0
    %3149 = vmatprep.subr.mxu0 0.0
    %3150 = vmatpush1.msra.mxu0 0.0
    %3151 = vmatprep.subr.mxu0 0.0
    %3152 = vmatpush1.msra.mxu0 0.0
    %3153 = vmatprep.subr.mxu0 0.0
    %3154 = vmatpush1.msra.mxu0 0.0
    %3155 = vmatprep.subr.mxu0 0.0
    %3156 = vmatpush1.msra.mxu0 0.0
    %3157 = vmatprep.subr.mxu0 0.0
    %3158 = vmatpush1.msra.mxu0 0.0
    %3159 = vmatprep.subr.mxu0 0.0
    %3160 = vmatpush1.msra.mxu0 0.0
    %3161 = vmatprep.subr.mxu0 0.0
    %3162 = vmatpush1.msra.mxu0 0.0
    %3163 = vmatprep.subr.mxu0 0.0
    %3164 = vmatpush1.msra.mxu0 0.0
    %3165 = vmatprep.subr.mxu0 0.0
    %3166 = vmatpush1.msra.mxu0 0.0
    %3167 = vmatprep.subr.mxu0 0.0
    %3168 = vmatpush1.msra.mxu0 0.0
    %3169 = vmatprep.subr.mxu0 0.0
    %3170 = vmatpush1.msra.mxu0 0.0
    %3171 = vmatprep.subr.mxu0 0.0
    %3172 = vmatpush1.msra.mxu0 0.0
    %3173 = vmatprep.subr.mxu0 0.0
    %3174 = vmatpush1.msra.mxu0 0.0
    %3175 = vmatprep.subr.mxu0 0.0
    %3176 = vmatpush1.msra.mxu0 0.0
    %3177 = vmatprep.subr.mxu0 0.0
    %3178 = vmatpush1.msra.mxu0 0.0
    %3179 = vmatprep.mubr.f32.mxu0 0.0
    %3180 = vmatmul.mubr.f32.gmra.mrb[0].mxu0 %v3042
    %v3181 = vpop.f32.mrb[0].mxu0
    %v3182 = vadd.f32 %v2803, %v3181
    %v3183 = vpop.f32.mrb[0].mxu0
    %3184 = vdwg.mxu0
    %v3187 = vunpack.c.l.s4 1983009808
    %v3188 = vunpack.c.0.s8 %v3187
    %v3189 = vlaneseq
    %v3190 = vshrl.u32 %v3189, 7
    %v3191 = vsub.s32 %v3188, %v3190
    %v3192 = vrot.slane %v3111, %v3191
    %v3193 = vrot.slane %v3192, 7
    %v3196 = vadd.f32 %v2738, %v3193
    %v3197 = vadd.f32 %v2739, %v3192
    %v3198 = vxor.u32 %v3196, 2147483648
    %v3199 = vxor.u32 %v3197, 2147483648
    %v3200 = vmul.f32 %v3198, 1.442695
    %v3201 = vpow.pop %v3200
    %v3202 = vmul.f32 %v3199, 1.442695
    %v3203 = vpow.pop %v3202
    %v3204 = vadd.f32 %v3201, 1.0
    %v3205 = vadd.f32 %v3203, 1.0
    %v3206 = vrcp.pop %v3204
    %v3207 = vmul.f32 1.0, %v3206
    %v3208 = vrcp.pop %v3205
    %v3209 = vmul.f32 1.0, %v3208
    %v3212 = vunpack.c.l.s4 1983009808
    %v3213 = vunpack.c.0.s8 %v3212
    %v3214 = vlaneseq
    %v3215 = vshrl.u32 %v3214, 7
    %v3216 = vsub.s32 %v3213, %v3215
    %v3217 = vrot.slane %v3113, %v3216
    %v3218 = vrot.slane %v3217, 7
    %v3221 = vadd.f32 %v2973, %v3218
    %v3222 = vadd.f32 %v2974, %v3217
    %v3223 = vxor.u32 %v3221, 2147483648
    %v3224 = vxor.u32 %v3222, 2147483648
    %v3225 = vmul.f32 %v3223, 1.442695
    %v3226 = vpow.pop %v3225
    %v3227 = vmul.f32 %v3224, 1.442695
    %v3228 = vpow.pop %v3227
    %v3229 = vadd.f32 %v3226, 1.0
    %v3230 = vadd.f32 %v3228, 1.0
    %v3231 = vrcp.pop %v3229
    %v3232 = vmul.f32 1.0, %v3231
    %v3233 = vrcp.pop %v3230
    %v3234 = vmul.f32 1.0, %v3233
    %v3237 = vunpack.c.l.s4 1983009808
    %v3238 = vunpack.c.0.s8 %v3237
    %v3239 = vlaneseq
    %v3240 = vshrl.u32 %v3239, 7
    %v3241 = vsub.s32 %v3238, %v3240
    %v3242 = vrot.slane %v3182, %v3241
    %v3243 = vrot.slane %v3242, 7
    %v3246 = vmul.f32 %v3207, %v3243
    %v3247 = vmul.f32 %v3209, %v3242
    %v3248 = vadd.f32 %v3015, %v3246
    %v3249 = vadd.f32 %v3016, %v3247
    %v3250 = vtanh.pop %v3248
    %v3251 = vtanh.pop %v3249
    %v3252 = vsub.f32 1.0, %v3232
    %v3253 = vsub.f32 1.0, %v3234
    %v3254 = vmul.f32 %v3252, %v3250
    %v3255 = vmul.f32 %v3253, %v3251
    %v3256 = vrot.slane %v3029, 7
    %v3257 = vrot.slane %v3030, 7
    %v3260 = vmul.f32 %v3232, %v3256
    %v3261 = vmul.f32 %v3234, %v3257
    %v3262 = vadd.f32 %v3254, %v3260
    %v3263 = vadd.f32 %v3255, %v3261
    %v3266 = vlaneseq
    %v3267 = vshrl.u32 %v3266, 7
    %v3268 = vsub.s32 1, %v3267
    %v3269 = vrot.slane %v3262, %v3268
    %v3270 = vlaneseq
    %v3271 = vshrl.u32 %v3270, 7
    %v3272 = vsub.s32 1, %v3271
    %v3273 = vrot.slane %v3263, %v3272
    %vm3274 = vcmask 1042434
    %v3275 = vsel %vm3274, %v3273, %v3269
    %3277 = vst [vmem:[#allocation19 - $0x1] sm:$0x6] %v3275
    // Predicated region
    $region94: #{tpu_custom_call.1} parent=1 // pred_check
      _
    $region95: #{tpu_custom_call.1} parent=1 // pred_check_branch
      %3279 = sbr.rel (0) target = $region97
    $region96: #{tpu_custom_call.1} parent=1 // pred_region
      %s3281 = ssub.s32 32, 32
      %3282 = vsyncadd [#allocation10], %s3281
      %s3284 = sshll.u32 [#allocation19], 4
      %s3285 = int_to_ptr.vmem [resolvable:$true] %s3284
      %3287 = dma.vmem_to_hbm [thread:$0]  %s3285, 32, %s17, [#allocation10]
    $region97: #{tpu_custom_call.1} parent=1 // pred_fallthru
      _
    // Predicated region
    $region98: #{tpu_custom_call.1} parent=1 // pred_check
      _
    $region99: #{tpu_custom_call.1} parent=1 // pred_check_branch
      %3289 = sbr.rel (0) target = $region101
    $region100: #{tpu_custom_call.1} parent=1 // pred_region
      %3290 = dma.done [#allocation10], 32
    $region101: #{tpu_custom_call.1} parent=1 // pred_fallthru
      _
    %3291 = vsyncpa [#allocation9], 1
    %3292 = vsyncpa [#allocation12], 1
    %3293 = vsyncpa [#allocation15], 1
    %3294 = vsyncpa [#allocation18], 1
    %3295 = vsyncpa [#allocation10], 1

</llo_original>
